<compile_context>
chip_gen: v6e
topology: v6e:2x2x1
jax: 0.10.0
libtpu: 0.0.40
codegen_flags: <defaults>
</compile_context>

<pallas_src>
import functools

import jax
import jax.numpy as jnp
from jax.experimental import pallas as pl
from jax.experimental.pallas import tpu as pltpu


def _round_up(x, m):
    return ((x + m - 1) // m) * m


def encoder_gru_chunk_kernel(x_ref, w_ih_ref, w_hh_ref, b_ih_ref, b_hh_ref,
                             h0_ref, out_ref, h_ref, *,
                             hidden_pad, n_layers, block_tokens):
    """One grid step = one chunk of `block_tokens` tokens."""
    Hp = hidden_pad

    # Initialize the carried hidden state on the first chunk.
    @pl.when(pl.program_id(0) == 0)
    def _():
        h_ref[...] = h0_ref[...]

    w_ih = w_ih_ref[...]          # (Hp, 3*Hp) bf16, gates r|z|n in 128-lane slabs
    w_hh = w_hh_ref[...]          # (Hp, 3*Hp) bf16
    b_ih = b_ih_ref[...]          # (1, 3*Hp) f32
    b_hh = b_hh_ref[...]          # (1, 3*Hp) f32

    # Hoisted layer-0 input transform for the whole chunk: one MXU-friendly
    # (Tc, Hp) x (Hp, 3*Hp) matmul instead of Tc serial M=1 matmuls.
    gi0 = jnp.dot(x_ref[...].astype(jnp.bfloat16), w_ih,
                  preferred_element_type=jnp.float32) + b_ih   # (Tc, 3*Hp) f32

    def gru_cell(gi, h):
        # Elementwise/gate math stays f32 (v5e VPU/EUP have no bf16 path);
        # only MXU operands are bf16.
        gh = jnp.dot(h.astype(jnp.bfloat16), w_hh,
                     preferred_element_type=jnp.float32) + b_hh
        r = jax.nn.sigmoid(gi[:, 0:Hp] + gh[:, 0:Hp])
        z = jax.nn.sigmoid(gi[:, Hp:2 * Hp] + gh[:, Hp:2 * Hp])
        n = jnp.tanh(gi[:, 2 * Hp:3 * Hp] + r * gh[:, 2 * Hp:3 * Hp])
        return (1.0 - z) * n + z * h          # PyTorch GRU update

    def extra_layer(_, hh):
        gi_l = jnp.dot(hh.astype(jnp.bfloat16), w_ih,
                       preferred_element_type=jnp.float32) + b_ih
        return gru_cell(gi_l, hh)

    # Serial per-token recurrence, fully unrolled (static slices => dense
    # row loads/stores; block_tokens bounds code size).
    h = h_ref[...]
    for i in range(block_tokens):
        h = gru_cell(gi0[i:i + 1, :], h)
        if n_layers > 1:
            h = jax.lax.fori_loop(0, n_layers - 1, extra_layer, h, unroll=True)
        out_ref[i:i + 1, :] = h               # dense row store into (Tc, Hp) block

    h_ref[...] = h                            # carry hidden to the next chunk


def prepare_params(params, *, weight_dtype=jnp.bfloat16):
    """One-time glue: pad/transpose weights into the lane-dense kernel layout."""
    emb = params["embedding"].astype(jnp.float32)        # (V, H)
    V, H = emb.shape
    Hp = pl.cdiv(H, 128) * 128                           # pad H to 128 lanes

    emb_p = jnp.zeros((V, Hp), jnp.float32).at[:, :H].set(emb).astype(weight_dtype)

    def pad_w(w):  # (3H, H) PyTorch layout -> (Hp, 3*Hp), each gate 128-aligned
        wp = jnp.zeros((Hp, 3 * Hp), jnp.float32)
        for g in range(3):
            wp = wp.at[:H, g * Hp:g * Hp + H].set(
                w[g * H:(g + 1) * H, :].T.astype(jnp.float32))
        return wp.astype(weight_dtype)                   # bf16 MXU operand

    def pad_b(b):  # (3H,) -> (1, 3*Hp); biases stay f32 (VPU adds)
        bp = jnp.zeros((1, 3 * Hp), jnp.float32)
        for g in range(3):
            bp = bp.at[0, g * Hp:g * Hp + H].set(
                b[g * H:(g + 1) * H].astype(jnp.float32))
        return bp

    return {
        "emb_p": emb_p,
        "w_ih_p": pad_w(params["w_ih"]),
        "w_hh_p": pad_w(params["w_hh"]),
        "b_ih_p": pad_b(params["b_ih"]),
        "b_hh_p": pad_b(params["b_hh"]),
        "H": H, "Hp": Hp, "V": V,
    }


def encoder_rnn_forward_seq(tokens, hidden0, prep, *, n_layers=1,
                            block_tokens=16):
    """tokens: (T,) int32; hidden0: (1, 1, H).
    Returns (outputs (T, 1, H), final hidden (1, 1, H))."""
    H, Hp, V = prep["H"], prep["Hp"], prep["V"]
    T = int(tokens.shape[0])

    # Chunk size: multiple of 8 sublanes, no bigger than needed.
    Tc = max(8, min(_round_up(block_tokens, 8), _round_up(T, 8)))
    T_pad = pl.cdiv(T, Tc) * Tc
    num_chunks = T_pad // Tc

    # Bounds-safe gather index (JAX gather also clamps OOB; clip keeps it
    # explicit — note this silently remaps bad token ids to valid rows).
    tok = jnp.clip(tokens.astype(jnp.int32), 0, V - 1)
    tok_pad = jnp.zeros((T_pad,), jnp.int32).at[:T].set(tok)

    # Pre-gather embedded tokens with ONE XLA gather (outside the kernel),
    # handed to the kernel as a normal tiled (Tc, Hp) input per chunk.
    x_emb = prep["emb_p"][tok_pad].astype(jnp.float32)     # (T_pad, Hp)

    h0 = jnp.zeros((1, Hp), jnp.float32).at[:, :H].set(
        hidden0.reshape(1, H).astype(jnp.float32))

    kernel = functools.partial(encoder_gru_chunk_kernel,
                               hidden_pad=Hp, n_layers=n_layers,
                               block_tokens=Tc)

    grid_spec = pltpu.PrefetchScalarGridSpec(
        num_scalar_prefetch=0,
        grid=(num_chunks,),
        in_specs=[
            # pre-gathered embedded tokens, one dense chunk per grid step
            pl.BlockSpec((Tc, Hp), lambda c: (c, 0)),
            # weights/biases/h0: constant index_map => resident across the grid
            # TODO(synk): for Hp >= ~1536 on v7x (64 MiB VMEM), tile the 3*Hp
            # gate axis over an extra grid dim and/or use
            # pipeline_mode=pl.Buffered(1) on these constant specs.
            pl.BlockSpec((Hp, 3 * Hp), lambda c: (0, 0)),
            pl.BlockSpec((Hp, 3 * Hp), lambda c: (0, 0)),
            pl.BlockSpec((1, 3 * Hp), lambda c: (0, 0)),
            pl.BlockSpec((1, 3 * Hp), lambda c: (0, 0)),
            pl.BlockSpec((1, Hp), lambda c: (0, 0)),
        ],
        out_specs=pl.BlockSpec((Tc, Hp), lambda c: (c, 0)),
        scratch_shapes=[pltpu.VMEM((1, Hp), jnp.float32)],   # carried hidden state
    )

    outs = pl.pallas_call(
        kernel,
        out_shape=jax.ShapeDtypeStruct((T_pad, Hp), jnp.float32),
        grid_spec=grid_spec,
        compiler_params=pltpu.CompilerParams(
            # TODO(synk): with a batch of independent sequences, carry h as
            # (B, Hp) and add a leading "parallel" grid axis so v7x's second
            # TensorCore is used; the single recurrence axis must stay
            # "arbitrary" (sequential).
            dimension_semantics=("arbitrary",),
            vmem_limit_bytes=32 * 1024 * 1024,
        ),
    )(x_emb, prep["w_ih_p"], prep["w_hh_p"],
      prep["b_ih_p"], prep["b_hh_p"], h0)

    outputs = outs[:T, :H].reshape(T, 1, H)            # drop seq/lane padding
    hidden = outputs[T - 1].reshape(1, 1, H)           # final hidden == last output
    return outputs, hidden


def encoder_rnn_forward(token, hidden, prep, *, n_layers=1):
    """Single-token forward matching the PyTorch module signature."""
    outs, hid = encoder_rnn_forward_seq(token.reshape(1), hidden, prep,
                                        n_layers=n_layers)
    return outs.reshape(1, 1, -1), hid


def encoder_rnn_reference_seq(tokens, hidden0, params, *, n_layers=1,
                              mxu_dtype=None):
    """Pure-JAX reference matching torch.nn.GRU semantics (gate order r, z, n).
    If mxu_dtype is set, weights/embeddings and matmul operands are rounded
    through that dtype (mirroring the kernel's bf16 MXU inputs with f32
    accumulation); otherwise pure f32 module semantics."""
    emb = params["embedding"].astype(jnp.float32)
    w_ih = params["w_ih"].astype(jnp.float32)
    w_hh = params["w_hh"].astype(jnp.float32)
    b_ih = params["b_ih"].astype(jnp.float32)
    b_hh = params["b_hh"].astype(jnp.float32)
    if mxu_dtype is not None:
        cast = lambda a: a.astype(mxu_dtype).astype(jnp.float32)
        emb, w_ih, w_hh = cast(emb), cast(w_ih), cast(w_hh)
    else:
        cast = lambda a: a

    H = emb.shape[1]
    h = hidden0.reshape(1, H).astype(jnp.float32)
    outs = []
    for t in range(tokens.shape[0]):
        x = emb[tokens[t]].reshape(1, H)
        for _ in range(n_layers):
            gi = cast(x) @ w_ih.T + b_ih
            gh = cast(h) @ w_hh.T + b_hh
            r = jax.nn.sigmoid(gi[:, 0:H] + gh[:, 0:H])
            z = jax.nn.sigmoid(gi[:, H:2 * H] + gh[:, H:2 * H])
            n = jnp.tanh(gi[:, 2 * H:3 * H] + r * gh[:, 2 * H:3 * H])
            h = (1.0 - z) * n + z * h
            x = h
        outs.append(x)
    return jnp.stack(outs), h.reshape(1, 1, H)


def init_params(key, input_size, hidden_size):
    """Deterministic synthetic parameters (shapes match nn.Embedding + nn.GRU)."""
    k_emb, k_wih, k_whh, k_bih, k_bhh = jax.random.split(key, 5)
    bound = 1.0 / jnp.sqrt(jnp.float32(hidden_size))
    return {
        "embedding": jax.random.normal(k_emb, (input_size, hidden_size),
                                       jnp.float32),
        "w_ih": jax.random.uniform(k_wih, (3 * hidden_size, hidden_size),
                                   jnp.float32, -bound, bound),
        "w_hh": jax.random.uniform(k_whh, (3 * hidden_size, hidden_size),
                                   jnp.float32, -bound, bound),
        "b_ih": jax.random.uniform(k_bih, (3 * hidden_size,),
                                   jnp.float32, -bound, bound),
        "b_hh": jax.random.uniform(k_bhh, (3 * hidden_size,),
                                   jnp.float32, -bound, bound),
    }


if __name__ == "__main__":
    input_size = 20       # vocab size
    hidden_size = 32
    n_layers = 2          # exercises the in-kernel layer loop
    seq_len = 8           # one full (Tc=8) chunk

    key = jax.random.PRNGKey(0)
    k_params, k_tok, k_hid = jax.random.split(key, 3)

    params = init_params(k_params, input_size, hidden_size)
    prep = prepare_params(params)     # one-time layout prep (off the hot path)

    tokens = jax.random.randint(k_tok, (seq_len,), 0, input_size, jnp.int32)
    hidden0 = jax.random.normal(k_hid, (1, 1, hidden_size), jnp.float32)

    # Fused whole-sequence chunked kernel.
    outs, hid = encoder_rnn_forward_seq(tokens, hidden0, prep,
                                        n_layers=n_layers)
    outs = jax.block_until_ready(outs)
    hid = jax.block_until_ready(hid)
    assert outs.shape == (seq_len, 1, hidden_size)
    assert hid.shape == (1, 1, hidden_size)

    # Tight check: reference with the SAME bf16 MXU-operand rounding as the kernel.
    outs_q, hid_q = encoder_rnn_reference_seq(tokens, hidden0, params,
                                              n_layers=n_layers,
                                              mxu_dtype=jnp.bfloat16)
    assert jnp.allclose(outs, outs_q, atol=1e-4, rtol=1e-4)
    assert jnp.allclose(hid, hid_q, atol=1e-4, rtol=1e-4)

    # Loose check vs pure-f32 module semantics (bf16 weights => small drift).
    outs_f, hid_f = encoder_rnn_reference_seq(tokens, hidden0, params,
                                              n_layers=n_layers)
    assert jnp.allclose(outs, outs_f, atol=5e-2, rtol=5e-2)
    assert jnp.allclose(hid, hid_f, atol=5e-2, rtol=5e-2)

    # Single-token call matching the PyTorch module forward signature.
    out1, hid1 = encoder_rnn_forward(tokens[:1], hidden0, prep,
                                     n_layers=n_layers)
    out1 = jax.block_until_ready(out1)
    assert out1.shape == (1, 1, hidden_size) and hid1.shape == (1, 1, hidden_size)
    assert jnp.allclose(out1, outs_q[0].reshape(1, 1, hidden_size),
                        atol=1e-4, rtol=1e-4)

    print("KERNEL_OK")
</pallas_src>

<mosaic_0001>
module attributes {stable_mosaic.version = 11 : i64} {
  func.func @encoder_gru_chunk_kernel(%arg0: i32, %arg1: memref<8x128xf32, #tpu.memory_space<vmem>>, %arg2: memref<128x384xbf16, #tpu.memory_space<vmem>>, %arg3: memref<128x384xbf16, #tpu.memory_space<vmem>>, %arg4: memref<1x384xf32, #tpu.memory_space<vmem>>, %arg5: memref<1x384xf32, #tpu.memory_space<vmem>>, %arg6: memref<1x128xf32, #tpu.memory_space<vmem>>, %arg7: memref<8x128xf32, #tpu.memory_space<vmem>>, %arg8: memref<1x128xf32, #tpu.memory_space<vmem>>) attributes {dimension_semantics = [#tpu.dimension_semantics<arbitrary>], iteration_bounds = array<i64: 1>, scalar_prefetch = 0 : i64, scratch_operands = 1 : i64, tpu.core_type = #tpu.core_type<tc>, window_params = [{transform_indices = @transform_0, window_bounds = array<i64: 8, 128>}, {pipeline_mode = #tpu.pipeline_mode<synchronous>, transform_indices = @transform_1, window_bounds = array<i64: 128, 384>}, {pipeline_mode = #tpu.pipeline_mode<synchronous>, transform_indices = @transform_2, window_bounds = array<i64: 128, 384>}, {pipeline_mode = #tpu.pipeline_mode<synchronous>, transform_indices = @transform_3, window_bounds = array<i64: 1, 384>}, {pipeline_mode = #tpu.pipeline_mode<synchronous>, transform_indices = @transform_4, window_bounds = array<i64: 1, 384>}, {pipeline_mode = #tpu.pipeline_mode<synchronous>, transform_indices = @transform_5, window_bounds = array<i64: 1, 128>}, {transform_indices = @transform_6, window_bounds = array<i64: 8, 128>}]} {
    %c0_i32 = arith.constant 0 : i32
    %0 = arith.cmpi eq, %arg0, %c0_i32 : i32
    %1 = arith.extui %0 : i1 to i32
    %c0_i32_0 = arith.constant 0 : i32
    %2 = arith.cmpi ne, %1, %c0_i32_0 : i32
    scf.if %2 {
      %c0_103 = arith.constant 0 : index
      %c0_104 = arith.constant 0 : index
      %518 = vector.load %arg6[%c0_103, %c0_104] : memref<1x128xf32, #tpu.memory_space<vmem>>, vector<1x128xf32>
      %c0_105 = arith.constant 0 : index
      %c0_106 = arith.constant 0 : index
      %519 = vector.load %arg8[%c0_105, %c0_106] : memref<1x128xf32, #tpu.memory_space<vmem>>, vector<1x128xf32>
      tpu.vector_store %arg8[%c0_105, %c0_106], %518 {strides = array<i32>} : memref<1x128xf32, #tpu.memory_space<vmem>>, vector<1x128xf32>,
    } else {
    }
    %c0 = arith.constant 0 : index
    %c0_1 = arith.constant 0 : index
    %3 = vector.load %arg2[%c0, %c0_1] : memref<128x384xbf16, #tpu.memory_space<vmem>>, vector<128x384xbf16>
    %c0_2 = arith.constant 0 : index
    %c0_3 = arith.constant 0 : index
    %4 = vector.load %arg3[%c0_2, %c0_3] : memref<128x384xbf16, #tpu.memory_space<vmem>>, vector<128x384xbf16>
    %c0_4 = arith.constant 0 : index
    %c0_5 = arith.constant 0 : index
    %5 = vector.load %arg4[%c0_4, %c0_5] : memref<1x384xf32, #tpu.memory_space<vmem>>, vector<1x384xf32>
    %c0_6 = arith.constant 0 : index
    %c0_7 = arith.constant 0 : index
    %6 = vector.load %arg5[%c0_6, %c0_7] : memref<1x384xf32, #tpu.memory_space<vmem>>, vector<1x384xf32>
    %c0_8 = arith.constant 0 : index
    %c0_9 = arith.constant 0 : index
    %7 = vector.load %arg1[%c0_8, %c0_9] : memref<8x128xf32, #tpu.memory_space<vmem>>, vector<8x128xf32>
    %8 = arith.truncf %7 : vector<8x128xf32> to vector<8x128xbf16>
    %cst = arith.constant dense<0.000000e+00> : vector<8x384xf32>
    %9 = tpu.matmul %8, %3, %cst {dimension_numbers = #tpu.dot_dimension_numbers<[1], [0], [0], [1], [0, 0, 1, 1], [], []>} : vector<8x128xbf16>, vector<128x384xbf16>, vector<8x384xf32> -> vector<8x384xf32>
    %10 = vector.broadcast %5 : vector<1x384xf32> to vector<8x384xf32>
    %11 = arith.addf %9, %10 : vector<8x384xf32>
    %c0_10 = arith.constant 0 : index
    %c0_11 = arith.constant 0 : index
    %12 = vector.load %arg8[%c0_10, %c0_11] : memref<1x128xf32, #tpu.memory_space<vmem>>, vector<1x128xf32>
    %13 = vector.extract_strided_slice %11 {offsets = [0, 0], sizes = [1, 384], strides = [1, 1]} : vector<8x384xf32> to vector<1x384xf32>
    %14 = arith.truncf %12 : vector<1x128xf32> to vector<1x128xbf16>
    %cst_12 = arith.constant dense<0.000000e+00> : vector<1x384xf32>
    %15 = tpu.matmul %14, %4, %cst_12 {dimension_numbers = #tpu.dot_dimension_numbers<[1], [0], [0], [1], [0, 0, 1, 1], [], []>} : vector<1x128xbf16>, vector<128x384xbf16>, vector<1x384xf32> -> vector<1x384xf32>
    %16 = arith.addf %15, %6 : vector<1x384xf32>
    %17 = vector.extract_strided_slice %13 {offsets = [0, 0], sizes = [1, 128], strides = [1, 1]} : vector<1x384xf32> to vector<1x128xf32>
    %18 = vector.extract_strided_slice %16 {offsets = [0, 0], sizes = [1, 128], strides = [1, 1]} : vector<1x384xf32> to vector<1x128xf32>
    %19 = arith.addf %17, %18 : vector<1x128xf32>
    %20 = arith.negf %19 : vector<1x128xf32>
    %21 = math.exp %20 : vector<1x128xf32>
    %cst_13 = arith.constant 1.000000e+00 : f32
    %22 = vector.broadcast %cst_13 : f32 to vector<1x128xf32>
    %23 = arith.addf %22, %21 : vector<1x128xf32>
    %24 = arith.divf %22, %23 : vector<1x128xf32>
    %25 = vector.extract_strided_slice %13 {offsets = [0, 128], sizes = [1, 128], strides = [1, 1]} : vector<1x384xf32> to vector<1x128xf32>
    %26 = vector.extract_strided_slice %16 {offsets = [0, 128], sizes = [1, 128], strides = [1, 1]} : vector<1x384xf32> to vector<1x128xf32>
    %27 = arith.addf %25, %26 : vector<1x128xf32>
    %28 = arith.negf %27 : vector<1x128xf32>
    %29 = math.exp %28 : vector<1x128xf32>
    %cst_14 = arith.constant 1.000000e+00 : f32
    %30 = vector.broadcast %cst_14 : f32 to vector<1x128xf32>
    %31 = arith.addf %30, %29 : vector<1x128xf32>
    %32 = arith.divf %30, %31 : vector<1x128xf32>
    %33 = vector.extract_strided_slice %13 {offsets = [0, 256], sizes = [1, 128], strides = [1, 1]} : vector<1x384xf32> to vector<1x128xf32>
    %34 = vector.extract_strided_slice %16 {offsets = [0, 256], sizes = [1, 128], strides = [1, 1]} : vector<1x384xf32> to vector<1x128xf32>
    %35 = arith.mulf %24, %34 : vector<1x128xf32>
    %36 = arith.addf %33, %35 : vector<1x128xf32>
    %37 = math.tanh %36 : vector<1x128xf32>
    %cst_15 = arith.constant 1.000000e+00 : f32
    %38 = vector.broadcast %cst_15 : f32 to vector<1x128xf32>
    %39 = arith.subf %38, %32 : vector<1x128xf32>
    %40 = arith.mulf %39, %37 : vector<1x128xf32>
    %41 = arith.mulf %32, %12 : vector<1x128xf32>
    %42 = arith.addf %40, %41 : vector<1x128xf32>
    %c0_i32_16 = arith.constant 0 : i32
    %43 = arith.truncf %42 : vector<1x128xf32> to vector<1x128xbf16>
    %cst_17 = arith.constant dense<0.000000e+00> : vector<1x384xf32>
    %44 = tpu.matmul %43, %3, %cst_17 {dimension_numbers = #tpu.dot_dimension_numbers<[1], [0], [0], [1], [0, 0, 1, 1], [], []>} : vector<1x128xbf16>, vector<128x384xbf16>, vector<1x384xf32> -> vector<1x384xf32>
    %45 = arith.addf %44, %5 : vector<1x384xf32>
    %46 = arith.truncf %42 : vector<1x128xf32> to vector<1x128xbf16>
    %cst_18 = arith.constant dense<0.000000e+00> : vector<1x384xf32>
    %47 = tpu.matmul %46, %4, %cst_18 {dimension_numbers = #tpu.dot_dimension_numbers<[1], [0], [0], [1], [0, 0, 1, 1], [], []>} : vector<1x128xbf16>, vector<128x384xbf16>, vector<1x384xf32> -> vector<1x384xf32>
    %48 = arith.addf %47, %6 : vector<1x384xf32>
    %49 = vector.extract_strided_slice %45 {offsets = [0, 0], sizes = [1, 128], strides = [1, 1]} : vector<1x384xf32> to vector<1x128xf32>
    %50 = vector.extract_strided_slice %48 {offsets = [0, 0], sizes = [1, 128], strides = [1, 1]} : vector<1x384xf32> to vector<1x128xf32>
    %51 = arith.addf %49, %50 : vector<1x128xf32>
    %52 = arith.negf %51 : vector<1x128xf32>
    %53 = math.exp %52 : vector<1x128xf32>
    %cst_19 = arith.constant 1.000000e+00 : f32
    %54 = vector.broadcast %cst_19 : f32 to vector<1x128xf32>
    %55 = arith.addf %54, %53 : vector<1x128xf32>
    %56 = arith.divf %54, %55 : vector<1x128xf32>
    %57 = vector.extract_strided_slice %45 {offsets = [0, 128], sizes = [1, 128], strides = [1, 1]} : vector<1x384xf32> to vector<1x128xf32>
    %58 = vector.extract_strided_slice %48 {offsets = [0, 128], sizes = [1, 128], strides = [1, 1]} : vector<1x384xf32> to vector<1x128xf32>
    %59 = arith.addf %57, %58 : vector<1x128xf32>
    %60 = arith.negf %59 : vector<1x128xf32>
    %61 = math.exp %60 : vector<1x128xf32>
    %cst_20 = arith.constant 1.000000e+00 : f32
    %62 = vector.broadcast %cst_20 : f32 to vector<1x128xf32>
    %63 = arith.addf %62, %61 : vector<1x128xf32>
    %64 = arith.divf %62, %63 : vector<1x128xf32>
    %65 = vector.extract_strided_slice %45 {offsets = [0, 256], sizes = [1, 128], strides = [1, 1]} : vector<1x384xf32> to vector<1x128xf32>
    %66 = vector.extract_strided_slice %48 {offsets = [0, 256], sizes = [1, 128], strides = [1, 1]} : vector<1x384xf32> to vector<1x128xf32>
    %67 = arith.mulf %56, %66 : vector<1x128xf32>
    %68 = arith.addf %65, %67 : vector<1x128xf32>
    %69 = math.tanh %68 : vector<1x128xf32>
    %cst_21 = arith.constant 1.000000e+00 : f32
    %70 = vector.broadcast %cst_21 : f32 to vector<1x128xf32>
    %71 = arith.subf %70, %64 : vector<1x128xf32>
    %72 = arith.mulf %71, %69 : vector<1x128xf32>
    %73 = arith.mulf %64, %42 : vector<1x128xf32>
    %74 = arith.addf %72, %73 : vector<1x128xf32>
    %c0_22 = arith.constant 0 : index
    %c0_23 = arith.constant 0 : index
    %75 = vector.load %arg7[%c0_22, %c0_23] : memref<8x128xf32, #tpu.memory_space<vmem>>, vector<1x128xf32>
    tpu.vector_store %arg7[%c0_22, %c0_23], %74 {strides = array<i32>} : memref<8x128xf32, #tpu.memory_space<vmem>>, vector<1x128xf32>,
    %76 = vector.extract_strided_slice %11 {offsets = [1, 0], sizes = [1, 384], strides = [1, 1]} : vector<8x384xf32> to vector<1x384xf32>
    %77 = arith.truncf %74 : vector<1x128xf32> to vector<1x128xbf16>
    %cst_24 = arith.constant dense<0.000000e+00> : vector<1x384xf32>
    %78 = tpu.matmul %77, %4, %cst_24 {dimension_numbers = #tpu.dot_dimension_numbers<[1], [0], [0], [1], [0, 0, 1, 1], [], []>} : vector<1x128xbf16>, vector<128x384xbf16>, vector<1x384xf32> -> vector<1x384xf32>
    %79 = arith.addf %78, %6 : vector<1x384xf32>
    %80 = vector.extract_strided_slice %76 {offsets = [0, 0], sizes = [1, 128], strides = [1, 1]} : vector<1x384xf32> to vector<1x128xf32>
    %81 = vector.extract_strided_slice %79 {offsets = [0, 0], sizes = [1, 128], strides = [1, 1]} : vector<1x384xf32> to vector<1x128xf32>
    %82 = arith.addf %80, %81 : vector<1x128xf32>
    %83 = arith.negf %82 : vector<1x128xf32>
    %84 = math.exp %83 : vector<1x128xf32>
    %cst_25 = arith.constant 1.000000e+00 : f32
    %85 = vector.broadcast %cst_25 : f32 to vector<1x128xf32>
    %86 = arith.addf %85, %84 : vector<1x128xf32>
    %87 = arith.divf %85, %86 : vector<1x128xf32>
    %88 = vector.extract_strided_slice %76 {offsets = [0, 128], sizes = [1, 128], strides = [1, 1]} : vector<1x384xf32> to vector<1x128xf32>
    %89 = vector.extract_strided_slice %79 {offsets = [0, 128], sizes = [1, 128], strides = [1, 1]} : vector<1x384xf32> to vector<1x128xf32>
    %90 = arith.addf %88, %89 : vector<1x128xf32>
    %91 = arith.negf %90 : vector<1x128xf32>
    %92 = math.exp %91 : vector<1x128xf32>
    %cst_26 = arith.constant 1.000000e+00 : f32
    %93 = vector.broadcast %cst_26 : f32 to vector<1x128xf32>
    %94 = arith.addf %93, %92 : vector<1x128xf32>
    %95 = arith.divf %93, %94 : vector<1x128xf32>
    %96 = vector.extract_strided_slice %76 {offsets = [0, 256], sizes = [1, 128], strides = [1, 1]} : vector<1x384xf32> to vector<1x128xf32>
    %97 = vector.extract_strided_slice %79 {offsets = [0, 256], sizes = [1, 128], strides = [1, 1]} : vector<1x384xf32> to vector<1x128xf32>
    %98 = arith.mulf %87, %97 : vector<1x128xf32>
    %99 = arith.addf %96, %98 : vector<1x128xf32>
    %100 = math.tanh %99 : vector<1x128xf32>
    %cst_27 = arith.constant 1.000000e+00 : f32
    %101 = vector.broadcast %cst_27 : f32 to vector<1x128xf32>
    %102 = arith.subf %101, %95 : vector<1x128xf32>
    %103 = arith.mulf %102, %100 : vector<1x128xf32>
    %104 = arith.mulf %95, %74 : vector<1x128xf32>
    %105 = arith.addf %103, %104 : vector<1x128xf32>
    %c0_i32_28 = arith.constant 0 : i32
    %106 = arith.truncf %105 : vector<1x128xf32> to vector<1x128xbf16>
    %cst_29 = arith.constant dense<0.000000e+00> : vector<1x384xf32>
    %107 = tpu.matmul %106, %3, %cst_29 {dimension_numbers = #tpu.dot_dimension_numbers<[1], [0], [0], [1], [0, 0, 1, 1], [], []>} : vector<1x128xbf16>, vector<128x384xbf16>, vector<1x384xf32> -> vector<1x384xf32>
    %108 = arith.addf %107, %5 : vector<1x384xf32>
    %109 = arith.truncf %105 : vector<1x128xf32> to vector<1x128xbf16>
    %cst_30 = arith.constant dense<0.000000e+00> : vector<1x384xf32>
    %110 = tpu.matmul %109, %4, %cst_30 {dimension_numbers = #tpu.dot_dimension_numbers<[1], [0], [0], [1], [0, 0, 1, 1], [], []>} : vector<1x128xbf16>, vector<128x384xbf16>, vector<1x384xf32> -> vector<1x384xf32>
    %111 = arith.addf %110, %6 : vector<1x384xf32>
    %112 = vector.extract_strided_slice %108 {offsets = [0, 0], sizes = [1, 128], strides = [1, 1]} : vector<1x384xf32> to vector<1x128xf32>
    %113 = vector.extract_strided_slice %111 {offsets = [0, 0], sizes = [1, 128], strides = [1, 1]} : vector<1x384xf32> to vector<1x128xf32>
    %114 = arith.addf %112, %113 : vector<1x128xf32>
    %115 = arith.negf %114 : vector<1x128xf32>
    %116 = math.exp %115 : vector<1x128xf32>
    %cst_31 = arith.constant 1.000000e+00 : f32
    %117 = vector.broadcast %cst_31 : f32 to vector<1x128xf32>
    %118 = arith.addf %117, %116 : vector<1x128xf32>
    %119 = arith.divf %117, %118 : vector<1x128xf32>
    %120 = vector.extract_strided_slice %108 {offsets = [0, 128], sizes = [1, 128], strides = [1, 1]} : vector<1x384xf32> to vector<1x128xf32>
    %121 = vector.extract_strided_slice %111 {offsets = [0, 128], sizes = [1, 128], strides = [1, 1]} : vector<1x384xf32> to vector<1x128xf32>
    %122 = arith.addf %120, %121 : vector<1x128xf32>
    %123 = arith.negf %122 : vector<1x128xf32>
    %124 = math.exp %123 : vector<1x128xf32>
    %cst_32 = arith.constant 1.000000e+00 : f32
    %125 = vector.broadcast %cst_32 : f32 to vector<1x128xf32>
    %126 = arith.addf %125, %124 : vector<1x128xf32>
    %127 = arith.divf %125, %126 : vector<1x128xf32>
    %128 = vector.extract_strided_slice %108 {offsets = [0, 256], sizes = [1, 128], strides = [1, 1]} : vector<1x384xf32> to vector<1x128xf32>
    %129 = vector.extract_strided_slice %111 {offsets = [0, 256], sizes = [1, 128], strides = [1, 1]} : vector<1x384xf32> to vector<1x128xf32>
    %130 = arith.mulf %119, %129 : vector<1x128xf32>
    %131 = arith.addf %128, %130 : vector<1x128xf32>
    %132 = math.tanh %131 : vector<1x128xf32>
    %cst_33 = arith.constant 1.000000e+00 : f32
    %133 = vector.broadcast %cst_33 : f32 to vector<1x128xf32>
    %134 = arith.subf %133, %127 : vector<1x128xf32>
    %135 = arith.mulf %134, %132 : vector<1x128xf32>
    %136 = arith.mulf %127, %105 : vector<1x128xf32>
    %137 = arith.addf %135, %136 : vector<1x128xf32>
    %c1 = arith.constant 1 : index
    %c0_34 = arith.constant 0 : index
    %138 = vector.load %arg7[%c1, %c0_34] : memref<8x128xf32, #tpu.memory_space<vmem>>, vector<1x128xf32>
    tpu.vector_store %arg7[%c1, %c0_34], %137 {strides = array<i32>} : memref<8x128xf32, #tpu.memory_space<vmem>>, vector<1x128xf32>,
    %139 = vector.extract_strided_slice %11 {offsets = [2, 0], sizes = [1, 384], strides = [1, 1]} : vector<8x384xf32> to vector<1x384xf32>
    %140 = arith.truncf %137 : vector<1x128xf32> to vector<1x128xbf16>
    %cst_35 = arith.constant dense<0.000000e+00> : vector<1x384xf32>
    %141 = tpu.matmul %140, %4, %cst_35 {dimension_numbers = #tpu.dot_dimension_numbers<[1], [0], [0], [1], [0, 0, 1, 1], [], []>} : vector<1x128xbf16>, vector<128x384xbf16>, vector<1x384xf32> -> vector<1x384xf32>
    %142 = arith.addf %141, %6 : vector<1x384xf32>
    %143 = vector.extract_strided_slice %139 {offsets = [0, 0], sizes = [1, 128], strides = [1, 1]} : vector<1x384xf32> to vector<1x128xf32>
    %144 = vector.extract_strided_slice %142 {offsets = [0, 0], sizes = [1, 128], strides = [1, 1]} : vector<1x384xf32> to vector<1x128xf32>
    %145 = arith.addf %143, %144 : vector<1x128xf32>
    %146 = arith.negf %145 : vector<1x128xf32>
    %147 = math.exp %146 : vector<1x128xf32>
    %cst_36 = arith.constant 1.000000e+00 : f32
    %148 = vector.broadcast %cst_36 : f32 to vector<1x128xf32>
    %149 = arith.addf %148, %147 : vector<1x128xf32>
    %150 = arith.divf %148, %149 : vector<1x128xf32>
    %151 = vector.extract_strided_slice %139 {offsets = [0, 128], sizes = [1, 128], strides = [1, 1]} : vector<1x384xf32> to vector<1x128xf32>
    %152 = vector.extract_strided_slice %142 {offsets = [0, 128], sizes = [1, 128], strides = [1, 1]} : vector<1x384xf32> to vector<1x128xf32>
    %153 = arith.addf %151, %152 : vector<1x128xf32>
    %154 = arith.negf %153 : vector<1x128xf32>
    %155 = math.exp %154 : vector<1x128xf32>
    %cst_37 = arith.constant 1.000000e+00 : f32
    %156 = vector.broadcast %cst_37 : f32 to vector<1x128xf32>
    %157 = arith.addf %156, %155 : vector<1x128xf32>
    %158 = arith.divf %156, %157 : vector<1x128xf32>
    %159 = vector.extract_strided_slice %139 {offsets = [0, 256], sizes = [1, 128], strides = [1, 1]} : vector<1x384xf32> to vector<1x128xf32>
    %160 = vector.extract_strided_slice %142 {offsets = [0, 256], sizes = [1, 128], strides = [1, 1]} : vector<1x384xf32> to vector<1x128xf32>
    %161 = arith.mulf %150, %160 : vector<1x128xf32>
    %162 = arith.addf %159, %161 : vector<1x128xf32>
    %163 = math.tanh %162 : vector<1x128xf32>
    %cst_38 = arith.constant 1.000000e+00 : f32
    %164 = vector.broadcast %cst_38 : f32 to vector<1x128xf32>
    %165 = arith.subf %164, %158 : vector<1x128xf32>
    %166 = arith.mulf %165, %163 : vector<1x128xf32>
    %167 = arith.mulf %158, %137 : vector<1x128xf32>
    %168 = arith.addf %166, %167 : vector<1x128xf32>
    %c0_i32_39 = arith.constant 0 : i32
    %169 = arith.truncf %168 : vector<1x128xf32> to vector<1x128xbf16>
    %cst_40 = arith.constant dense<0.000000e+00> : vector<1x384xf32>
    %170 = tpu.matmul %169, %3, %cst_40 {dimension_numbers = #tpu.dot_dimension_numbers<[1], [0], [0], [1], [0, 0, 1, 1], [], []>} : vector<1x128xbf16>, vector<128x384xbf16>, vector<1x384xf32> -> vector<1x384xf32>
    %171 = arith.addf %170, %5 : vector<1x384xf32>
    %172 = arith.truncf %168 : vector<1x128xf32> to vector<1x128xbf16>
    %cst_41 = arith.constant dense<0.000000e+00> : vector<1x384xf32>
    %173 = tpu.matmul %172, %4, %cst_41 {dimension_numbers = #tpu.dot_dimension_numbers<[1], [0], [0], [1], [0, 0, 1, 1], [], []>} : vector<1x128xbf16>, vector<128x384xbf16>, vector<1x384xf32> -> vector<1x384xf32>
    %174 = arith.addf %173, %6 : vector<1x384xf32>
    %175 = vector.extract_strided_slice %171 {offsets = [0, 0], sizes = [1, 128], strides = [1, 1]} : vector<1x384xf32> to vector<1x128xf32>
    %176 = vector.extract_strided_slice %174 {offsets = [0, 0], sizes = [1, 128], strides = [1, 1]} : vector<1x384xf32> to vector<1x128xf32>
    %177 = arith.addf %175, %176 : vector<1x128xf32>
    %178 = arith.negf %177 : vector<1x128xf32>
    %179 = math.exp %178 : vector<1x128xf32>
    %cst_42 = arith.constant 1.000000e+00 : f32
    %180 = vector.broadcast %cst_42 : f32 to vector<1x128xf32>
    %181 = arith.addf %180, %179 : vector<1x128xf32>
    %182 = arith.divf %180, %181 : vector<1x128xf32>
    %183 = vector.extract_strided_slice %171 {offsets = [0, 128], sizes = [1, 128], strides = [1, 1]} : vector<1x384xf32> to vector<1x128xf32>
    %184 = vector.extract_strided_slice %174 {offsets = [0, 128], sizes = [1, 128], strides = [1, 1]} : vector<1x384xf32> to vector<1x128xf32>
    %185 = arith.addf %183, %184 : vector<1x128xf32>
    %186 = arith.negf %185 : vector<1x128xf32>
    %187 = math.exp %186 : vector<1x128xf32>
    %cst_43 = arith.constant 1.000000e+00 : f32
    %188 = vector.broadcast %cst_43 : f32 to vector<1x128xf32>
    %189 = arith.addf %188, %187 : vector<1x128xf32>
    %190 = arith.divf %188, %189 : vector<1x128xf32>
    %191 = vector.extract_strided_slice %171 {offsets = [0, 256], sizes = [1, 128], strides = [1, 1]} : vector<1x384xf32> to vector<1x128xf32>
    %192 = vector.extract_strided_slice %174 {offsets = [0, 256], sizes = [1, 128], strides = [1, 1]} : vector<1x384xf32> to vector<1x128xf32>
    %193 = arith.mulf %182, %192 : vector<1x128xf32>
    %194 = arith.addf %191, %193 : vector<1x128xf32>
    %195 = math.tanh %194 : vector<1x128xf32>
    %cst_44 = arith.constant 1.000000e+00 : f32
    %196 = vector.broadcast %cst_44 : f32 to vector<1x128xf32>
    %197 = arith.subf %196, %190 : vector<1x128xf32>
    %198 = arith.mulf %197, %195 : vector<1x128xf32>
    %199 = arith.mulf %190, %168 : vector<1x128xf32>
    %200 = arith.addf %198, %199 : vector<1x128xf32>
    %c2 = arith.constant 2 : index
    %c0_45 = arith.constant 0 : index
    %201 = vector.load %arg7[%c2, %c0_45] : memref<8x128xf32, #tpu.memory_space<vmem>>, vector<1x128xf32>
    tpu.vector_store %arg7[%c2, %c0_45], %200 {strides = array<i32>} : memref<8x128xf32, #tpu.memory_space<vmem>>, vector<1x128xf32>,
    %202 = vector.extract_strided_slice %11 {offsets = [3, 0], sizes = [1, 384], strides = [1, 1]} : vector<8x384xf32> to vector<1x384xf32>
    %203 = arith.truncf %200 : vector<1x128xf32> to vector<1x128xbf16>
    %cst_46 = arith.constant dense<0.000000e+00> : vector<1x384xf32>
    %204 = tpu.matmul %203, %4, %cst_46 {dimension_numbers = #tpu.dot_dimension_numbers<[1], [0], [0], [1], [0, 0, 1, 1], [], []>} : vector<1x128xbf16>, vector<128x384xbf16>, vector<1x384xf32> -> vector<1x384xf32>
    %205 = arith.addf %204, %6 : vector<1x384xf32>
    %206 = vector.extract_strided_slice %202 {offsets = [0, 0], sizes = [1, 128], strides = [1, 1]} : vector<1x384xf32> to vector<1x128xf32>
    %207 = vector.extract_strided_slice %205 {offsets = [0, 0], sizes = [1, 128], strides = [1, 1]} : vector<1x384xf32> to vector<1x128xf32>
    %208 = arith.addf %206, %207 : vector<1x128xf32>
    %209 = arith.negf %208 : vector<1x128xf32>
    %210 = math.exp %209 : vector<1x128xf32>
    %cst_47 = arith.constant 1.000000e+00 : f32
    %211 = vector.broadcast %cst_47 : f32 to vector<1x128xf32>
    %212 = arith.addf %211, %210 : vector<1x128xf32>
    %213 = arith.divf %211, %212 : vector<1x128xf32>
    %214 = vector.extract_strided_slice %202 {offsets = [0, 128], sizes = [1, 128], strides = [1, 1]} : vector<1x384xf32> to vector<1x128xf32>
    %215 = vector.extract_strided_slice %205 {offsets = [0, 128], sizes = [1, 128], strides = [1, 1]} : vector<1x384xf32> to vector<1x128xf32>
    %216 = arith.addf %214, %215 : vector<1x128xf32>
    %217 = arith.negf %216 : vector<1x128xf32>
    %218 = math.exp %217 : vector<1x128xf32>
    %cst_48 = arith.constant 1.000000e+00 : f32
    %219 = vector.broadcast %cst_48 : f32 to vector<1x128xf32>
    %220 = arith.addf %219, %218 : vector<1x128xf32>
    %221 = arith.divf %219, %220 : vector<1x128xf32>
    %222 = vector.extract_strided_slice %202 {offsets = [0, 256], sizes = [1, 128], strides = [1, 1]} : vector<1x384xf32> to vector<1x128xf32>
    %223 = vector.extract_strided_slice %205 {offsets = [0, 256], sizes = [1, 128], strides = [1, 1]} : vector<1x384xf32> to vector<1x128xf32>
    %224 = arith.mulf %213, %223 : vector<1x128xf32>
    %225 = arith.addf %222, %224 : vector<1x128xf32>
    %226 = math.tanh %225 : vector<1x128xf32>
    %cst_49 = arith.constant 1.000000e+00 : f32
    %227 = vector.broadcast %cst_49 : f32 to vector<1x128xf32>
    %228 = arith.subf %227, %221 : vector<1x128xf32>
    %229 = arith.mulf %228, %226 : vector<1x128xf32>
    %230 = arith.mulf %221, %200 : vector<1x128xf32>
    %231 = arith.addf %229, %230 : vector<1x128xf32>
    %c0_i32_50 = arith.constant 0 : i32
    %232 = arith.truncf %231 : vector<1x128xf32> to vector<1x128xbf16>
    %cst_51 = arith.constant dense<0.000000e+00> : vector<1x384xf32>
    %233 = tpu.matmul %232, %3, %cst_51 {dimension_numbers = #tpu.dot_dimension_numbers<[1], [0], [0], [1], [0, 0, 1, 1], [], []>} : vector<1x128xbf16>, vector<128x384xbf16>, vector<1x384xf32> -> vector<1x384xf32>
    %234 = arith.addf %233, %5 : vector<1x384xf32>
    %235 = arith.truncf %231 : vector<1x128xf32> to vector<1x128xbf16>
    %cst_52 = arith.constant dense<0.000000e+00> : vector<1x384xf32>
    %236 = tpu.matmul %235, %4, %cst_52 {dimension_numbers = #tpu.dot_dimension_numbers<[1], [0], [0], [1], [0, 0, 1, 1], [], []>} : vector<1x128xbf16>, vector<128x384xbf16>, vector<1x384xf32> -> vector<1x384xf32>
    %237 = arith.addf %236, %6 : vector<1x384xf32>
    %238 = vector.extract_strided_slice %234 {offsets = [0, 0], sizes = [1, 128], strides = [1, 1]} : vector<1x384xf32> to vector<1x128xf32>
    %239 = vector.extract_strided_slice %237 {offsets = [0, 0], sizes = [1, 128], strides = [1, 1]} : vector<1x384xf32> to vector<1x128xf32>
    %240 = arith.addf %238, %239 : vector<1x128xf32>
    %241 = arith.negf %240 : vector<1x128xf32>
    %242 = math.exp %241 : vector<1x128xf32>
    %cst_53 = arith.constant 1.000000e+00 : f32
    %243 = vector.broadcast %cst_53 : f32 to vector<1x128xf32>
    %244 = arith.addf %243, %242 : vector<1x128xf32>
    %245 = arith.divf %243, %244 : vector<1x128xf32>
    %246 = vector.extract_strided_slice %234 {offsets = [0, 128], sizes = [1, 128], strides = [1, 1]} : vector<1x384xf32> to vector<1x128xf32>
    %247 = vector.extract_strided_slice %237 {offsets = [0, 128], sizes = [1, 128], strides = [1, 1]} : vector<1x384xf32> to vector<1x128xf32>
    %248 = arith.addf %246, %247 : vector<1x128xf32>
    %249 = arith.negf %248 : vector<1x128xf32>
    %250 = math.exp %249 : vector<1x128xf32>
    %cst_54 = arith.constant 1.000000e+00 : f32
    %251 = vector.broadcast %cst_54 : f32 to vector<1x128xf32>
    %252 = arith.addf %251, %250 : vector<1x128xf32>
    %253 = arith.divf %251, %252 : vector<1x128xf32>
    %254 = vector.extract_strided_slice %234 {offsets = [0, 256], sizes = [1, 128], strides = [1, 1]} : vector<1x384xf32> to vector<1x128xf32>
    %255 = vector.extract_strided_slice %237 {offsets = [0, 256], sizes = [1, 128], strides = [1, 1]} : vector<1x384xf32> to vector<1x128xf32>
    %256 = arith.mulf %245, %255 : vector<1x128xf32>
    %257 = arith.addf %254, %256 : vector<1x128xf32>
    %258 = math.tanh %257 : vector<1x128xf32>
    %cst_55 = arith.constant 1.000000e+00 : f32
    %259 = vector.broadcast %cst_55 : f32 to vector<1x128xf32>
    %260 = arith.subf %259, %253 : vector<1x128xf32>
    %261 = arith.mulf %260, %258 : vector<1x128xf32>
    %262 = arith.mulf %253, %231 : vector<1x128xf32>
    %263 = arith.addf %261, %262 : vector<1x128xf32>
    %c3 = arith.constant 3 : index
    %c0_56 = arith.constant 0 : index
    %264 = vector.load %arg7[%c3, %c0_56] : memref<8x128xf32, #tpu.memory_space<vmem>>, vector<1x128xf32>
    tpu.vector_store %arg7[%c3, %c0_56], %263 {strides = array<i32>} : memref<8x128xf32, #tpu.memory_space<vmem>>, vector<1x128xf32>,
    %265 = vector.extract_strided_slice %11 {offsets = [4, 0], sizes = [1, 384], strides = [1, 1]} : vector<8x384xf32> to vector<1x384xf32>
    %266 = arith.truncf %263 : vector<1x128xf32> to vector<1x128xbf16>
    %cst_57 = arith.constant dense<0.000000e+00> : vector<1x384xf32>
    %267 = tpu.matmul %266, %4, %cst_57 {dimension_numbers = #tpu.dot_dimension_numbers<[1], [0], [0], [1], [0, 0, 1, 1], [], []>} : vector<1x128xbf16>, vector<128x384xbf16>, vector<1x384xf32> -> vector<1x384xf32>
    %268 = arith.addf %267, %6 : vector<1x384xf32>
    %269 = vector.extract_strided_slice %265 {offsets = [0, 0], sizes = [1, 128], strides = [1, 1]} : vector<1x384xf32> to vector<1x128xf32>
    %270 = vector.extract_strided_slice %268 {offsets = [0, 0], sizes = [1, 128], strides = [1, 1]} : vector<1x384xf32> to vector<1x128xf32>
    %271 = arith.addf %269, %270 : vector<1x128xf32>
    %272 = arith.negf %271 : vector<1x128xf32>
    %273 = math.exp %272 : vector<1x128xf32>
    %cst_58 = arith.constant 1.000000e+00 : f32
    %274 = vector.broadcast %cst_58 : f32 to vector<1x128xf32>
    %275 = arith.addf %274, %273 : vector<1x128xf32>
    %276 = arith.divf %274, %275 : vector<1x128xf32>
    %277 = vector.extract_strided_slice %265 {offsets = [0, 128], sizes = [1, 128], strides = [1, 1]} : vector<1x384xf32> to vector<1x128xf32>
    %278 = vector.extract_strided_slice %268 {offsets = [0, 128], sizes = [1, 128], strides = [1, 1]} : vector<1x384xf32> to vector<1x128xf32>
    %279 = arith.addf %277, %278 : vector<1x128xf32>
    %280 = arith.negf %279 : vector<1x128xf32>
    %281 = math.exp %280 : vector<1x128xf32>
    %cst_59 = arith.constant 1.000000e+00 : f32
    %282 = vector.broadcast %cst_59 : f32 to vector<1x128xf32>
    %283 = arith.addf %282, %281 : vector<1x128xf32>
    %284 = arith.divf %282, %283 : vector<1x128xf32>
    %285 = vector.extract_strided_slice %265 {offsets = [0, 256], sizes = [1, 128], strides = [1, 1]} : vector<1x384xf32> to vector<1x128xf32>
    %286 = vector.extract_strided_slice %268 {offsets = [0, 256], sizes = [1, 128], strides = [1, 1]} : vector<1x384xf32> to vector<1x128xf32>
    %287 = arith.mulf %276, %286 : vector<1x128xf32>
    %288 = arith.addf %285, %287 : vector<1x128xf32>
    %289 = math.tanh %288 : vector<1x128xf32>
    %cst_60 = arith.constant 1.000000e+00 : f32
    %290 = vector.broadcast %cst_60 : f32 to vector<1x128xf32>
    %291 = arith.subf %290, %284 : vector<1x128xf32>
    %292 = arith.mulf %291, %289 : vector<1x128xf32>
    %293 = arith.mulf %284, %263 : vector<1x128xf32>
    %294 = arith.addf %292, %293 : vector<1x128xf32>
    %c0_i32_61 = arith.constant 0 : i32
    %295 = arith.truncf %294 : vector<1x128xf32> to vector<1x128xbf16>
    %cst_62 = arith.constant dense<0.000000e+00> : vector<1x384xf32>
    %296 = tpu.matmul %295, %3, %cst_62 {dimension_numbers = #tpu.dot_dimension_numbers<[1], [0], [0], [1], [0, 0, 1, 1], [], []>} : vector<1x128xbf16>, vector<128x384xbf16>, vector<1x384xf32> -> vector<1x384xf32>
    %297 = arith.addf %296, %5 : vector<1x384xf32>
    %298 = arith.truncf %294 : vector<1x128xf32> to vector<1x128xbf16>
    %cst_63 = arith.constant dense<0.000000e+00> : vector<1x384xf32>
    %299 = tpu.matmul %298, %4, %cst_63 {dimension_numbers = #tpu.dot_dimension_numbers<[1], [0], [0], [1], [0, 0, 1, 1], [], []>} : vector<1x128xbf16>, vector<128x384xbf16>, vector<1x384xf32> -> vector<1x384xf32>
    %300 = arith.addf %299, %6 : vector<1x384xf32>
    %301 = vector.extract_strided_slice %297 {offsets = [0, 0], sizes = [1, 128], strides = [1, 1]} : vector<1x384xf32> to vector<1x128xf32>
    %302 = vector.extract_strided_slice %300 {offsets = [0, 0], sizes = [1, 128], strides = [1, 1]} : vector<1x384xf32> to vector<1x128xf32>
    %303 = arith.addf %301, %302 : vector<1x128xf32>
    %304 = arith.negf %303 : vector<1x128xf32>
    %305 = math.exp %304 : vector<1x128xf32>
    %cst_64 = arith.constant 1.000000e+00 : f32
    %306 = vector.broadcast %cst_64 : f32 to vector<1x128xf32>
    %307 = arith.addf %306, %305 : vector<1x128xf32>
    %308 = arith.divf %306, %307 : vector<1x128xf32>
    %309 = vector.extract_strided_slice %297 {offsets = [0, 128], sizes = [1, 128], strides = [1, 1]} : vector<1x384xf32> to vector<1x128xf32>
    %310 = vector.extract_strided_slice %300 {offsets = [0, 128], sizes = [1, 128], strides = [1, 1]} : vector<1x384xf32> to vector<1x128xf32>
    %311 = arith.addf %309, %310 : vector<1x128xf32>
    %312 = arith.negf %311 : vector<1x128xf32>
    %313 = math.exp %312 : vector<1x128xf32>
    %cst_65 = arith.constant 1.000000e+00 : f32
    %314 = vector.broadcast %cst_65 : f32 to vector<1x128xf32>
    %315 = arith.addf %314, %313 : vector<1x128xf32>
    %316 = arith.divf %314, %315 : vector<1x128xf32>
    %317 = vector.extract_strided_slice %297 {offsets = [0, 256], sizes = [1, 128], strides = [1, 1]} : vector<1x384xf32> to vector<1x128xf32>
    %318 = vector.extract_strided_slice %300 {offsets = [0, 256], sizes = [1, 128], strides = [1, 1]} : vector<1x384xf32> to vector<1x128xf32>
    %319 = arith.mulf %308, %318 : vector<1x128xf32>
    %320 = arith.addf %317, %319 : vector<1x128xf32>
    %321 = math.tanh %320 : vector<1x128xf32>
    %cst_66 = arith.constant 1.000000e+00 : f32
    %322 = vector.broadcast %cst_66 : f32 to vector<1x128xf32>
    %323 = arith.subf %322, %316 : vector<1x128xf32>
    %324 = arith.mulf %323, %321 : vector<1x128xf32>
    %325 = arith.mulf %316, %294 : vector<1x128xf32>
    %326 = arith.addf %324, %325 : vector<1x128xf32>
    %c4 = arith.constant 4 : index
    %c0_67 = arith.constant 0 : index
    %327 = vector.load %arg7[%c4, %c0_67] : memref<8x128xf32, #tpu.memory_space<vmem>>, vector<1x128xf32>
    tpu.vector_store %arg7[%c4, %c0_67], %326 {strides = array<i32>} : memref<8x128xf32, #tpu.memory_space<vmem>>, vector<1x128xf32>,
    %328 = vector.extract_strided_slice %11 {offsets = [5, 0], sizes = [1, 384], strides = [1, 1]} : vector<8x384xf32> to vector<1x384xf32>
    %329 = arith.truncf %326 : vector<1x128xf32> to vector<1x128xbf16>
    %cst_68 = arith.constant dense<0.000000e+00> : vector<1x384xf32>
    %330 = tpu.matmul %329, %4, %cst_68 {dimension_numbers = #tpu.dot_dimension_numbers<[1], [0], [0], [1], [0, 0, 1, 1], [], []>} : vector<1x128xbf16>, vector<128x384xbf16>, vector<1x384xf32> -> vector<1x384xf32>
    %331 = arith.addf %330, %6 : vector<1x384xf32>
    %332 = vector.extract_strided_slice %328 {offsets = [0, 0], sizes = [1, 128], strides = [1, 1]} : vector<1x384xf32> to vector<1x128xf32>
    %333 = vector.extract_strided_slice %331 {offsets = [0, 0], sizes = [1, 128], strides = [1, 1]} : vector<1x384xf32> to vector<1x128xf32>
    %334 = arith.addf %332, %333 : vector<1x128xf32>
    %335 = arith.negf %334 : vector<1x128xf32>
    %336 = math.exp %335 : vector<1x128xf32>
    %cst_69 = arith.constant 1.000000e+00 : f32
    %337 = vector.broadcast %cst_69 : f32 to vector<1x128xf32>
    %338 = arith.addf %337, %336 : vector<1x128xf32>
    %339 = arith.divf %337, %338 : vector<1x128xf32>
    %340 = vector.extract_strided_slice %328 {offsets = [0, 128], sizes = [1, 128], strides = [1, 1]} : vector<1x384xf32> to vector<1x128xf32>
    %341 = vector.extract_strided_slice %331 {offsets = [0, 128], sizes = [1, 128], strides = [1, 1]} : vector<1x384xf32> to vector<1x128xf32>
    %342 = arith.addf %340, %341 : vector<1x128xf32>
    %343 = arith.negf %342 : vector<1x128xf32>
    %344 = math.exp %343 : vector<1x128xf32>
    %cst_70 = arith.constant 1.000000e+00 : f32
    %345 = vector.broadcast %cst_70 : f32 to vector<1x128xf32>
    %346 = arith.addf %345, %344 : vector<1x128xf32>
    %347 = arith.divf %345, %346 : vector<1x128xf32>
    %348 = vector.extract_strided_slice %328 {offsets = [0, 256], sizes = [1, 128], strides = [1, 1]} : vector<1x384xf32> to vector<1x128xf32>
    %349 = vector.extract_strided_slice %331 {offsets = [0, 256], sizes = [1, 128], strides = [1, 1]} : vector<1x384xf32> to vector<1x128xf32>
    %350 = arith.mulf %339, %349 : vector<1x128xf32>
    %351 = arith.addf %348, %350 : vector<1x128xf32>
    %352 = math.tanh %351 : vector<1x128xf32>
    %cst_71 = arith.constant 1.000000e+00 : f32
    %353 = vector.broadcast %cst_71 : f32 to vector<1x128xf32>
    %354 = arith.subf %353, %347 : vector<1x128xf32>
    %355 = arith.mulf %354, %352 : vector<1x128xf32>
    %356 = arith.mulf %347, %326 : vector<1x128xf32>
    %357 = arith.addf %355, %356 : vector<1x128xf32>
    %c0_i32_72 = arith.constant 0 : i32
    %358 = arith.truncf %357 : vector<1x128xf32> to vector<1x128xbf16>
    %cst_73 = arith.constant dense<0.000000e+00> : vector<1x384xf32>
    %359 = tpu.matmul %358, %3, %cst_73 {dimension_numbers = #tpu.dot_dimension_numbers<[1], [0], [0], [1], [0, 0, 1, 1], [], []>} : vector<1x128xbf16>, vector<128x384xbf16>, vector<1x384xf32> -> vector<1x384xf32>
    %360 = arith.addf %359, %5 : vector<1x384xf32>
    %361 = arith.truncf %357 : vector<1x128xf32> to vector<1x128xbf16>
    %cst_74 = arith.constant dense<0.000000e+00> : vector<1x384xf32>
    %362 = tpu.matmul %361, %4, %cst_74 {dimension_numbers = #tpu.dot_dimension_numbers<[1], [0], [0], [1], [0, 0, 1, 1], [], []>} : vector<1x128xbf16>, vector<128x384xbf16>, vector<1x384xf32> -> vector<1x384xf32>
    %363 = arith.addf %362, %6 : vector<1x384xf32>
    %364 = vector.extract_strided_slice %360 {offsets = [0, 0], sizes = [1, 128], strides = [1, 1]} : vector<1x384xf32> to vector<1x128xf32>
    %365 = vector.extract_strided_slice %363 {offsets = [0, 0], sizes = [1, 128], strides = [1, 1]} : vector<1x384xf32> to vector<1x128xf32>
    %366 = arith.addf %364, %365 : vector<1x128xf32>
    %367 = arith.negf %366 : vector<1x128xf32>
    %368 = math.exp %367 : vector<1x128xf32>
    %cst_75 = arith.constant 1.000000e+00 : f32
    %369 = vector.broadcast %cst_75 : f32 to vector<1x128xf32>
    %370 = arith.addf %369, %368 : vector<1x128xf32>
    %371 = arith.divf %369, %370 : vector<1x128xf32>
    %372 = vector.extract_strided_slice %360 {offsets = [0, 128], sizes = [1, 128], strides = [1, 1]} : vector<1x384xf32> to vector<1x128xf32>
    %373 = vector.extract_strided_slice %363 {offsets = [0, 128], sizes = [1, 128], strides = [1, 1]} : vector<1x384xf32> to vector<1x128xf32>
    %374 = arith.addf %372, %373 : vector<1x128xf32>
    %375 = arith.negf %374 : vector<1x128xf32>
    %376 = math.exp %375 : vector<1x128xf32>
    %cst_76 = arith.constant 1.000000e+00 : f32
    %377 = vector.broadcast %cst_76 : f32 to vector<1x128xf32>
    %378 = arith.addf %377, %376 : vector<1x128xf32>
    %379 = arith.divf %377, %378 : vector<1x128xf32>
    %380 = vector.extract_strided_slice %360 {offsets = [0, 256], sizes = [1, 128], strides = [1, 1]} : vector<1x384xf32> to vector<1x128xf32>
    %381 = vector.extract_strided_slice %363 {offsets = [0, 256], sizes = [1, 128], strides = [1, 1]} : vector<1x384xf32> to vector<1x128xf32>
    %382 = arith.mulf %371, %381 : vector<1x128xf32>
    %383 = arith.addf %380, %382 : vector<1x128xf32>
    %384 = math.tanh %383 : vector<1x128xf32>
    %cst_77 = arith.constant 1.000000e+00 : f32
    %385 = vector.broadcast %cst_77 : f32 to vector<1x128xf32>
    %386 = arith.subf %385, %379 : vector<1x128xf32>
    %387 = arith.mulf %386, %384 : vector<1x128xf32>
    %388 = arith.mulf %379, %357 : vector<1x128xf32>
    %389 = arith.addf %387, %388 : vector<1x128xf32>
    %c5 = arith.constant 5 : index
    %c0_78 = arith.constant 0 : index
    %390 = vector.load %arg7[%c5, %c0_78] : memref<8x128xf32, #tpu.memory_space<vmem>>, vector<1x128xf32>
    tpu.vector_store %arg7[%c5, %c0_78], %389 {strides = array<i32>} : memref<8x128xf32, #tpu.memory_space<vmem>>, vector<1x128xf32>,
    %391 = vector.extract_strided_slice %11 {offsets = [6, 0], sizes = [1, 384], strides = [1, 1]} : vector<8x384xf32> to vector<1x384xf32>
    %392 = arith.truncf %389 : vector<1x128xf32> to vector<1x128xbf16>
    %cst_79 = arith.constant dense<0.000000e+00> : vector<1x384xf32>
    %393 = tpu.matmul %392, %4, %cst_79 {dimension_numbers = #tpu.dot_dimension_numbers<[1], [0], [0], [1], [0, 0, 1, 1], [], []>} : vector<1x128xbf16>, vector<128x384xbf16>, vector<1x384xf32> -> vector<1x384xf32>
    %394 = arith.addf %393, %6 : vector<1x384xf32>
    %395 = vector.extract_strided_slice %391 {offsets = [0, 0], sizes = [1, 128], strides = [1, 1]} : vector<1x384xf32> to vector<1x128xf32>
    %396 = vector.extract_strided_slice %394 {offsets = [0, 0], sizes = [1, 128], strides = [1, 1]} : vector<1x384xf32> to vector<1x128xf32>
    %397 = arith.addf %395, %396 : vector<1x128xf32>
    %398 = arith.negf %397 : vector<1x128xf32>
    %399 = math.exp %398 : vector<1x128xf32>
    %cst_80 = arith.constant 1.000000e+00 : f32
    %400 = vector.broadcast %cst_80 : f32 to vector<1x128xf32>
    %401 = arith.addf %400, %399 : vector<1x128xf32>
    %402 = arith.divf %400, %401 : vector<1x128xf32>
    %403 = vector.extract_strided_slice %391 {offsets = [0, 128], sizes = [1, 128], strides = [1, 1]} : vector<1x384xf32> to vector<1x128xf32>
    %404 = vector.extract_strided_slice %394 {offsets = [0, 128], sizes = [1, 128], strides = [1, 1]} : vector<1x384xf32> to vector<1x128xf32>
    %405 = arith.addf %403, %404 : vector<1x128xf32>
    %406 = arith.negf %405 : vector<1x128xf32>
    %407 = math.exp %406 : vector<1x128xf32>
    %cst_81 = arith.constant 1.000000e+00 : f32
    %408 = vector.broadcast %cst_81 : f32 to vector<1x128xf32>
    %409 = arith.addf %408, %407 : vector<1x128xf32>
    %410 = arith.divf %408, %409 : vector<1x128xf32>
    %411 = vector.extract_strided_slice %391 {offsets = [0, 256], sizes = [1, 128], strides = [1, 1]} : vector<1x384xf32> to vector<1x128xf32>
    %412 = vector.extract_strided_slice %394 {offsets = [0, 256], sizes = [1, 128], strides = [1, 1]} : vector<1x384xf32> to vector<1x128xf32>
    %413 = arith.mulf %402, %412 : vector<1x128xf32>
    %414 = arith.addf %411, %413 : vector<1x128xf32>
    %415 = math.tanh %414 : vector<1x128xf32>
    %cst_82 = arith.constant 1.000000e+00 : f32
    %416 = vector.broadcast %cst_82 : f32 to vector<1x128xf32>
    %417 = arith.subf %416, %410 : vector<1x128xf32>
    %418 = arith.mulf %417, %415 : vector<1x128xf32>
    %419 = arith.mulf %410, %389 : vector<1x128xf32>
    %420 = arith.addf %418, %419 : vector<1x128xf32>
    %c0_i32_83 = arith.constant 0 : i32
    %421 = arith.truncf %420 : vector<1x128xf32> to vector<1x128xbf16>
    %cst_84 = arith.constant dense<0.000000e+00> : vector<1x384xf32>
    %422 = tpu.matmul %421, %3, %cst_84 {dimension_numbers = #tpu.dot_dimension_numbers<[1], [0], [0], [1], [0, 0, 1, 1], [], []>} : vector<1x128xbf16>, vector<128x384xbf16>, vector<1x384xf32> -> vector<1x384xf32>
    %423 = arith.addf %422, %5 : vector<1x384xf32>
    %424 = arith.truncf %420 : vector<1x128xf32> to vector<1x128xbf16>
    %cst_85 = arith.constant dense<0.000000e+00> : vector<1x384xf32>
    %425 = tpu.matmul %424, %4, %cst_85 {dimension_numbers = #tpu.dot_dimension_numbers<[1], [0], [0], [1], [0, 0, 1, 1], [], []>} : vector<1x128xbf16>, vector<128x384xbf16>, vector<1x384xf32> -> vector<1x384xf32>
    %426 = arith.addf %425, %6 : vector<1x384xf32>
    %427 = vector.extract_strided_slice %423 {offsets = [0, 0], sizes = [1, 128], strides = [1, 1]} : vector<1x384xf32> to vector<1x128xf32>
    %428 = vector.extract_strided_slice %426 {offsets = [0, 0], sizes = [1, 128], strides = [1, 1]} : vector<1x384xf32> to vector<1x128xf32>
    %429 = arith.addf %427, %428 : vector<1x128xf32>
    %430 = arith.negf %429 : vector<1x128xf32>
    %431 = math.exp %430 : vector<1x128xf32>
    %cst_86 = arith.constant 1.000000e+00 : f32
    %432 = vector.broadcast %cst_86 : f32 to vector<1x128xf32>
    %433 = arith.addf %432, %431 : vector<1x128xf32>
    %434 = arith.divf %432, %433 : vector<1x128xf32>
    %435 = vector.extract_strided_slice %423 {offsets = [0, 128], sizes = [1, 128], strides = [1, 1]} : vector<1x384xf32> to vector<1x128xf32>
    %436 = vector.extract_strided_slice %426 {offsets = [0, 128], sizes = [1, 128], strides = [1, 1]} : vector<1x384xf32> to vector<1x128xf32>
    %437 = arith.addf %435, %436 : vector<1x128xf32>
    %438 = arith.negf %437 : vector<1x128xf32>
    %439 = math.exp %438 : vector<1x128xf32>
    %cst_87 = arith.constant 1.000000e+00 : f32
    %440 = vector.broadcast %cst_87 : f32 to vector<1x128xf32>
    %441 = arith.addf %440, %439 : vector<1x128xf32>
    %442 = arith.divf %440, %441 : vector<1x128xf32>
    %443 = vector.extract_strided_slice %423 {offsets = [0, 256], sizes = [1, 128], strides = [1, 1]} : vector<1x384xf32> to vector<1x128xf32>
    %444 = vector.extract_strided_slice %426 {offsets = [0, 256], sizes = [1, 128], strides = [1, 1]} : vector<1x384xf32> to vector<1x128xf32>
    %445 = arith.mulf %434, %444 : vector<1x128xf32>
    %446 = arith.addf %443, %445 : vector<1x128xf32>
    %447 = math.tanh %446 : vector<1x128xf32>
    %cst_88 = arith.constant 1.000000e+00 : f32
    %448 = vector.broadcast %cst_88 : f32 to vector<1x128xf32>
    %449 = arith.subf %448, %442 : vector<1x128xf32>
    %450 = arith.mulf %449, %447 : vector<1x128xf32>
    %451 = arith.mulf %442, %420 : vector<1x128xf32>
    %452 = arith.addf %450, %451 : vector<1x128xf32>
    %c6 = arith.constant 6 : index
    %c0_89 = arith.constant 0 : index
    %453 = vector.load %arg7[%c6, %c0_89] : memref<8x128xf32, #tpu.memory_space<vmem>>, vector<1x128xf32>
    tpu.vector_store %arg7[%c6, %c0_89], %452 {strides = array<i32>} : memref<8x128xf32, #tpu.memory_space<vmem>>, vector<1x128xf32>,
    %454 = vector.extract_strided_slice %11 {offsets = [7, 0], sizes = [1, 384], strides = [1, 1]} : vector<8x384xf32> to vector<1x384xf32>
    %455 = arith.truncf %452 : vector<1x128xf32> to vector<1x128xbf16>
    %cst_90 = arith.constant dense<0.000000e+00> : vector<1x384xf32>
    %456 = tpu.matmul %455, %4, %cst_90 {dimension_numbers = #tpu.dot_dimension_numbers<[1], [0], [0], [1], [0, 0, 1, 1], [], []>} : vector<1x128xbf16>, vector<128x384xbf16>, vector<1x384xf32> -> vector<1x384xf32>
    %457 = arith.addf %456, %6 : vector<1x384xf32>
    %458 = vector.extract_strided_slice %454 {offsets = [0, 0], sizes = [1, 128], strides = [1, 1]} : vector<1x384xf32> to vector<1x128xf32>
    %459 = vector.extract_strided_slice %457 {offsets = [0, 0], sizes = [1, 128], strides = [1, 1]} : vector<1x384xf32> to vector<1x128xf32>
    %460 = arith.addf %458, %459 : vector<1x128xf32>
    %461 = arith.negf %460 : vector<1x128xf32>
    %462 = math.exp %461 : vector<1x128xf32>
    %cst_91 = arith.constant 1.000000e+00 : f32
    %463 = vector.broadcast %cst_91 : f32 to vector<1x128xf32>
    %464 = arith.addf %463, %462 : vector<1x128xf32>
    %465 = arith.divf %463, %464 : vector<1x128xf32>
    %466 = vector.extract_strided_slice %454 {offsets = [0, 128], sizes = [1, 128], strides = [1, 1]} : vector<1x384xf32> to vector<1x128xf32>
    %467 = vector.extract_strided_slice %457 {offsets = [0, 128], sizes = [1, 128], strides = [1, 1]} : vector<1x384xf32> to vector<1x128xf32>
    %468 = arith.addf %466, %467 : vector<1x128xf32>
    %469 = arith.negf %468 : vector<1x128xf32>
    %470 = math.exp %469 : vector<1x128xf32>
    %cst_92 = arith.constant 1.000000e+00 : f32
    %471 = vector.broadcast %cst_92 : f32 to vector<1x128xf32>
    %472 = arith.addf %471, %470 : vector<1x128xf32>
    %473 = arith.divf %471, %472 : vector<1x128xf32>
    %474 = vector.extract_strided_slice %454 {offsets = [0, 256], sizes = [1, 128], strides = [1, 1]} : vector<1x384xf32> to vector<1x128xf32>
    %475 = vector.extract_strided_slice %457 {offsets = [0, 256], sizes = [1, 128], strides = [1, 1]} : vector<1x384xf32> to vector<1x128xf32>
    %476 = arith.mulf %465, %475 : vector<1x128xf32>
    %477 = arith.addf %474, %476 : vector<1x128xf32>
    %478 = math.tanh %477 : vector<1x128xf32>
    %cst_93 = arith.constant 1.000000e+00 : f32
    %479 = vector.broadcast %cst_93 : f32 to vector<1x128xf32>
    %480 = arith.subf %479, %473 : vector<1x128xf32>
    %481 = arith.mulf %480, %478 : vector<1x128xf32>
    %482 = arith.mulf %473, %452 : vector<1x128xf32>
    %483 = arith.addf %481, %482 : vector<1x128xf32>
    %c0_i32_94 = arith.constant 0 : i32
    %484 = arith.truncf %483 : vector<1x128xf32> to vector<1x128xbf16>
    %cst_95 = arith.constant dense<0.000000e+00> : vector<1x384xf32>
    %485 = tpu.matmul %484, %3, %cst_95 {dimension_numbers = #tpu.dot_dimension_numbers<[1], [0], [0], [1], [0, 0, 1, 1], [], []>} : vector<1x128xbf16>, vector<128x384xbf16>, vector<1x384xf32> -> vector<1x384xf32>
    %486 = arith.addf %485, %5 : vector<1x384xf32>
    %487 = arith.truncf %483 : vector<1x128xf32> to vector<1x128xbf16>
    %cst_96 = arith.constant dense<0.000000e+00> : vector<1x384xf32>
    %488 = tpu.matmul %487, %4, %cst_96 {dimension_numbers = #tpu.dot_dimension_numbers<[1], [0], [0], [1], [0, 0, 1, 1], [], []>} : vector<1x128xbf16>, vector<128x384xbf16>, vector<1x384xf32> -> vector<1x384xf32>
    %489 = arith.addf %488, %6 : vector<1x384xf32>
    %490 = vector.extract_strided_slice %486 {offsets = [0, 0], sizes = [1, 128], strides = [1, 1]} : vector<1x384xf32> to vector<1x128xf32>
    %491 = vector.extract_strided_slice %489 {offsets = [0, 0], sizes = [1, 128], strides = [1, 1]} : vector<1x384xf32> to vector<1x128xf32>
    %492 = arith.addf %490, %491 : vector<1x128xf32>
    %493 = arith.negf %492 : vector<1x128xf32>
    %494 = math.exp %493 : vector<1x128xf32>
    %cst_97 = arith.constant 1.000000e+00 : f32
    %495 = vector.broadcast %cst_97 : f32 to vector<1x128xf32>
    %496 = arith.addf %495, %494 : vector<1x128xf32>
    %497 = arith.divf %495, %496 : vector<1x128xf32>
    %498 = vector.extract_strided_slice %486 {offsets = [0, 128], sizes = [1, 128], strides = [1, 1]} : vector<1x384xf32> to vector<1x128xf32>
    %499 = vector.extract_strided_slice %489 {offsets = [0, 128], sizes = [1, 128], strides = [1, 1]} : vector<1x384xf32> to vector<1x128xf32>
    %500 = arith.addf %498, %499 : vector<1x128xf32>
    %501 = arith.negf %500 : vector<1x128xf32>
    %502 = math.exp %501 : vector<1x128xf32>
    %cst_98 = arith.constant 1.000000e+00 : f32
    %503 = vector.broadcast %cst_98 : f32 to vector<1x128xf32>
    %504 = arith.addf %503, %502 : vector<1x128xf32>
    %505 = arith.divf %503, %504 : vector<1x128xf32>
    %506 = vector.extract_strided_slice %486 {offsets = [0, 256], sizes = [1, 128], strides = [1, 1]} : vector<1x384xf32> to vector<1x128xf32>
    %507 = vector.extract_strided_slice %489 {offsets = [0, 256], sizes = [1, 128], strides = [1, 1]} : vector<1x384xf32> to vector<1x128xf32>
    %508 = arith.mulf %497, %507 : vector<1x128xf32>
    %509 = arith.addf %506, %508 : vector<1x128xf32>
    %510 = math.tanh %509 : vector<1x128xf32>
    %cst_99 = arith.constant 1.000000e+00 : f32
    %511 = vector.broadcast %cst_99 : f32 to vector<1x128xf32>
    %512 = arith.subf %511, %505 : vector<1x128xf32>
    %513 = arith.mulf %512, %510 : vector<1x128xf32>
    %514 = arith.mulf %505, %483 : vector<1x128xf32>
    %515 = arith.addf %513, %514 : vector<1x128xf32>
    %c7 = arith.constant 7 : index
    %c0_100 = arith.constant 0 : index
    %516 = vector.load %arg7[%c7, %c0_100] : memref<8x128xf32, #tpu.memory_space<vmem>>, vector<1x128xf32>
    tpu.vector_store %arg7[%c7, %c0_100], %515 {strides = array<i32>} : memref<8x128xf32, #tpu.memory_space<vmem>>, vector<1x128xf32>,
    %c0_101 = arith.constant 0 : index
    %c0_102 = arith.constant 0 : index
    %517 = vector.load %arg8[%c0_101, %c0_102] : memref<1x128xf32, #tpu.memory_space<vmem>>, vector<1x128xf32>
    tpu.vector_store %arg8[%c0_101, %c0_102], %515 {strides = array<i32>} : memref<1x128xf32, #tpu.memory_space<vmem>>, vector<1x128xf32>,
    return
  }
  func.func @transform_0(%arg0: i32) -> (i32, i32) {
    %c0_i32 = arith.constant 0 : i32
    %c0_i32_0 = arith.constant 0 : i32
    return %arg0, %c0_i32 : i32, i32
  }
  func.func @transform_1(%arg0: i32) -> (i32, i32) {
    %c0_i32 = arith.constant 0 : i32
    %c0_i32_0 = arith.constant 0 : i32
    %c0_i32_1 = arith.constant 0 : i32
    return %c0_i32, %c0_i32_0 : i32, i32
  }
  func.func @transform_2(%arg0: i32) -> (i32, i32) {
    %c0_i32 = arith.constant 0 : i32
    %c0_i32_0 = arith.constant 0 : i32
    %c0_i32_1 = arith.constant 0 : i32
    return %c0_i32, %c0_i32_0 : i32, i32
  }
  func.func @transform_3(%arg0: i32) -> (i32, i32) {
    %c0_i32 = arith.constant 0 : i32
    %c0_i32_0 = arith.constant 0 : i32
    %c0_i32_1 = arith.constant 0 : i32
    return %c0_i32, %c0_i32_0 : i32, i32
  }
  func.func @transform_4(%arg0: i32) -> (i32, i32) {
    %c0_i32 = arith.constant 0 : i32
    %c0_i32_0 = arith.constant 0 : i32
    %c0_i32_1 = arith.constant 0 : i32
    return %c0_i32, %c0_i32_0 : i32, i32
  }
  func.func @transform_5(%arg0: i32) -> (i32, i32) {
    %c0_i32 = arith.constant 0 : i32
    %c0_i32_0 = arith.constant 0 : i32
    %c0_i32_1 = arith.constant 0 : i32
    return %c0_i32, %c0_i32_0 : i32, i32
  }
  func.func @transform_6(%arg0: i32) -> (i32, i32) {
    %c0_i32 = arith.constant 0 : i32
    %c0_i32_0 = arith.constant 0 : i32
    return %arg0, %c0_i32 : i32, i32
  }
}

</mosaic_0001>

<llo_original>
// kernel: tpu_custom_call.1
$region0: #{tpu_custom_call.1}
  #allocation0 [shape = 'u32[]', space=smem, size = 0x4, offset = 0x4, fixed_abs, tag = 'smem constant byte address 0x4 - core index']
  #allocation1 [shape = 'u32[144,128]{1,0:T(1,128)}', space=vmem, size = 0x12000, scoped, tag = 'internal scratch']
  #allocation2 [shape = 'f32[1,128]{1,0:T(1,128)}', space=vmem, size = 0x200, scoped, tag = 'scratch operand']
  %s0 = inlined_call_operand.hbm [shape: f32[8,128], index: 0, kind: input, shape index: {}]
  %s1 = inlined_call_operand.hbm [shape: bf16[128,384], index: 1, kind: input, shape index: {}]
  %s2 = inlined_call_operand.hbm [shape: bf16[128,384], index: 2, kind: input, shape index: {}]
  %s3 = inlined_call_operand.vmem [shape: f32[1,384], index: 3, kind: input, shape index: {}]
  %s4 = inlined_call_operand.vmem [shape: f32[1,384], index: 4, kind: input, shape index: {}]
  %s5 = inlined_call_operand.vmem [shape: f32[1,128], index: 5, kind: input, shape index: {}]
  %s6 = inlined_call_operand.hbm [shape: f32[8,128], index: 6, kind: output, shape index: {}]
  %s7 = sld [smem:[#allocation0]]
  $region50: #{tpu_custom_call.1} parent=0
    _
  %s9 = ssub.s32 1, %s7
  %s10 = scalar_select 0, %s9, %s7
  $region1: #{tpu_custom_call.1} parent=0
    #allocation3 [shape = 'u8[4096]{0}', space=vmem, size = 0x1000, scoped, tag = 'input window, operand 0, single buffered']
    #allocation4 [shape = 's32[1]{0}', space=sflag, size = 0x4, scoped, tag = 'scoped memory for tpu_custom_call.1']
    #allocation5 [shape = 's32[1]{0}', space=sflag, size = 0x4, scoped, tag = 'scoped memory for tpu_custom_call.1']
    #allocation6 [shape = 'u8[98304]{0}', space=vmem, size = 0x18000, scoped, tag = 'input window, operand 1, single buffered']
    #allocation7 [shape = 's32[1]{0}', space=sflag, size = 0x4, scoped, tag = 'scoped memory for tpu_custom_call.1']
    #allocation8 [shape = 'u8[98304]{0}', space=vmem, size = 0x18000, scoped, tag = 'input window, operand 2, single buffered']
    #allocation9 [shape = 'u8[4096]{0}', space=vmem, size = 0x1000, scoped, tag = 'output window, operand 0, single buffered']
    %11 = vsyncpa [#allocation4], 0
    %12 = vsyncpa [#allocation7], 0
    %13 = vsyncpa [#allocation5], 0
    // Predicated region
    $region2: #{tpu_custom_call.1} parent=1 // pred_check
      _
    $region3: #{tpu_custom_call.1} parent=1 // pred_check_branch
      %15 = sbr.rel (0) target = $region5
    $region4: #{tpu_custom_call.1} parent=1 // pred_region
      %s17 = ssub.s32 128, 128
      %18 = vsyncadd [#allocation4], %s17
      %s20 = sshll.u32 [#allocation3], 4
      %s21 = int_to_ptr.vmem [resolvable:$true] %s20
      %23 = dma.hbm_to_vmem [thread:$0]  %s0, 128, %s21, [#allocation4]
    $region5: #{tpu_custom_call.1} parent=1 // pred_fallthru
      _
    // Predicated region
    $region6: #{tpu_custom_call.1} parent=1 // pred_check
      _
    $region7: #{tpu_custom_call.1} parent=1 // pred_check_branch
      %25 = sbr.rel (0) target = $region9
    $region8: #{tpu_custom_call.1} parent=1 // pred_region
      %s27 = ssub.s32 3072, 3072
      %28 = vsyncadd [#allocation7], %s27
      %s29 = sshll.u32 [#allocation6], 4
      %s30 = int_to_ptr.vmem [resolvable:$true] %s29
      %35 = dma.hbm_to_vmem [thread:$0]  %s1, 3072, %s30, [#allocation7], 192, 192, 12
    $region9: #{tpu_custom_call.1} parent=1 // pred_fallthru
      _
    // Predicated region
    $region10: #{tpu_custom_call.1} parent=1 // pred_check
      _
    $region11: #{tpu_custom_call.1} parent=1 // pred_check_branch
      %37 = sbr.rel (0) target = $region13
    $region12: #{tpu_custom_call.1} parent=1 // pred_region
      %s39 = ssub.s32 3072, 3072
      %40 = vsyncadd [#allocation7], %s39
      %s41 = sshll.u32 [#allocation8], 4
      %s42 = int_to_ptr.vmem [resolvable:$true] %s41
      %47 = dma.hbm_to_vmem [thread:$0]  %s2, 3072, %s42, [#allocation7], 192, 192, 12
    $region13: #{tpu_custom_call.1} parent=1 // pred_fallthru
      _
    // Predicated region
    $region14: #{tpu_custom_call.1} parent=1 // pred_check
      _
    $region15: #{tpu_custom_call.1} parent=1 // pred_check_branch
      %49 = sbr.rel (0) target = $region17
    $region16: #{tpu_custom_call.1} parent=1 // pred_region
      _
    $region17: #{tpu_custom_call.1} parent=1 // pred_fallthru
      _
    // Predicated region
    $region18: #{tpu_custom_call.1} parent=1 // pred_check
      _
    $region19: #{tpu_custom_call.1} parent=1 // pred_check_branch
      %51 = sbr.rel (0) target = $region21
    $region20: #{tpu_custom_call.1} parent=1 // pred_region
      _
    $region21: #{tpu_custom_call.1} parent=1 // pred_fallthru
      _
    // Predicated region
    $region22: #{tpu_custom_call.1} parent=1 // pred_check
      _
    $region23: #{tpu_custom_call.1} parent=1 // pred_check_branch
      %53 = sbr.rel (0) target = $region25
    $region24: #{tpu_custom_call.1} parent=1 // pred_region
      _
    $region25: #{tpu_custom_call.1} parent=1 // pred_fallthru
      _
    // Predicated region
    $region26: #{tpu_custom_call.1} parent=1 // pred_check
      _
    $region27: #{tpu_custom_call.1} parent=1 // pred_check_branch
      %55 = sbr.rel (0) target = $region29
    $region28: #{tpu_custom_call.1} parent=1 // pred_region
      %56 = dma.done [#allocation4], 128
    $region29: #{tpu_custom_call.1} parent=1 // pred_fallthru
      _
    // Predicated region
    $region30: #{tpu_custom_call.1} parent=1 // pred_check
      _
    $region31: #{tpu_custom_call.1} parent=1 // pred_check_branch
      %58 = sbr.rel (0) target = $region33
    $region32: #{tpu_custom_call.1} parent=1 // pred_region
      %59 = dma.done [#allocation7], 3072
    $region33: #{tpu_custom_call.1} parent=1 // pred_fallthru
      _
    // Predicated region
    $region34: #{tpu_custom_call.1} parent=1 // pred_check
      _
    $region35: #{tpu_custom_call.1} parent=1 // pred_check_branch
      %61 = sbr.rel (0) target = $region37
    $region36: #{tpu_custom_call.1} parent=1 // pred_region
      %62 = dma.done [#allocation7], 3072
    $region37: #{tpu_custom_call.1} parent=1 // pred_fallthru
      _
    %p64 = scmp.eq.s32.totalorder 0, 0
    // Predicated region
    $region38: #{tpu_custom_call.1} parent=1 // pred_check
      %p65 = pneg %p64
    $region39: #{tpu_custom_call.1} parent=1 // pred_check_branch
      %67 = sbr.rel (%p65) target = $region41
    $region40: #{tpu_custom_call.1} parent=1 // pred_region
      %v68 = vld [vmem:[%s5] sm:$0x1]
      %69 = vst [vmem:[#allocation2] sm:$0x1] %v68
    $region41: #{tpu_custom_call.1} parent=1 // pred_fallthru
      _
    %v70 = vld [vmem:[#allocation6] sm:$0xff]
    %v71 = vld [vmem:[#allocation6 + $0x8] sm:$0xf]
    %v72 = vld [vmem:[#allocation6 + $0xc] sm:$0xff]
    %v73 = vld [vmem:[#allocation6 + $0x14] sm:$0xf]
    %v74 = vld [vmem:[#allocation6 + $0x18] sm:$0xff]
    %v75 = vld [vmem:[#allocation6 + $0x20] sm:$0xf]
    %v76 = vld [vmem:[#allocation6 + $0x24] sm:$0xff]
    %v77 = vld [vmem:[#allocation6 + $0x2c] sm:$0xf]
    %v78 = vld [vmem:[#allocation6 + $0x30] sm:$0xff]
    %v79 = vld [vmem:[#allocation6 + $0x38] sm:$0xf]
    %v80 = vld [vmem:[#allocation6 + $0x3c] sm:$0xff]
    %v81 = vld [vmem:[#allocation6 + $0x44] sm:$0xf]
    %v82 = vld [vmem:[#allocation6 + $0x48] sm:$0xff]
    %v83 = vld [vmem:[#allocation6 + $0x50] sm:$0xf]
    %v84 = vld [vmem:[#allocation6 + $0x54] sm:$0xff]
    %v85 = vld [vmem:[#allocation6 + $0x5c] sm:$0xf]
    %v86 = vld [vmem:[#allocation6 + $0x60] sm:$0xff]
    %v87 = vld [vmem:[#allocation6 + $0x68] sm:$0xf]
    %v88 = vld [vmem:[#allocation6 + $0x6c] sm:$0xff]
    %v89 = vld [vmem:[#allocation6 + $0x74] sm:$0xf]
    %v90 = vld [vmem:[#allocation6 + $0x78] sm:$0xff]
    %v91 = vld [vmem:[#allocation6 + $0x80] sm:$0xf]
    %v92 = vld [vmem:[#allocation6 + $0x84] sm:$0xff]
    %v93 = vld [vmem:[#allocation6 + $0x8c] sm:$0xf]
    %v94 = vld [vmem:[#allocation6 + $0x90] sm:$0xff]
    %v95 = vld [vmem:[#allocation6 + $0x98] sm:$0xf]
    %v96 = vld [vmem:[#allocation6 + $0x9c] sm:$0xff]
    %v97 = vld [vmem:[#allocation6 + $0xa4] sm:$0xf]
    %v98 = vld [vmem:[#allocation6 + $0xa8] sm:$0xff]
    %v99 = vld [vmem:[#allocation6 + $0xb0] sm:$0xf]
    %v100 = vld [vmem:[#allocation6 + $0xb4] sm:$0xff]
    %v101 = vld [vmem:[#allocation6 + $0xbc] sm:$0xf]
    %v102 = vld [vmem:[#allocation8] sm:$0xff]
    %v103 = vld [vmem:[#allocation8 + $0x8] sm:$0xf]
    %v104 = vld [vmem:[#allocation8 + $0xc] sm:$0xff]
    %v105 = vld [vmem:[#allocation8 + $0x14] sm:$0xf]
    %v106 = vld [vmem:[#allocation8 + $0x18] sm:$0xff]
    %v107 = vld [vmem:[#allocation8 + $0x20] sm:$0xf]
    %v108 = vld [vmem:[#allocation8 + $0x24] sm:$0xff]
    %v109 = vld [vmem:[#allocation8 + $0x2c] sm:$0xf]
    %v110 = vld [vmem:[#allocation8 + $0x30] sm:$0xff]
    %v111 = vld [vmem:[#allocation8 + $0x38] sm:$0xf]
    %v112 = vld [vmem:[#allocation8 + $0x3c] sm:$0xff]
    %v113 = vld [vmem:[#allocation8 + $0x44] sm:$0xf]
    %v114 = vld [vmem:[#allocation8 + $0x48] sm:$0xff]
    %v115 = vld [vmem:[#allocation8 + $0x50] sm:$0xf]
    %v116 = vld [vmem:[#allocation8 + $0x54] sm:$0xff]
    %v117 = vld [vmem:[#allocation8 + $0x5c] sm:$0xf]
    %v118 = vld [vmem:[#allocation8 + $0x60] sm:$0xff]
    %v119 = vld [vmem:[#allocation8 + $0x68] sm:$0xf]
    %v120 = vld [vmem:[#allocation8 + $0x6c] sm:$0xff]
    %v121 = vld [vmem:[#allocation8 + $0x74] sm:$0xf]
    %v122 = vld [vmem:[#allocation8 + $0x78] sm:$0xff]
    %v123 = vld [vmem:[#allocation8 + $0x80] sm:$0xf]
    %v124 = vld [vmem:[#allocation8 + $0x84] sm:$0xff]
    %v125 = vld [vmem:[#allocation8 + $0x8c] sm:$0xf]
    %v126 = vld [vmem:[#allocation8 + $0x90] sm:$0xff]
    %v127 = vld [vmem:[#allocation8 + $0x98] sm:$0xf]
    %v128 = vld [vmem:[#allocation8 + $0x9c] sm:$0xff]
    %v129 = vld [vmem:[#allocation8 + $0xa4] sm:$0xf]
    %v130 = vld [vmem:[#allocation8 + $0xa8] sm:$0xff]
    %v131 = vld [vmem:[#allocation8 + $0xb0] sm:$0xf]
    %v132 = vld [vmem:[#allocation8 + $0xb4] sm:$0xff]
    %v133 = vld [vmem:[#allocation8 + $0xbc] sm:$0xf]
    %v134 = vld [vmem:[%s3] sm:$0x7]
    %v135 = vld [vmem:[%s4] sm:$0x7]
    %v136 = vld [vmem:[#allocation3] sm:$0xff]
    %v137 = vpack.c.bf16 %v136, %v136
    %v139 = vlaneseq
    %v140 = vshrl.u32 %v139, 7
    %v141 = vsub.s32 0, %v140
    %v142 = vrot.slane %v134, %v141
    %v143 = vlaneseq
    %v144 = vshrl.u32 %v143, 7
    %v145 = vsub.s32 1, %v144
    %v146 = vrot.slane %v134, %v145
    %v147 = vlaneseq
    %v148 = vshrl.u32 %v147, 7
    %v149 = vsub.s32 2, %v148
    %v150 = vrot.slane %v134, %v149
    %v186 = vunpack.c.l.b16 %v70
    %v187 = vunpack.c.h.b16 %v70
    %v188 = vunpack.c.l.b16 %v71
    %v189 = vunpack.c.l.b16 %v72
    %v190 = vunpack.c.h.b16 %v72
    %v191 = vunpack.c.l.b16 %v73
    %v192 = vunpack.c.l.b16 %v74
    %v193 = vunpack.c.h.b16 %v74
    %v194 = vunpack.c.l.b16 %v75
    %v195 = vunpack.c.l.b16 %v76
    %v196 = vunpack.c.h.b16 %v76
    %v197 = vunpack.c.l.b16 %v77
    %v198 = vunpack.c.l.b16 %v78
    %v199 = vunpack.c.h.b16 %v78
    %v200 = vunpack.c.l.b16 %v79
    %v201 = vunpack.c.l.b16 %v80
    %v202 = vunpack.c.h.b16 %v80
    %v203 = vunpack.c.l.b16 %v81
    %v204 = vunpack.c.l.b16 %v82
    %v205 = vunpack.c.h.b16 %v82
    %v206 = vunpack.c.l.b16 %v83
    %v207 = vunpack.c.l.b16 %v84
    %v208 = vunpack.c.h.b16 %v84
    %v209 = vunpack.c.l.b16 %v85
    %v210 = vunpack.c.l.b16 %v86
    %v211 = vunpack.c.h.b16 %v86
    %v212 = vunpack.c.l.b16 %v87
    %v213 = vunpack.c.l.b16 %v88
    %v214 = vunpack.c.h.b16 %v88
    %v215 = vunpack.c.l.b16 %v89
    %v216 = vunpack.c.l.b16 %v90
    %v217 = vunpack.c.h.b16 %v90
    %v218 = vunpack.c.l.b16 %v91
    %v219 = vunpack.c.l.b16 %v92
    %v220 = vunpack.c.h.b16 %v92
    %v221 = vunpack.c.l.b16 %v93
    %v222 = vunpack.c.l.b16 %v94
    %v223 = vunpack.c.h.b16 %v94
    %v224 = vunpack.c.l.b16 %v95
    %v225 = vunpack.c.l.b16 %v96
    %v226 = vunpack.c.h.b16 %v96
    %v227 = vunpack.c.l.b16 %v97
    %v228 = vunpack.c.l.b16 %v98
    %v229 = vunpack.c.h.b16 %v98
    %v230 = vunpack.c.l.b16 %v99
    %v231 = vunpack.c.l.b16 %v100
    %v232 = vunpack.c.h.b16 %v100
    %v233 = vunpack.c.l.b16 %v101
    %v234 = vpack.c.b16 %v189, %v186
    %v235 = vpack.c.b16 %v190, %v187
    %v236 = vpack.c.b16 %v191, %v188
    %v237 = vpack.c.b16 %v195, %v192
    %v238 = vpack.c.b16 %v196, %v193
    %v239 = vpack.c.b16 %v197, %v194
    %v240 = vpack.c.b16 %v201, %v198
    %v241 = vpack.c.b16 %v202, %v199
    %v242 = vpack.c.b16 %v203, %v200
    %v243 = vpack.c.b16 %v207, %v204
    %v244 = vpack.c.b16 %v208, %v205
    %v245 = vpack.c.b16 %v209, %v206
    %v246 = vpack.c.b16 %v213, %v210
    %v247 = vpack.c.b16 %v214, %v211
    %v248 = vpack.c.b16 %v215, %v212
    %v249 = vpack.c.b16 %v219, %v216
    %v250 = vpack.c.b16 %v220, %v217
    %v251 = vpack.c.b16 %v221, %v218
    %v252 = vpack.c.b16 %v225, %v222
    %v253 = vpack.c.b16 %v226, %v223
    %v254 = vpack.c.b16 %v227, %v224
    %v255 = vpack.c.b16 %v231, %v228
    %v256 = vpack.c.b16 %v232, %v229
    %v257 = vpack.c.b16 %v233, %v230
    %282 = vmatprep.subr.bf16.mxu0 %v256
    %283 = vmatpush1.bf16.msra.mxu0 %v255
    %284 = vmatprep.subr.bf16.mxu0 %v253
    %285 = vmatpush1.bf16.msra.mxu0 %v252
    %286 = vmatprep.subr.bf16.mxu0 %v250
    %287 = vmatpush1.bf16.msra.mxu0 %v249
    %288 = vmatprep.subr.bf16.mxu0 %v247
    %289 = vmatpush1.bf16.msra.mxu0 %v246
    %290 = vmatprep.subr.bf16.mxu0 %v244
    %291 = vmatpush1.bf16.msra.mxu0 %v243
    %292 = vmatprep.subr.bf16.mxu0 %v241
    %293 = vmatpush1.bf16.msra.mxu0 %v240
    %294 = vmatprep.subr.bf16.mxu0 %v238
    %295 = vmatpush1.bf16.msra.mxu0 %v237
    %296 = vmatprep.subr.bf16.mxu0 %v235
    %297 = vmatpush1.bf16.msra.mxu0 %v234
    %298 = vmatprep.subr.bf16.mxu0 0
    %299 = vmatpush2.bf16.msra.mxu0 0
    %300 = vmatprep.subr.bf16.mxu0 0
    %301 = vmatpush2.bf16.msra.mxu0 0
    %302 = vmatprep.subr.bf16.mxu0 0
    %303 = vmatpush2.bf16.msra.mxu0 0
    %304 = vmatprep.subr.bf16.mxu0 0
    %305 = vmatpush2.bf16.msra.mxu0 0
    %306 = vmatprep.subr.bf16.mxu0 0
    %307 = vmatpush2.bf16.msra.mxu0 0
    %308 = vmatprep.subr.bf16.mxu0 0
    %309 = vmatpush2.bf16.msra.mxu0 0
    %310 = vmatprep.subr.bf16.mxu0 0
    %311 = vmatpush2.bf16.msra.mxu0 0
    %312 = vmatprep.subr.bf16.mxu0 0
    %313 = vmatpush2.bf16.msra.mxu0 0
    %314 = vmatprep.mubr.bf16.mxu0 0
    %315 = vmatmul.mubr.bf16.gmra.mxu0 %v137
    %v316 = vpop.f32.mrf.mxu0
    %v317 = vadd.f32 %v142, %v316
    %v318 = vpop.f32.mrf.mxu0
    %v319 = vadd.f32 %v146, %v318
    %v320 = vpop.f32.mrf.mxu0
    %v321 = vpop.f32.mrf.mxu0
    %322 = vdwg.mxu0
    %323 = vmatprep.subr.bf16.mxu0 0
    %324 = vmatpush1.bf16.msra.mxu0 %v257
    %325 = vmatprep.subr.bf16.mxu0 0
    %326 = vmatpush1.bf16.msra.mxu0 %v254
    %327 = vmatprep.subr.bf16.mxu0 0
    %328 = vmatpush1.bf16.msra.mxu0 %v251
    %329 = vmatprep.subr.bf16.mxu0 0
    %330 = vmatpush1.bf16.msra.mxu0 %v248
    %331 = vmatprep.subr.bf16.mxu0 0
    %332 = vmatpush1.bf16.msra.mxu0 %v245
    %333 = vmatprep.subr.bf16.mxu0 0
    %334 = vmatpush1.bf16.msra.mxu0 %v242
    %335 = vmatprep.subr.bf16.mxu0 0
    %336 = vmatpush1.bf16.msra.mxu0 %v239
    %337 = vmatprep.subr.bf16.mxu0 0
    %338 = vmatpush1.bf16.msra.mxu0 %v236
    %339 = vmatprep.subr.bf16.mxu0 0
    %340 = vmatpush2.bf16.msra.mxu0 0
    %341 = vmatprep.subr.bf16.mxu0 0
    %342 = vmatpush2.bf16.msra.mxu0 0
    %343 = vmatprep.subr.bf16.mxu0 0
    %344 = vmatpush2.bf16.msra.mxu0 0
    %345 = vmatprep.subr.bf16.mxu0 0
    %346 = vmatpush2.bf16.msra.mxu0 0
    %347 = vmatprep.subr.bf16.mxu0 0
    %348 = vmatpush2.bf16.msra.mxu0 0
    %349 = vmatprep.subr.bf16.mxu0 0
    %350 = vmatpush2.bf16.msra.mxu0 0
    %351 = vmatprep.subr.bf16.mxu0 0
    %352 = vmatpush2.bf16.msra.mxu0 0
    %353 = vmatprep.subr.bf16.mxu0 0
    %354 = vmatpush2.bf16.msra.mxu0 0
    %355 = vmatprep.mubr.bf16.mxu0 0
    %356 = vmatmul.mubr.bf16.gmra.mxu0 %v137
    %v357 = vpop.f32.mrf.mxu0
    %v358 = vadd.f32 %v150, %v357
    %v359 = vpop.f32.mrf.mxu0
    %v360 = vpop.f32.mrf.mxu0
    %v361 = vpop.f32.mrf.mxu0
    %362 = vdwg.mxu0
    %v363 = vld [vmem:[#allocation2] sm:$0x1]
    %v364 = vpack.c.bf16 %v363, %v363
    %v397 = vunpack.c.l.b16 %v102
    %v398 = vunpack.c.h.b16 %v102
    %v399 = vunpack.c.l.b16 %v103
    %v400 = vunpack.c.l.b16 %v104
    %v401 = vunpack.c.h.b16 %v104
    %v402 = vunpack.c.l.b16 %v105
    %v403 = vunpack.c.l.b16 %v106
    %v404 = vunpack.c.h.b16 %v106
    %v405 = vunpack.c.l.b16 %v107
    %v406 = vunpack.c.l.b16 %v108
    %v407 = vunpack.c.h.b16 %v108
    %v408 = vunpack.c.l.b16 %v109
    %v409 = vunpack.c.l.b16 %v110
    %v410 = vunpack.c.h.b16 %v110
    %v411 = vunpack.c.l.b16 %v111
    %v412 = vunpack.c.l.b16 %v112
    %v413 = vunpack.c.h.b16 %v112
    %v414 = vunpack.c.l.b16 %v113
    %v415 = vunpack.c.l.b16 %v114
    %v416 = vunpack.c.h.b16 %v114
    %v417 = vunpack.c.l.b16 %v115
    %v418 = vunpack.c.l.b16 %v116
    %v419 = vunpack.c.h.b16 %v116
    %v420 = vunpack.c.l.b16 %v117
    %v421 = vunpack.c.l.b16 %v118
    %v422 = vunpack.c.h.b16 %v118
    %v423 = vunpack.c.l.b16 %v119
    %v424 = vunpack.c.l.b16 %v120
    %v425 = vunpack.c.h.b16 %v120
    %v426 = vunpack.c.l.b16 %v121
    %v427 = vunpack.c.l.b16 %v122
    %v428 = vunpack.c.h.b16 %v122
    %v429 = vunpack.c.l.b16 %v123
    %v430 = vunpack.c.l.b16 %v124
    %v431 = vunpack.c.h.b16 %v124
    %v432 = vunpack.c.l.b16 %v125
    %v433 = vunpack.c.l.b16 %v126
    %v434 = vunpack.c.h.b16 %v126
    %v435 = vunpack.c.l.b16 %v127
    %v436 = vunpack.c.l.b16 %v128
    %v437 = vunpack.c.h.b16 %v128
    %v438 = vunpack.c.l.b16 %v129
    %v439 = vunpack.c.l.b16 %v130
    %v440 = vunpack.c.h.b16 %v130
    %v441 = vunpack.c.l.b16 %v131
    %v442 = vunpack.c.l.b16 %v132
    %v443 = vunpack.c.h.b16 %v132
    %v444 = vunpack.c.l.b16 %v133
    %v445 = vpack.c.b16 %v400, %v397
    %v446 = vpack.c.b16 %v401, %v398
    %v447 = vpack.c.b16 %v402, %v399
    %v448 = vpack.c.b16 %v406, %v403
    %v449 = vpack.c.b16 %v407, %v404
    %v450 = vpack.c.b16 %v408, %v405
    %v451 = vpack.c.b16 %v412, %v409
    %v452 = vpack.c.b16 %v413, %v410
    %v453 = vpack.c.b16 %v414, %v411
    %v454 = vpack.c.b16 %v418, %v415
    %v455 = vpack.c.b16 %v419, %v416
    %v456 = vpack.c.b16 %v420, %v417
    %v457 = vpack.c.b16 %v424, %v421
    %v458 = vpack.c.b16 %v425, %v422
    %v459 = vpack.c.b16 %v426, %v423
    %v460 = vpack.c.b16 %v430, %v427
    %v461 = vpack.c.b16 %v431, %v428
    %v462 = vpack.c.b16 %v432, %v429
    %v463 = vpack.c.b16 %v436, %v433
    %v464 = vpack.c.b16 %v437, %v434
    %v465 = vpack.c.b16 %v438, %v435
    %v466 = vpack.c.b16 %v442, %v439
    %v467 = vpack.c.b16 %v443, %v440
    %v468 = vpack.c.b16 %v444, %v441
    %v494 = vlaneseq
    %v495 = vshrl.u32 %v494, 7
    %v496 = vsub.s32 0, %v495
    %v497 = vrot.slane %v135, %v496
    %v498 = vlaneseq
    %v499 = vshrl.u32 %v498, 7
    %v500 = vsub.s32 1, %v499
    %v501 = vrot.slane %v135, %v500
    %v502 = vlaneseq
    %v503 = vshrl.u32 %v502, 7
    %v504 = vsub.s32 2, %v503
    %v505 = vrot.slane %v135, %v504
    %509 = vmatprep.subr.bf16.mxu0 %v467
    %510 = vmatpush1.bf16.msra.mxu0 %v466
    %511 = vmatprep.subr.bf16.mxu0 %v464
    %512 = vmatpush1.bf16.msra.mxu0 %v463
    %513 = vmatprep.subr.bf16.mxu0 %v461
    %514 = vmatpush1.bf16.msra.mxu0 %v460
    %515 = vmatprep.subr.bf16.mxu0 %v458
    %516 = vmatpush1.bf16.msra.mxu0 %v457
    %517 = vmatprep.subr.bf16.mxu0 %v455
    %518 = vmatpush1.bf16.msra.mxu0 %v454
    %519 = vmatprep.subr.bf16.mxu0 %v452
    %520 = vmatpush1.bf16.msra.mxu0 %v451
    %521 = vmatprep.subr.bf16.mxu0 %v449
    %522 = vmatpush1.bf16.msra.mxu0 %v448
    %523 = vmatprep.subr.bf16.mxu0 %v446
    %524 = vmatpush1.bf16.msra.mxu0 %v445
    %525 = vmatprep.subr.bf16.mxu0 0
    %526 = vmatpush2.bf16.msra.mxu0 0
    %527 = vmatprep.subr.bf16.mxu0 0
    %528 = vmatpush2.bf16.msra.mxu0 0
    %529 = vmatprep.subr.bf16.mxu0 0
    %530 = vmatpush2.bf16.msra.mxu0 0
    %531 = vmatprep.subr.bf16.mxu0 0
    %532 = vmatpush2.bf16.msra.mxu0 0
    %533 = vmatprep.subr.bf16.mxu0 0
    %534 = vmatpush2.bf16.msra.mxu0 0
    %535 = vmatprep.subr.bf16.mxu0 0
    %536 = vmatpush2.bf16.msra.mxu0 0
    %537 = vmatprep.subr.bf16.mxu0 0
    %538 = vmatpush2.bf16.msra.mxu0 0
    %539 = vmatprep.subr.bf16.mxu0 0
    %540 = vmatpush2.bf16.msra.mxu0 0
    %541 = vmatprep.mubr.bf16.mxu0 0
    %542 = vmatmul.mubr.bf16.gmra.mxu0 %v364
    %v543 = vpop.f32.mrf.mxu0
    %v544 = vadd.f32 %v497, %v543
    %v545 = vpop.f32.mrf.mxu0
    %v546 = vadd.f32 %v501, %v545
    %v547 = vpop.f32.mrf.mxu0
    %v548 = vpop.f32.mrf.mxu0
    %549 = vdwg.mxu0
    %550 = vmatprep.subr.bf16.mxu0 0
    %551 = vmatpush1.bf16.msra.mxu0 %v468
    %552 = vmatprep.subr.bf16.mxu0 0
    %553 = vmatpush1.bf16.msra.mxu0 %v465
    %554 = vmatprep.subr.bf16.mxu0 0
    %555 = vmatpush1.bf16.msra.mxu0 %v462
    %556 = vmatprep.subr.bf16.mxu0 0
    %557 = vmatpush1.bf16.msra.mxu0 %v459
    %558 = vmatprep.subr.bf16.mxu0 0
    %559 = vmatpush1.bf16.msra.mxu0 %v456
    %560 = vmatprep.subr.bf16.mxu0 0
    %561 = vmatpush1.bf16.msra.mxu0 %v453
    %562 = vmatprep.subr.bf16.mxu0 0
    %563 = vmatpush1.bf16.msra.mxu0 %v450
    %564 = vmatprep.subr.bf16.mxu0 0
    %565 = vmatpush1.bf16.msra.mxu0 %v447
    %566 = vmatprep.subr.bf16.mxu0 0
    %567 = vmatpush2.bf16.msra.mxu0 0
    %568 = vmatprep.subr.bf16.mxu0 0
    %569 = vmatpush2.bf16.msra.mxu0 0
    %570 = vmatprep.subr.bf16.mxu0 0
    %571 = vmatpush2.bf16.msra.mxu0 0
    %572 = vmatprep.subr.bf16.mxu0 0
    %573 = vmatpush2.bf16.msra.mxu0 0
    %574 = vmatprep.subr.bf16.mxu0 0
    %575 = vmatpush2.bf16.msra.mxu0 0
    %576 = vmatprep.subr.bf16.mxu0 0
    %577 = vmatpush2.bf16.msra.mxu0 0
    %578 = vmatprep.subr.bf16.mxu0 0
    %579 = vmatpush2.bf16.msra.mxu0 0
    %580 = vmatprep.subr.bf16.mxu0 0
    %581 = vmatpush2.bf16.msra.mxu0 0
    %582 = vmatprep.mubr.bf16.mxu0 0
    %583 = vmatmul.mubr.bf16.gmra.mxu0 %v364
    %v584 = vpop.f32.mrf.mxu0
    %v585 = vadd.f32 %v505, %v584
    %v586 = vpop.f32.mrf.mxu0
    %v587 = vpop.f32.mrf.mxu0
    %v588 = vpop.f32.mrf.mxu0
    %589 = vdwg.mxu0
    %v590 = vadd.f32 %v317, %v544
    %v591 = vxor.u32 %v590, 2147483648
    %v592 = vmul.f32 %v591, 1.442695
    %v593 = vpow.pop %v592
    %v594 = vadd.f32 %v593, 1.0
    %v595 = vrcp.pop %v594
    %v596 = vmul.f32 1.0, %v595
    %v597 = vadd.f32 %v319, %v546
    %v598 = vxor.u32 %v597, 2147483648
    %v599 = vmul.f32 %v598, 1.442695
    %v600 = vpow.pop %v599
    %v601 = vadd.f32 %v600, 1.0
    %v602 = vrcp.pop %v601
    %v603 = vmul.f32 1.0, %v602
    %v604 = vmul.f32 %v596, %v585
    %v605 = vadd.f32 %v358, %v604
    %v606 = vtanh.pop %v605
    %v607 = vsub.f32 1.0, %v603
    %v608 = vmul.f32 %v607, %v606
    %v609 = vmul.f32 %v603, %v363
    %v610 = vadd.f32 %v608, %v609
    %v611 = vpack.c.bf16 %v610, %v610
    %612 = vmatprep.subr.bf16.mxu0 %v256
    %613 = vmatpush1.bf16.msra.mxu0 %v255
    %614 = vmatprep.subr.bf16.mxu0 %v253
    %615 = vmatpush1.bf16.msra.mxu0 %v252
    %616 = vmatprep.subr.bf16.mxu0 %v250
    %617 = vmatpush1.bf16.msra.mxu0 %v249
    %618 = vmatprep.subr.bf16.mxu0 %v247
    %619 = vmatpush1.bf16.msra.mxu0 %v246
    %620 = vmatprep.subr.bf16.mxu0 %v244
    %621 = vmatpush1.bf16.msra.mxu0 %v243
    %622 = vmatprep.subr.bf16.mxu0 %v241
    %623 = vmatpush1.bf16.msra.mxu0 %v240
    %624 = vmatprep.subr.bf16.mxu0 %v238
    %625 = vmatpush1.bf16.msra.mxu0 %v237
    %626 = vmatprep.subr.bf16.mxu0 %v235
    %627 = vmatpush1.bf16.msra.mxu0 %v234
    %628 = vmatprep.subr.bf16.mxu0 0
    %629 = vmatpush2.bf16.msra.mxu0 0
    %630 = vmatprep.subr.bf16.mxu0 0
    %631 = vmatpush2.bf16.msra.mxu0 0
    %632 = vmatprep.subr.bf16.mxu0 0
    %633 = vmatpush2.bf16.msra.mxu0 0
    %634 = vmatprep.subr.bf16.mxu0 0
    %635 = vmatpush2.bf16.msra.mxu0 0
    %636 = vmatprep.subr.bf16.mxu0 0
    %637 = vmatpush2.bf16.msra.mxu0 0
    %638 = vmatprep.subr.bf16.mxu0 0
    %639 = vmatpush2.bf16.msra.mxu0 0
    %640 = vmatprep.subr.bf16.mxu0 0
    %641 = vmatpush2.bf16.msra.mxu0 0
    %642 = vmatprep.subr.bf16.mxu0 0
    %643 = vmatpush2.bf16.msra.mxu0 0
    %644 = vmatprep.mubr.bf16.mxu0 0
    %645 = vmatmul.mubr.bf16.gmra.mxu0 %v611
    %v646 = vpop.f32.mrf.mxu0
    %v647 = vadd.f32 %v142, %v646
    %v648 = vpop.f32.mrf.mxu0
    %v649 = vadd.f32 %v146, %v648
    %v650 = vpop.f32.mrf.mxu0
    %v651 = vpop.f32.mrf.mxu0
    %652 = vdwg.mxu0
    %653 = vmatprep.subr.bf16.mxu0 0
    %654 = vmatpush1.bf16.msra.mxu0 %v257
    %655 = vmatprep.subr.bf16.mxu0 0
    %656 = vmatpush1.bf16.msra.mxu0 %v254
    %657 = vmatprep.subr.bf16.mxu0 0
    %658 = vmatpush1.bf16.msra.mxu0 %v251
    %659 = vmatprep.subr.bf16.mxu0 0
    %660 = vmatpush1.bf16.msra.mxu0 %v248
    %661 = vmatprep.subr.bf16.mxu0 0
    %662 = vmatpush1.bf16.msra.mxu0 %v245
    %663 = vmatprep.subr.bf16.mxu0 0
    %664 = vmatpush1.bf16.msra.mxu0 %v242
    %665 = vmatprep.subr.bf16.mxu0 0
    %666 = vmatpush1.bf16.msra.mxu0 %v239
    %667 = vmatprep.subr.bf16.mxu0 0
    %668 = vmatpush1.bf16.msra.mxu0 %v236
    %669 = vmatprep.subr.bf16.mxu0 0
    %670 = vmatpush2.bf16.msra.mxu0 0
    %671 = vmatprep.subr.bf16.mxu0 0
    %672 = vmatpush2.bf16.msra.mxu0 0
    %673 = vmatprep.subr.bf16.mxu0 0
    %674 = vmatpush2.bf16.msra.mxu0 0
    %675 = vmatprep.subr.bf16.mxu0 0
    %676 = vmatpush2.bf16.msra.mxu0 0
    %677 = vmatprep.subr.bf16.mxu0 0
    %678 = vmatpush2.bf16.msra.mxu0 0
    %679 = vmatprep.subr.bf16.mxu0 0
    %680 = vmatpush2.bf16.msra.mxu0 0
    %681 = vmatprep.subr.bf16.mxu0 0
    %682 = vmatpush2.bf16.msra.mxu0 0
    %683 = vmatprep.subr.bf16.mxu0 0
    %684 = vmatpush2.bf16.msra.mxu0 0
    %685 = vmatprep.mubr.bf16.mxu0 0
    %686 = vmatmul.mubr.bf16.gmra.mxu0 %v611
    %v687 = vpop.f32.mrf.mxu0
    %v688 = vadd.f32 %v150, %v687
    %v689 = vpop.f32.mrf.mxu0
    %v690 = vpop.f32.mrf.mxu0
    %v691 = vpop.f32.mrf.mxu0
    %692 = vdwg.mxu0
    %693 = vmatprep.subr.bf16.mxu0 %v467
    %694 = vmatpush1.bf16.msra.mxu0 %v466
    %695 = vmatprep.subr.bf16.mxu0 %v464
    %696 = vmatpush1.bf16.msra.mxu0 %v463
    %697 = vmatprep.subr.bf16.mxu0 %v461
    %698 = vmatpush1.bf16.msra.mxu0 %v460
    %699 = vmatprep.subr.bf16.mxu0 %v458
    %700 = vmatpush1.bf16.msra.mxu0 %v457
    %701 = vmatprep.subr.bf16.mxu0 %v455
    %702 = vmatpush1.bf16.msra.mxu0 %v454
    %703 = vmatprep.subr.bf16.mxu0 %v452
    %704 = vmatpush1.bf16.msra.mxu0 %v451
    %705 = vmatprep.subr.bf16.mxu0 %v449
    %706 = vmatpush1.bf16.msra.mxu0 %v448
    %707 = vmatprep.subr.bf16.mxu0 %v446
    %708 = vmatpush1.bf16.msra.mxu0 %v445
    %709 = vmatprep.subr.bf16.mxu0 0
    %710 = vmatpush2.bf16.msra.mxu0 0
    %711 = vmatprep.subr.bf16.mxu0 0
    %712 = vmatpush2.bf16.msra.mxu0 0
    %713 = vmatprep.subr.bf16.mxu0 0
    %714 = vmatpush2.bf16.msra.mxu0 0
    %715 = vmatprep.subr.bf16.mxu0 0
    %716 = vmatpush2.bf16.msra.mxu0 0
    %717 = vmatprep.subr.bf16.mxu0 0
    %718 = vmatpush2.bf16.msra.mxu0 0
    %719 = vmatprep.subr.bf16.mxu0 0
    %720 = vmatpush2.bf16.msra.mxu0 0
    %721 = vmatprep.subr.bf16.mxu0 0
    %722 = vmatpush2.bf16.msra.mxu0 0
    %723 = vmatprep.subr.bf16.mxu0 0
    %724 = vmatpush2.bf16.msra.mxu0 0
    %725 = vmatprep.mubr.bf16.mxu0 0
    %726 = vmatmul.mubr.bf16.gmra.mxu0 %v611
    %v727 = vpop.f32.mrf.mxu0
    %v728 = vadd.f32 %v497, %v727
    %v729 = vpop.f32.mrf.mxu0
    %v730 = vadd.f32 %v501, %v729
    %v731 = vpop.f32.mrf.mxu0
    %v732 = vpop.f32.mrf.mxu0
    %733 = vdwg.mxu0
    %734 = vmatprep.subr.bf16.mxu0 0
    %735 = vmatpush1.bf16.msra.mxu0 %v468
    %736 = vmatprep.subr.bf16.mxu0 0
    %737 = vmatpush1.bf16.msra.mxu0 %v465
    %738 = vmatprep.subr.bf16.mxu0 0
    %739 = vmatpush1.bf16.msra.mxu0 %v462
    %740 = vmatprep.subr.bf16.mxu0 0
    %741 = vmatpush1.bf16.msra.mxu0 %v459
    %742 = vmatprep.subr.bf16.mxu0 0
    %743 = vmatpush1.bf16.msra.mxu0 %v456
    %744 = vmatprep.subr.bf16.mxu0 0
    %745 = vmatpush1.bf16.msra.mxu0 %v453
    %746 = vmatprep.subr.bf16.mxu0 0
    %747 = vmatpush1.bf16.msra.mxu0 %v450
    %748 = vmatprep.subr.bf16.mxu0 0
    %749 = vmatpush1.bf16.msra.mxu0 %v447
    %750 = vmatprep.subr.bf16.mxu0 0
    %751 = vmatpush2.bf16.msra.mxu0 0
    %752 = vmatprep.subr.bf16.mxu0 0
    %753 = vmatpush2.bf16.msra.mxu0 0
    %754 = vmatprep.subr.bf16.mxu0 0
    %755 = vmatpush2.bf16.msra.mxu0 0
    %756 = vmatprep.subr.bf16.mxu0 0
    %757 = vmatpush2.bf16.msra.mxu0 0
    %758 = vmatprep.subr.bf16.mxu0 0
    %759 = vmatpush2.bf16.msra.mxu0 0
    %760 = vmatprep.subr.bf16.mxu0 0
    %761 = vmatpush2.bf16.msra.mxu0 0
    %762 = vmatprep.subr.bf16.mxu0 0
    %763 = vmatpush2.bf16.msra.mxu0 0
    %764 = vmatprep.subr.bf16.mxu0 0
    %765 = vmatpush2.bf16.msra.mxu0 0
    %766 = vmatprep.mubr.bf16.mxu0 0
    %767 = vmatmul.mubr.bf16.gmra.mxu0 %v611
    %v768 = vpop.f32.mrf.mxu0
    %v769 = vadd.f32 %v505, %v768
    %v770 = vpop.f32.mrf.mxu0
    %v771 = vpop.f32.mrf.mxu0
    %v772 = vpop.f32.mrf.mxu0
    %773 = vdwg.mxu0
    %v774 = vadd.f32 %v647, %v728
    %v775 = vxor.u32 %v774, 2147483648
    %v776 = vmul.f32 %v775, 1.442695
    %v777 = vpow.pop %v776
    %v778 = vadd.f32 %v777, 1.0
    %v779 = vrcp.pop %v778
    %v780 = vmul.f32 1.0, %v779
    %v781 = vadd.f32 %v649, %v730
    %v782 = vxor.u32 %v781, 2147483648
    %v783 = vmul.f32 %v782, 1.442695
    %v784 = vpow.pop %v783
    %v785 = vadd.f32 %v784, 1.0
    %v786 = vrcp.pop %v785
    %v787 = vmul.f32 1.0, %v786
    %v788 = vmul.f32 %v780, %v769
    %v789 = vadd.f32 %v688, %v788
    %v790 = vtanh.pop %v789
    %v791 = vsub.f32 1.0, %v787
    %v792 = vmul.f32 %v791, %v790
    %v793 = vmul.f32 %v787, %v610
    %v794 = vadd.f32 %v792, %v793
    %795 = vst [vmem:[#allocation9] sm:$0x1] %v794
    %v796 = vpack.c.bf16 %v794, %v794
    %797 = vmatprep.subr.bf16.mxu0 %v467
    %798 = vmatpush1.bf16.msra.mxu0 %v466
    %799 = vmatprep.subr.bf16.mxu0 %v464
    %800 = vmatpush1.bf16.msra.mxu0 %v463
    %801 = vmatprep.subr.bf16.mxu0 %v461
    %802 = vmatpush1.bf16.msra.mxu0 %v460
    %803 = vmatprep.subr.bf16.mxu0 %v458
    %804 = vmatpush1.bf16.msra.mxu0 %v457
    %805 = vmatprep.subr.bf16.mxu0 %v455
    %806 = vmatpush1.bf16.msra.mxu0 %v454
    %807 = vmatprep.subr.bf16.mxu0 %v452
    %808 = vmatpush1.bf16.msra.mxu0 %v451
    %809 = vmatprep.subr.bf16.mxu0 %v449
    %810 = vmatpush1.bf16.msra.mxu0 %v448
    %811 = vmatprep.subr.bf16.mxu0 %v446
    %812 = vmatpush1.bf16.msra.mxu0 %v445
    %813 = vmatprep.subr.bf16.mxu0 0
    %814 = vmatpush2.bf16.msra.mxu0 0
    %815 = vmatprep.subr.bf16.mxu0 0
    %816 = vmatpush2.bf16.msra.mxu0 0
    %817 = vmatprep.subr.bf16.mxu0 0
    %818 = vmatpush2.bf16.msra.mxu0 0
    %819 = vmatprep.subr.bf16.mxu0 0
    %820 = vmatpush2.bf16.msra.mxu0 0
    %821 = vmatprep.subr.bf16.mxu0 0
    %822 = vmatpush2.bf16.msra.mxu0 0
    %823 = vmatprep.subr.bf16.mxu0 0
    %824 = vmatpush2.bf16.msra.mxu0 0
    %825 = vmatprep.subr.bf16.mxu0 0
    %826 = vmatpush2.bf16.msra.mxu0 0
    %827 = vmatprep.subr.bf16.mxu0 0
    %828 = vmatpush2.bf16.msra.mxu0 0
    %829 = vmatprep.mubr.bf16.mxu0 0
    %830 = vmatmul.mubr.bf16.gmra.mxu0 %v796
    %v831 = vpop.f32.mrf.mxu0
    %v832 = vadd.f32 %v497, %v831
    %v833 = vpop.f32.mrf.mxu0
    %v834 = vadd.f32 %v501, %v833
    %v835 = vpop.f32.mrf.mxu0
    %v836 = vpop.f32.mrf.mxu0
    %837 = vdwg.mxu0
    %838 = vmatprep.subr.bf16.mxu0 0
    %839 = vmatpush1.bf16.msra.mxu0 %v468
    %840 = vmatprep.subr.bf16.mxu0 0
    %841 = vmatpush1.bf16.msra.mxu0 %v465
    %842 = vmatprep.subr.bf16.mxu0 0
    %843 = vmatpush1.bf16.msra.mxu0 %v462
    %844 = vmatprep.subr.bf16.mxu0 0
    %845 = vmatpush1.bf16.msra.mxu0 %v459
    %846 = vmatprep.subr.bf16.mxu0 0
    %847 = vmatpush1.bf16.msra.mxu0 %v456
    %848 = vmatprep.subr.bf16.mxu0 0
    %849 = vmatpush1.bf16.msra.mxu0 %v453
    %850 = vmatprep.subr.bf16.mxu0 0
    %851 = vmatpush1.bf16.msra.mxu0 %v450
    %852 = vmatprep.subr.bf16.mxu0 0
    %853 = vmatpush1.bf16.msra.mxu0 %v447
    %854 = vmatprep.subr.bf16.mxu0 0
    %855 = vmatpush2.bf16.msra.mxu0 0
    %856 = vmatprep.subr.bf16.mxu0 0
    %857 = vmatpush2.bf16.msra.mxu0 0
    %858 = vmatprep.subr.bf16.mxu0 0
    %859 = vmatpush2.bf16.msra.mxu0 0
    %860 = vmatprep.subr.bf16.mxu0 0
    %861 = vmatpush2.bf16.msra.mxu0 0
    %862 = vmatprep.subr.bf16.mxu0 0
    %863 = vmatpush2.bf16.msra.mxu0 0
    %864 = vmatprep.subr.bf16.mxu0 0
    %865 = vmatpush2.bf16.msra.mxu0 0
    %866 = vmatprep.subr.bf16.mxu0 0
    %867 = vmatpush2.bf16.msra.mxu0 0
    %868 = vmatprep.subr.bf16.mxu0 0
    %869 = vmatpush2.bf16.msra.mxu0 0
    %870 = vmatprep.mubr.bf16.mxu0 0
    %871 = vmatmul.mubr.bf16.gmra.mxu0 %v796
    %v872 = vpop.f32.mrf.mxu0
    %v873 = vadd.f32 %v505, %v872
    %v874 = vpop.f32.mrf.mxu0
    %v875 = vpop.f32.mrf.mxu0
    %v876 = vpop.f32.mrf.mxu0
    %877 = vdwg.mxu0
    %v879 = vrot.slane %v832, 7
    %v881 = vadd.f32 %v317, %v879
    %v882 = vxor.u32 %v881, 2147483648
    %v883 = vmul.f32 %v882, 1.442695
    %v884 = vpow.pop %v883
    %v885 = vadd.f32 %v884, 1.0
    %v886 = vrcp.pop %v885
    %v887 = vmul.f32 1.0, %v886
    %v889 = vrot.slane %v834, 7
    %v891 = vadd.f32 %v319, %v889
    %v892 = vxor.u32 %v891, 2147483648
    %v893 = vmul.f32 %v892, 1.442695
    %v894 = vpow.pop %v893
    %v895 = vadd.f32 %v894, 1.0
    %v896 = vrcp.pop %v895
    %v897 = vmul.f32 1.0, %v896
    %v899 = vrot.slane %v873, 7
    %v901 = vmul.f32 %v887, %v899
    %v902 = vadd.f32 %v358, %v901
    %v903 = vtanh.pop %v902
    %v904 = vsub.f32 1.0, %v897
    %v905 = vmul.f32 %v904, %v903
    %v907 = vrot.slane %v794, 7
    %v909 = vmul.f32 %v897, %v907
    %v910 = vadd.f32 %v905, %v909
    %v911 = vpack.c.bf16 %v910, %v910
    %v913 = vshrl.u32 %v911, 16
    %916 = vmatprep.subr.bf16.mxu0 %v256
    %917 = vmatpush1.bf16.msra.mxu0 %v255
    %918 = vmatprep.subr.bf16.mxu0 %v253
    %919 = vmatpush1.bf16.msra.mxu0 %v252
    %920 = vmatprep.subr.bf16.mxu0 %v250
    %921 = vmatpush1.bf16.msra.mxu0 %v249
    %922 = vmatprep.subr.bf16.mxu0 %v247
    %923 = vmatpush1.bf16.msra.mxu0 %v246
    %924 = vmatprep.subr.bf16.mxu0 %v244
    %925 = vmatpush1.bf16.msra.mxu0 %v243
    %926 = vmatprep.subr.bf16.mxu0 %v241
    %927 = vmatpush1.bf16.msra.mxu0 %v240
    %928 = vmatprep.subr.bf16.mxu0 %v238
    %929 = vmatpush1.bf16.msra.mxu0 %v237
    %930 = vmatprep.subr.bf16.mxu0 %v235
    %931 = vmatpush1.bf16.msra.mxu0 %v234
    %932 = vmatprep.subr.bf16.mxu0 0
    %933 = vmatpush2.bf16.msra.mxu0 0
    %934 = vmatprep.subr.bf16.mxu0 0
    %935 = vmatpush2.bf16.msra.mxu0 0
    %936 = vmatprep.subr.bf16.mxu0 0
    %937 = vmatpush2.bf16.msra.mxu0 0
    %938 = vmatprep.subr.bf16.mxu0 0
    %939 = vmatpush2.bf16.msra.mxu0 0
    %940 = vmatprep.subr.bf16.mxu0 0
    %941 = vmatpush2.bf16.msra.mxu0 0
    %942 = vmatprep.subr.bf16.mxu0 0
    %943 = vmatpush2.bf16.msra.mxu0 0
    %944 = vmatprep.subr.bf16.mxu0 0
    %945 = vmatpush2.bf16.msra.mxu0 0
    %946 = vmatprep.subr.bf16.mxu0 0
    %947 = vmatpush2.bf16.msra.mxu0 0
    %948 = vmatprep.mubr.bf16.mxu0 0
    %949 = vmatmul.mubr.bf16.gmra.mxu0 %v913
    %v950 = vpop.f32.mrf.mxu0
    %v951 = vadd.f32 %v142, %v950
    %v952 = vpop.f32.mrf.mxu0
    %v953 = vadd.f32 %v146, %v952
    %v954 = vpop.f32.mrf.mxu0
    %v955 = vpop.f32.mrf.mxu0
    %956 = vdwg.mxu0
    %957 = vmatprep.subr.bf16.mxu0 0
    %958 = vmatpush1.bf16.msra.mxu0 %v257
    %959 = vmatprep.subr.bf16.mxu0 0
    %960 = vmatpush1.bf16.msra.mxu0 %v254
    %961 = vmatprep.subr.bf16.mxu0 0
    %962 = vmatpush1.bf16.msra.mxu0 %v251
    %963 = vmatprep.subr.bf16.mxu0 0
    %964 = vmatpush1.bf16.msra.mxu0 %v248
    %965 = vmatprep.subr.bf16.mxu0 0
    %966 = vmatpush1.bf16.msra.mxu0 %v245
    %967 = vmatprep.subr.bf16.mxu0 0
    %968 = vmatpush1.bf16.msra.mxu0 %v242
    %969 = vmatprep.subr.bf16.mxu0 0
    %970 = vmatpush1.bf16.msra.mxu0 %v239
    %971 = vmatprep.subr.bf16.mxu0 0
    %972 = vmatpush1.bf16.msra.mxu0 %v236
    %973 = vmatprep.subr.bf16.mxu0 0
    %974 = vmatpush2.bf16.msra.mxu0 0
    %975 = vmatprep.subr.bf16.mxu0 0
    %976 = vmatpush2.bf16.msra.mxu0 0
    %977 = vmatprep.subr.bf16.mxu0 0
    %978 = vmatpush2.bf16.msra.mxu0 0
    %979 = vmatprep.subr.bf16.mxu0 0
    %980 = vmatpush2.bf16.msra.mxu0 0
    %981 = vmatprep.subr.bf16.mxu0 0
    %982 = vmatpush2.bf16.msra.mxu0 0
    %983 = vmatprep.subr.bf16.mxu0 0
    %984 = vmatpush2.bf16.msra.mxu0 0
    %985 = vmatprep.subr.bf16.mxu0 0
    %986 = vmatpush2.bf16.msra.mxu0 0
    %987 = vmatprep.subr.bf16.mxu0 0
    %988 = vmatpush2.bf16.msra.mxu0 0
    %989 = vmatprep.mubr.bf16.mxu0 0
    %990 = vmatmul.mubr.bf16.gmra.mxu0 %v913
    %v991 = vpop.f32.mrf.mxu0
    %v992 = vadd.f32 %v150, %v991
    %v993 = vpop.f32.mrf.mxu0
    %v994 = vpop.f32.mrf.mxu0
    %v995 = vpop.f32.mrf.mxu0
    %996 = vdwg.mxu0
    %997 = vmatprep.subr.bf16.mxu0 %v467
    %998 = vmatpush1.bf16.msra.mxu0 %v466
    %999 = vmatprep.subr.bf16.mxu0 %v464
    %1000 = vmatpush1.bf16.msra.mxu0 %v463
    %1001 = vmatprep.subr.bf16.mxu0 %v461
    %1002 = vmatpush1.bf16.msra.mxu0 %v460
    %1003 = vmatprep.subr.bf16.mxu0 %v458
    %1004 = vmatpush1.bf16.msra.mxu0 %v457
    %1005 = vmatprep.subr.bf16.mxu0 %v455
    %1006 = vmatpush1.bf16.msra.mxu0 %v454
    %1007 = vmatprep.subr.bf16.mxu0 %v452
    %1008 = vmatpush1.bf16.msra.mxu0 %v451
    %1009 = vmatprep.subr.bf16.mxu0 %v449
    %1010 = vmatpush1.bf16.msra.mxu0 %v448
    %1011 = vmatprep.subr.bf16.mxu0 %v446
    %1012 = vmatpush1.bf16.msra.mxu0 %v445
    %1013 = vmatprep.subr.bf16.mxu0 0
    %1014 = vmatpush2.bf16.msra.mxu0 0
    %1015 = vmatprep.subr.bf16.mxu0 0
    %1016 = vmatpush2.bf16.msra.mxu0 0
    %1017 = vmatprep.subr.bf16.mxu0 0
    %1018 = vmatpush2.bf16.msra.mxu0 0
    %1019 = vmatprep.subr.bf16.mxu0 0
    %1020 = vmatpush2.bf16.msra.mxu0 0
    %1021 = vmatprep.subr.bf16.mxu0 0
    %1022 = vmatpush2.bf16.msra.mxu0 0
    %1023 = vmatprep.subr.bf16.mxu0 0
    %1024 = vmatpush2.bf16.msra.mxu0 0
    %1025 = vmatprep.subr.bf16.mxu0 0
    %1026 = vmatpush2.bf16.msra.mxu0 0
    %1027 = vmatprep.subr.bf16.mxu0 0
    %1028 = vmatpush2.bf16.msra.mxu0 0
    %1029 = vmatprep.mubr.bf16.mxu0 0
    %1030 = vmatmul.mubr.bf16.gmra.mxu0 %v913
    %v1031 = vpop.f32.mrf.mxu0
    %v1032 = vadd.f32 %v497, %v1031
    %v1033 = vpop.f32.mrf.mxu0
    %v1034 = vadd.f32 %v501, %v1033
    %v1035 = vpop.f32.mrf.mxu0
    %v1036 = vpop.f32.mrf.mxu0
    %1037 = vdwg.mxu0
    %1038 = vmatprep.subr.bf16.mxu0 0
    %1039 = vmatpush1.bf16.msra.mxu0 %v468
    %1040 = vmatprep.subr.bf16.mxu0 0
    %1041 = vmatpush1.bf16.msra.mxu0 %v465
    %1042 = vmatprep.subr.bf16.mxu0 0
    %1043 = vmatpush1.bf16.msra.mxu0 %v462
    %1044 = vmatprep.subr.bf16.mxu0 0
    %1045 = vmatpush1.bf16.msra.mxu0 %v459
    %1046 = vmatprep.subr.bf16.mxu0 0
    %1047 = vmatpush1.bf16.msra.mxu0 %v456
    %1048 = vmatprep.subr.bf16.mxu0 0
    %1049 = vmatpush1.bf16.msra.mxu0 %v453
    %1050 = vmatprep.subr.bf16.mxu0 0
    %1051 = vmatpush1.bf16.msra.mxu0 %v450
    %1052 = vmatprep.subr.bf16.mxu0 0
    %1053 = vmatpush1.bf16.msra.mxu0 %v447
    %1054 = vmatprep.subr.bf16.mxu0 0
    %1055 = vmatpush2.bf16.msra.mxu0 0
    %1056 = vmatprep.subr.bf16.mxu0 0
    %1057 = vmatpush2.bf16.msra.mxu0 0
    %1058 = vmatprep.subr.bf16.mxu0 0
    %1059 = vmatpush2.bf16.msra.mxu0 0
    %1060 = vmatprep.subr.bf16.mxu0 0
    %1061 = vmatpush2.bf16.msra.mxu0 0
    %1062 = vmatprep.subr.bf16.mxu0 0
    %1063 = vmatpush2.bf16.msra.mxu0 0
    %1064 = vmatprep.subr.bf16.mxu0 0
    %1065 = vmatpush2.bf16.msra.mxu0 0
    %1066 = vmatprep.subr.bf16.mxu0 0
    %1067 = vmatpush2.bf16.msra.mxu0 0
    %1068 = vmatprep.subr.bf16.mxu0 0
    %1069 = vmatpush2.bf16.msra.mxu0 0
    %1070 = vmatprep.mubr.bf16.mxu0 0
    %1071 = vmatmul.mubr.bf16.gmra.mxu0 %v913
    %v1072 = vpop.f32.mrf.mxu0
    %v1073 = vadd.f32 %v505, %v1072
    %v1074 = vpop.f32.mrf.mxu0
    %v1075 = vpop.f32.mrf.mxu0
    %v1076 = vpop.f32.mrf.mxu0
    %1077 = vdwg.mxu0
    %v1078 = vadd.f32 %v951, %v1032
    %v1079 = vxor.u32 %v1078, 2147483648
    %v1080 = vmul.f32 %v1079, 1.442695
    %v1081 = vpow.pop %v1080
    %v1082 = vadd.f32 %v1081, 1.0
    %v1083 = vrcp.pop %v1082
    %v1084 = vmul.f32 1.0, %v1083
    %v1085 = vadd.f32 %v953, %v1034
    %v1086 = vxor.u32 %v1085, 2147483648
    %v1087 = vmul.f32 %v1086, 1.442695
    %v1088 = vpow.pop %v1087
    %v1089 = vadd.f32 %v1088, 1.0
    %v1090 = vrcp.pop %v1089
    %v1091 = vmul.f32 1.0, %v1090
    %v1092 = vmul.f32 %v1084, %v1073
    %v1093 = vadd.f32 %v992, %v1092
    %v1094 = vtanh.pop %v1093
    %v1095 = vsub.f32 1.0, %v1091
    %v1096 = vmul.f32 %v1095, %v1094
    %v1098 = vrot.slane %v910, 1
    %v1100 = vmul.f32 %v1091, %v1098
    %v1101 = vadd.f32 %v1096, %v1100
    %1102 = vst [vmem:[#allocation9 + $0x1] sm:$0x1] %v1101
    %v1103 = vpack.c.bf16 %v1101, %v1101
    %1104 = vmatprep.subr.bf16.mxu0 %v467
    %1105 = vmatpush1.bf16.msra.mxu0 %v466
    %1106 = vmatprep.subr.bf16.mxu0 %v464
    %1107 = vmatpush1.bf16.msra.mxu0 %v463
    %1108 = vmatprep.subr.bf16.mxu0 %v461
    %1109 = vmatpush1.bf16.msra.mxu0 %v460
    %1110 = vmatprep.subr.bf16.mxu0 %v458
    %1111 = vmatpush1.bf16.msra.mxu0 %v457
    %1112 = vmatprep.subr.bf16.mxu0 %v455
    %1113 = vmatpush1.bf16.msra.mxu0 %v454
    %1114 = vmatprep.subr.bf16.mxu0 %v452
    %1115 = vmatpush1.bf16.msra.mxu0 %v451
    %1116 = vmatprep.subr.bf16.mxu0 %v449
    %1117 = vmatpush1.bf16.msra.mxu0 %v448
    %1118 = vmatprep.subr.bf16.mxu0 %v446
    %1119 = vmatpush1.bf16.msra.mxu0 %v445
    %1120 = vmatprep.subr.bf16.mxu0 0
    %1121 = vmatpush2.bf16.msra.mxu0 0
    %1122 = vmatprep.subr.bf16.mxu0 0
    %1123 = vmatpush2.bf16.msra.mxu0 0
    %1124 = vmatprep.subr.bf16.mxu0 0
    %1125 = vmatpush2.bf16.msra.mxu0 0
    %1126 = vmatprep.subr.bf16.mxu0 0
    %1127 = vmatpush2.bf16.msra.mxu0 0
    %1128 = vmatprep.subr.bf16.mxu0 0
    %1129 = vmatpush2.bf16.msra.mxu0 0
    %1130 = vmatprep.subr.bf16.mxu0 0
    %1131 = vmatpush2.bf16.msra.mxu0 0
    %1132 = vmatprep.subr.bf16.mxu0 0
    %1133 = vmatpush2.bf16.msra.mxu0 0
    %1134 = vmatprep.subr.bf16.mxu0 0
    %1135 = vmatpush2.bf16.msra.mxu0 0
    %1136 = vmatprep.mubr.bf16.mxu0 0
    %1137 = vmatmul.mubr.bf16.gmra.mxu0 %v1103
    %v1138 = vpop.f32.mrf.mxu0
    %v1139 = vadd.f32 %v497, %v1138
    %v1140 = vpop.f32.mrf.mxu0
    %v1141 = vadd.f32 %v501, %v1140
    %v1142 = vpop.f32.mrf.mxu0
    %v1143 = vpop.f32.mrf.mxu0
    %1144 = vdwg.mxu0
    %1145 = vmatprep.subr.bf16.mxu0 0
    %1146 = vmatpush1.bf16.msra.mxu0 %v468
    %1147 = vmatprep.subr.bf16.mxu0 0
    %1148 = vmatpush1.bf16.msra.mxu0 %v465
    %1149 = vmatprep.subr.bf16.mxu0 0
    %1150 = vmatpush1.bf16.msra.mxu0 %v462
    %1151 = vmatprep.subr.bf16.mxu0 0
    %1152 = vmatpush1.bf16.msra.mxu0 %v459
    %1153 = vmatprep.subr.bf16.mxu0 0
    %1154 = vmatpush1.bf16.msra.mxu0 %v456
    %1155 = vmatprep.subr.bf16.mxu0 0
    %1156 = vmatpush1.bf16.msra.mxu0 %v453
    %1157 = vmatprep.subr.bf16.mxu0 0
    %1158 = vmatpush1.bf16.msra.mxu0 %v450
    %1159 = vmatprep.subr.bf16.mxu0 0
    %1160 = vmatpush1.bf16.msra.mxu0 %v447
    %1161 = vmatprep.subr.bf16.mxu0 0
    %1162 = vmatpush2.bf16.msra.mxu0 0
    %1163 = vmatprep.subr.bf16.mxu0 0
    %1164 = vmatpush2.bf16.msra.mxu0 0
    %1165 = vmatprep.subr.bf16.mxu0 0
    %1166 = vmatpush2.bf16.msra.mxu0 0
    %1167 = vmatprep.subr.bf16.mxu0 0
    %1168 = vmatpush2.bf16.msra.mxu0 0
    %1169 = vmatprep.subr.bf16.mxu0 0
    %1170 = vmatpush2.bf16.msra.mxu0 0
    %1171 = vmatprep.subr.bf16.mxu0 0
    %1172 = vmatpush2.bf16.msra.mxu0 0
    %1173 = vmatprep.subr.bf16.mxu0 0
    %1174 = vmatpush2.bf16.msra.mxu0 0
    %1175 = vmatprep.subr.bf16.mxu0 0
    %1176 = vmatpush2.bf16.msra.mxu0 0
    %1177 = vmatprep.mubr.bf16.mxu0 0
    %1178 = vmatmul.mubr.bf16.gmra.mxu0 %v1103
    %v1179 = vpop.f32.mrf.mxu0
    %v1180 = vadd.f32 %v505, %v1179
    %v1181 = vpop.f32.mrf.mxu0
    %v1182 = vpop.f32.mrf.mxu0
    %v1183 = vpop.f32.mrf.mxu0
    %1184 = vdwg.mxu0
    %v1186 = vrot.slane %v1139, 6
    %v1188 = vadd.f32 %v317, %v1186
    %v1189 = vxor.u32 %v1188, 2147483648
    %v1190 = vmul.f32 %v1189, 1.442695
    %v1191 = vpow.pop %v1190
    %v1192 = vadd.f32 %v1191, 1.0
    %v1193 = vrcp.pop %v1192
    %v1194 = vmul.f32 1.0, %v1193
    %v1196 = vrot.slane %v1141, 6
    %v1198 = vadd.f32 %v319, %v1196
    %v1199 = vxor.u32 %v1198, 2147483648
    %v1200 = vmul.f32 %v1199, 1.442695
    %v1201 = vpow.pop %v1200
    %v1202 = vadd.f32 %v1201, 1.0
    %v1203 = vrcp.pop %v1202
    %v1204 = vmul.f32 1.0, %v1203
    %v1206 = vrot.slane %v1180, 6
    %v1208 = vmul.f32 %v1194, %v1206
    %v1209 = vadd.f32 %v358, %v1208
    %v1210 = vtanh.pop %v1209
    %v1211 = vsub.f32 1.0, %v1204
    %v1212 = vmul.f32 %v1211, %v1210
    %v1214 = vrot.slane %v1101, 6
    %v1216 = vmul.f32 %v1204, %v1214
    %v1217 = vadd.f32 %v1212, %v1216
    %v1218 = vpack.c.bf16 %v1217, %v1217
    %v1220 = vrot.slane %v1218, 1
    %1222 = vmatprep.subr.bf16.mxu0 %v256
    %1223 = vmatpush1.bf16.msra.mxu0 %v255
    %1224 = vmatprep.subr.bf16.mxu0 %v253
    %1225 = vmatpush1.bf16.msra.mxu0 %v252
    %1226 = vmatprep.subr.bf16.mxu0 %v250
    %1227 = vmatpush1.bf16.msra.mxu0 %v249
    %1228 = vmatprep.subr.bf16.mxu0 %v247
    %1229 = vmatpush1.bf16.msra.mxu0 %v246
    %1230 = vmatprep.subr.bf16.mxu0 %v244
    %1231 = vmatpush1.bf16.msra.mxu0 %v243
    %1232 = vmatprep.subr.bf16.mxu0 %v241
    %1233 = vmatpush1.bf16.msra.mxu0 %v240
    %1234 = vmatprep.subr.bf16.mxu0 %v238
    %1235 = vmatpush1.bf16.msra.mxu0 %v237
    %1236 = vmatprep.subr.bf16.mxu0 %v235
    %1237 = vmatpush1.bf16.msra.mxu0 %v234
    %1238 = vmatprep.subr.bf16.mxu0 0
    %1239 = vmatpush2.bf16.msra.mxu0 0
    %1240 = vmatprep.subr.bf16.mxu0 0
    %1241 = vmatpush2.bf16.msra.mxu0 0
    %1242 = vmatprep.subr.bf16.mxu0 0
    %1243 = vmatpush2.bf16.msra.mxu0 0
    %1244 = vmatprep.subr.bf16.mxu0 0
    %1245 = vmatpush2.bf16.msra.mxu0 0
    %1246 = vmatprep.subr.bf16.mxu0 0
    %1247 = vmatpush2.bf16.msra.mxu0 0
    %1248 = vmatprep.subr.bf16.mxu0 0
    %1249 = vmatpush2.bf16.msra.mxu0 0
    %1250 = vmatprep.subr.bf16.mxu0 0
    %1251 = vmatpush2.bf16.msra.mxu0 0
    %1252 = vmatprep.subr.bf16.mxu0 0
    %1253 = vmatpush2.bf16.msra.mxu0 0
    %1254 = vmatprep.mubr.bf16.mxu0 0
    %1255 = vmatmul.mubr.bf16.gmra.mxu0 %v1220
    %v1256 = vpop.f32.mrf.mxu0
    %v1257 = vadd.f32 %v142, %v1256
    %v1258 = vpop.f32.mrf.mxu0
    %v1259 = vadd.f32 %v146, %v1258
    %v1260 = vpop.f32.mrf.mxu0
    %v1261 = vpop.f32.mrf.mxu0
    %1262 = vdwg.mxu0
    %1263 = vmatprep.subr.bf16.mxu0 0
    %1264 = vmatpush1.bf16.msra.mxu0 %v257
    %1265 = vmatprep.subr.bf16.mxu0 0
    %1266 = vmatpush1.bf16.msra.mxu0 %v254
    %1267 = vmatprep.subr.bf16.mxu0 0
    %1268 = vmatpush1.bf16.msra.mxu0 %v251
    %1269 = vmatprep.subr.bf16.mxu0 0
    %1270 = vmatpush1.bf16.msra.mxu0 %v248
    %1271 = vmatprep.subr.bf16.mxu0 0
    %1272 = vmatpush1.bf16.msra.mxu0 %v245
    %1273 = vmatprep.subr.bf16.mxu0 0
    %1274 = vmatpush1.bf16.msra.mxu0 %v242
    %1275 = vmatprep.subr.bf16.mxu0 0
    %1276 = vmatpush1.bf16.msra.mxu0 %v239
    %1277 = vmatprep.subr.bf16.mxu0 0
    %1278 = vmatpush1.bf16.msra.mxu0 %v236
    %1279 = vmatprep.subr.bf16.mxu0 0
    %1280 = vmatpush2.bf16.msra.mxu0 0
    %1281 = vmatprep.subr.bf16.mxu0 0
    %1282 = vmatpush2.bf16.msra.mxu0 0
    %1283 = vmatprep.subr.bf16.mxu0 0
    %1284 = vmatpush2.bf16.msra.mxu0 0
    %1285 = vmatprep.subr.bf16.mxu0 0
    %1286 = vmatpush2.bf16.msra.mxu0 0
    %1287 = vmatprep.subr.bf16.mxu0 0
    %1288 = vmatpush2.bf16.msra.mxu0 0
    %1289 = vmatprep.subr.bf16.mxu0 0
    %1290 = vmatpush2.bf16.msra.mxu0 0
    %1291 = vmatprep.subr.bf16.mxu0 0
    %1292 = vmatpush2.bf16.msra.mxu0 0
    %1293 = vmatprep.subr.bf16.mxu0 0
    %1294 = vmatpush2.bf16.msra.mxu0 0
    %1295 = vmatprep.mubr.bf16.mxu0 0
    %1296 = vmatmul.mubr.bf16.gmra.mxu0 %v1220
    %v1297 = vpop.f32.mrf.mxu0
    %v1298 = vadd.f32 %v150, %v1297
    %v1299 = vpop.f32.mrf.mxu0
    %v1300 = vpop.f32.mrf.mxu0
    %v1301 = vpop.f32.mrf.mxu0
    %1302 = vdwg.mxu0
    %1303 = vmatprep.subr.bf16.mxu0 %v467
    %1304 = vmatpush1.bf16.msra.mxu0 %v466
    %1305 = vmatprep.subr.bf16.mxu0 %v464
    %1306 = vmatpush1.bf16.msra.mxu0 %v463
    %1307 = vmatprep.subr.bf16.mxu0 %v461
    %1308 = vmatpush1.bf16.msra.mxu0 %v460
    %1309 = vmatprep.subr.bf16.mxu0 %v458
    %1310 = vmatpush1.bf16.msra.mxu0 %v457
    %1311 = vmatprep.subr.bf16.mxu0 %v455
    %1312 = vmatpush1.bf16.msra.mxu0 %v454
    %1313 = vmatprep.subr.bf16.mxu0 %v452
    %1314 = vmatpush1.bf16.msra.mxu0 %v451
    %1315 = vmatprep.subr.bf16.mxu0 %v449
    %1316 = vmatpush1.bf16.msra.mxu0 %v448
    %1317 = vmatprep.subr.bf16.mxu0 %v446
    %1318 = vmatpush1.bf16.msra.mxu0 %v445
    %1319 = vmatprep.subr.bf16.mxu0 0
    %1320 = vmatpush2.bf16.msra.mxu0 0
    %1321 = vmatprep.subr.bf16.mxu0 0
    %1322 = vmatpush2.bf16.msra.mxu0 0
    %1323 = vmatprep.subr.bf16.mxu0 0
    %1324 = vmatpush2.bf16.msra.mxu0 0
    %1325 = vmatprep.subr.bf16.mxu0 0
    %1326 = vmatpush2.bf16.msra.mxu0 0
    %1327 = vmatprep.subr.bf16.mxu0 0
    %1328 = vmatpush2.bf16.msra.mxu0 0
    %1329 = vmatprep.subr.bf16.mxu0 0
    %1330 = vmatpush2.bf16.msra.mxu0 0
    %1331 = vmatprep.subr.bf16.mxu0 0
    %1332 = vmatpush2.bf16.msra.mxu0 0
    %1333 = vmatprep.subr.bf16.mxu0 0
    %1334 = vmatpush2.bf16.msra.mxu0 0
    %1335 = vmatprep.mubr.bf16.mxu0 0
    %1336 = vmatmul.mubr.bf16.gmra.mxu0 %v1220
    %v1337 = vpop.f32.mrf.mxu0
    %v1338 = vadd.f32 %v497, %v1337
    %v1339 = vpop.f32.mrf.mxu0
    %v1340 = vadd.f32 %v501, %v1339
    %v1341 = vpop.f32.mrf.mxu0
    %v1342 = vpop.f32.mrf.mxu0
    %1343 = vdwg.mxu0
    %1344 = vmatprep.subr.bf16.mxu0 0
    %1345 = vmatpush1.bf16.msra.mxu0 %v468
    %1346 = vmatprep.subr.bf16.mxu0 0
    %1347 = vmatpush1.bf16.msra.mxu0 %v465
    %1348 = vmatprep.subr.bf16.mxu0 0
    %1349 = vmatpush1.bf16.msra.mxu0 %v462
    %1350 = vmatprep.subr.bf16.mxu0 0
    %1351 = vmatpush1.bf16.msra.mxu0 %v459
    %1352 = vmatprep.subr.bf16.mxu0 0
    %1353 = vmatpush1.bf16.msra.mxu0 %v456
    %1354 = vmatprep.subr.bf16.mxu0 0
    %1355 = vmatpush1.bf16.msra.mxu0 %v453
    %1356 = vmatprep.subr.bf16.mxu0 0
    %1357 = vmatpush1.bf16.msra.mxu0 %v450
    %1358 = vmatprep.subr.bf16.mxu0 0
    %1359 = vmatpush1.bf16.msra.mxu0 %v447
    %1360 = vmatprep.subr.bf16.mxu0 0
    %1361 = vmatpush2.bf16.msra.mxu0 0
    %1362 = vmatprep.subr.bf16.mxu0 0
    %1363 = vmatpush2.bf16.msra.mxu0 0
    %1364 = vmatprep.subr.bf16.mxu0 0
    %1365 = vmatpush2.bf16.msra.mxu0 0
    %1366 = vmatprep.subr.bf16.mxu0 0
    %1367 = vmatpush2.bf16.msra.mxu0 0
    %1368 = vmatprep.subr.bf16.mxu0 0
    %1369 = vmatpush2.bf16.msra.mxu0 0
    %1370 = vmatprep.subr.bf16.mxu0 0
    %1371 = vmatpush2.bf16.msra.mxu0 0
    %1372 = vmatprep.subr.bf16.mxu0 0
    %1373 = vmatpush2.bf16.msra.mxu0 0
    %1374 = vmatprep.subr.bf16.mxu0 0
    %1375 = vmatpush2.bf16.msra.mxu0 0
    %1376 = vmatprep.mubr.bf16.mxu0 0
    %1377 = vmatmul.mubr.bf16.gmra.mxu0 %v1220
    %v1378 = vpop.f32.mrf.mxu0
    %v1379 = vadd.f32 %v505, %v1378
    %v1380 = vpop.f32.mrf.mxu0
    %v1381 = vpop.f32.mrf.mxu0
    %v1382 = vpop.f32.mrf.mxu0
    %1383 = vdwg.mxu0
    %v1384 = vadd.f32 %v1257, %v1338
    %v1385 = vxor.u32 %v1384, 2147483648
    %v1386 = vmul.f32 %v1385, 1.442695
    %v1387 = vpow.pop %v1386
    %v1388 = vadd.f32 %v1387, 1.0
    %v1389 = vrcp.pop %v1388
    %v1390 = vmul.f32 1.0, %v1389
    %v1391 = vadd.f32 %v1259, %v1340
    %v1392 = vxor.u32 %v1391, 2147483648
    %v1393 = vmul.f32 %v1392, 1.442695
    %v1394 = vpow.pop %v1393
    %v1395 = vadd.f32 %v1394, 1.0
    %v1396 = vrcp.pop %v1395
    %v1397 = vmul.f32 1.0, %v1396
    %v1398 = vmul.f32 %v1390, %v1379
    %v1399 = vadd.f32 %v1298, %v1398
    %v1400 = vtanh.pop %v1399
    %v1401 = vsub.f32 1.0, %v1397
    %v1402 = vmul.f32 %v1401, %v1400
    %v1404 = vrot.slane %v1217, 2
    %v1406 = vmul.f32 %v1397, %v1404
    %v1407 = vadd.f32 %v1402, %v1406
    %1408 = vst [vmem:[#allocation9 + $0x2] sm:$0x1] %v1407
    %v1409 = vpack.c.bf16 %v1407, %v1407
    %1410 = vmatprep.subr.bf16.mxu0 %v467
    %1411 = vmatpush1.bf16.msra.mxu0 %v466
    %1412 = vmatprep.subr.bf16.mxu0 %v464
    %1413 = vmatpush1.bf16.msra.mxu0 %v463
    %1414 = vmatprep.subr.bf16.mxu0 %v461
    %1415 = vmatpush1.bf16.msra.mxu0 %v460
    %1416 = vmatprep.subr.bf16.mxu0 %v458
    %1417 = vmatpush1.bf16.msra.mxu0 %v457
    %1418 = vmatprep.subr.bf16.mxu0 %v455
    %1419 = vmatpush1.bf16.msra.mxu0 %v454
    %1420 = vmatprep.subr.bf16.mxu0 %v452
    %1421 = vmatpush1.bf16.msra.mxu0 %v451
    %1422 = vmatprep.subr.bf16.mxu0 %v449
    %1423 = vmatpush1.bf16.msra.mxu0 %v448
    %1424 = vmatprep.subr.bf16.mxu0 %v446
    %1425 = vmatpush1.bf16.msra.mxu0 %v445
    %1426 = vmatprep.subr.bf16.mxu0 0
    %1427 = vmatpush2.bf16.msra.mxu0 0
    %1428 = vmatprep.subr.bf16.mxu0 0
    %1429 = vmatpush2.bf16.msra.mxu0 0
    %1430 = vmatprep.subr.bf16.mxu0 0
    %1431 = vmatpush2.bf16.msra.mxu0 0
    %1432 = vmatprep.subr.bf16.mxu0 0
    %1433 = vmatpush2.bf16.msra.mxu0 0
    %1434 = vmatprep.subr.bf16.mxu0 0
    %1435 = vmatpush2.bf16.msra.mxu0 0
    %1436 = vmatprep.subr.bf16.mxu0 0
    %1437 = vmatpush2.bf16.msra.mxu0 0
    %1438 = vmatprep.subr.bf16.mxu0 0
    %1439 = vmatpush2.bf16.msra.mxu0 0
    %1440 = vmatprep.subr.bf16.mxu0 0
    %1441 = vmatpush2.bf16.msra.mxu0 0
    %1442 = vmatprep.mubr.bf16.mxu0 0
    %1443 = vmatmul.mubr.bf16.gmra.mxu0 %v1409
    %v1444 = vpop.f32.mrf.mxu0
    %v1445 = vadd.f32 %v497, %v1444
    %v1446 = vpop.f32.mrf.mxu0
    %v1447 = vadd.f32 %v501, %v1446
    %v1448 = vpop.f32.mrf.mxu0
    %v1449 = vpop.f32.mrf.mxu0
    %1450 = vdwg.mxu0
    %1451 = vmatprep.subr.bf16.mxu0 0
    %1452 = vmatpush1.bf16.msra.mxu0 %v468
    %1453 = vmatprep.subr.bf16.mxu0 0
    %1454 = vmatpush1.bf16.msra.mxu0 %v465
    %1455 = vmatprep.subr.bf16.mxu0 0
    %1456 = vmatpush1.bf16.msra.mxu0 %v462
    %1457 = vmatprep.subr.bf16.mxu0 0
    %1458 = vmatpush1.bf16.msra.mxu0 %v459
    %1459 = vmatprep.subr.bf16.mxu0 0
    %1460 = vmatpush1.bf16.msra.mxu0 %v456
    %1461 = vmatprep.subr.bf16.mxu0 0
    %1462 = vmatpush1.bf16.msra.mxu0 %v453
    %1463 = vmatprep.subr.bf16.mxu0 0
    %1464 = vmatpush1.bf16.msra.mxu0 %v450
    %1465 = vmatprep.subr.bf16.mxu0 0
    %1466 = vmatpush1.bf16.msra.mxu0 %v447
    %1467 = vmatprep.subr.bf16.mxu0 0
    %1468 = vmatpush2.bf16.msra.mxu0 0
    %1469 = vmatprep.subr.bf16.mxu0 0
    %1470 = vmatpush2.bf16.msra.mxu0 0
    %1471 = vmatprep.subr.bf16.mxu0 0
    %1472 = vmatpush2.bf16.msra.mxu0 0
    %1473 = vmatprep.subr.bf16.mxu0 0
    %1474 = vmatpush2.bf16.msra.mxu0 0
    %1475 = vmatprep.subr.bf16.mxu0 0
    %1476 = vmatpush2.bf16.msra.mxu0 0
    %1477 = vmatprep.subr.bf16.mxu0 0
    %1478 = vmatpush2.bf16.msra.mxu0 0
    %1479 = vmatprep.subr.bf16.mxu0 0
    %1480 = vmatpush2.bf16.msra.mxu0 0
    %1481 = vmatprep.subr.bf16.mxu0 0
    %1482 = vmatpush2.bf16.msra.mxu0 0
    %1483 = vmatprep.mubr.bf16.mxu0 0
    %1484 = vmatmul.mubr.bf16.gmra.mxu0 %v1409
    %v1485 = vpop.f32.mrf.mxu0
    %v1486 = vadd.f32 %v505, %v1485
    %v1487 = vpop.f32.mrf.mxu0
    %v1488 = vpop.f32.mrf.mxu0
    %v1489 = vpop.f32.mrf.mxu0
    %1490 = vdwg.mxu0
    %v1492 = vrot.slane %v1445, 5
    %v1494 = vadd.f32 %v317, %v1492
    %v1495 = vxor.u32 %v1494, 2147483648
    %v1496 = vmul.f32 %v1495, 1.442695
    %v1497 = vpow.pop %v1496
    %v1498 = vadd.f32 %v1497, 1.0
    %v1499 = vrcp.pop %v1498
    %v1500 = vmul.f32 1.0, %v1499
    %v1502 = vrot.slane %v1447, 5
    %v1504 = vadd.f32 %v319, %v1502
    %v1505 = vxor.u32 %v1504, 2147483648
    %v1506 = vmul.f32 %v1505, 1.442695
    %v1507 = vpow.pop %v1506
    %v1508 = vadd.f32 %v1507, 1.0
    %v1509 = vrcp.pop %v1508
    %v1510 = vmul.f32 1.0, %v1509
    %v1512 = vrot.slane %v1486, 5
    %v1514 = vmul.f32 %v1500, %v1512
    %v1515 = vadd.f32 %v358, %v1514
    %v1516 = vtanh.pop %v1515
    %v1517 = vsub.f32 1.0, %v1510
    %v1518 = vmul.f32 %v1517, %v1516
    %v1520 = vrot.slane %v1407, 5
    %v1522 = vmul.f32 %v1510, %v1520
    %v1523 = vadd.f32 %v1518, %v1522
    %v1524 = vpack.c.bf16 %v1523, %v1523
    %v1526 = vshrl.u32 %v1524, 16
    %v1528 = vrot.slane %v1526, 1
    %1530 = vmatprep.subr.bf16.mxu0 %v256
    %1531 = vmatpush1.bf16.msra.mxu0 %v255
    %1532 = vmatprep.subr.bf16.mxu0 %v253
    %1533 = vmatpush1.bf16.msra.mxu0 %v252
    %1534 = vmatprep.subr.bf16.mxu0 %v250
    %1535 = vmatpush1.bf16.msra.mxu0 %v249
    %1536 = vmatprep.subr.bf16.mxu0 %v247
    %1537 = vmatpush1.bf16.msra.mxu0 %v246
    %1538 = vmatprep.subr.bf16.mxu0 %v244
    %1539 = vmatpush1.bf16.msra.mxu0 %v243
    %1540 = vmatprep.subr.bf16.mxu0 %v241
    %1541 = vmatpush1.bf16.msra.mxu0 %v240
    %1542 = vmatprep.subr.bf16.mxu0 %v238
    %1543 = vmatpush1.bf16.msra.mxu0 %v237
    %1544 = vmatprep.subr.bf16.mxu0 %v235
    %1545 = vmatpush1.bf16.msra.mxu0 %v234
    %1546 = vmatprep.subr.bf16.mxu0 0
    %1547 = vmatpush2.bf16.msra.mxu0 0
    %1548 = vmatprep.subr.bf16.mxu0 0
    %1549 = vmatpush2.bf16.msra.mxu0 0
    %1550 = vmatprep.subr.bf16.mxu0 0
    %1551 = vmatpush2.bf16.msra.mxu0 0
    %1552 = vmatprep.subr.bf16.mxu0 0
    %1553 = vmatpush2.bf16.msra.mxu0 0
    %1554 = vmatprep.subr.bf16.mxu0 0
    %1555 = vmatpush2.bf16.msra.mxu0 0
    %1556 = vmatprep.subr.bf16.mxu0 0
    %1557 = vmatpush2.bf16.msra.mxu0 0
    %1558 = vmatprep.subr.bf16.mxu0 0
    %1559 = vmatpush2.bf16.msra.mxu0 0
    %1560 = vmatprep.subr.bf16.mxu0 0
    %1561 = vmatpush2.bf16.msra.mxu0 0
    %1562 = vmatprep.mubr.bf16.mxu0 0
    %1563 = vmatmul.mubr.bf16.gmra.mxu0 %v1528
    %v1564 = vpop.f32.mrf.mxu0
    %v1565 = vadd.f32 %v142, %v1564
    %v1566 = vpop.f32.mrf.mxu0
    %v1567 = vadd.f32 %v146, %v1566
    %v1568 = vpop.f32.mrf.mxu0
    %v1569 = vpop.f32.mrf.mxu0
    %1570 = vdwg.mxu0
    %1571 = vmatprep.subr.bf16.mxu0 0
    %1572 = vmatpush1.bf16.msra.mxu0 %v257
    %1573 = vmatprep.subr.bf16.mxu0 0
    %1574 = vmatpush1.bf16.msra.mxu0 %v254
    %1575 = vmatprep.subr.bf16.mxu0 0
    %1576 = vmatpush1.bf16.msra.mxu0 %v251
    %1577 = vmatprep.subr.bf16.mxu0 0
    %1578 = vmatpush1.bf16.msra.mxu0 %v248
    %1579 = vmatprep.subr.bf16.mxu0 0
    %1580 = vmatpush1.bf16.msra.mxu0 %v245
    %1581 = vmatprep.subr.bf16.mxu0 0
    %1582 = vmatpush1.bf16.msra.mxu0 %v242
    %1583 = vmatprep.subr.bf16.mxu0 0
    %1584 = vmatpush1.bf16.msra.mxu0 %v239
    %1585 = vmatprep.subr.bf16.mxu0 0
    %1586 = vmatpush1.bf16.msra.mxu0 %v236
    %1587 = vmatprep.subr.bf16.mxu0 0
    %1588 = vmatpush2.bf16.msra.mxu0 0
    %1589 = vmatprep.subr.bf16.mxu0 0
    %1590 = vmatpush2.bf16.msra.mxu0 0
    %1591 = vmatprep.subr.bf16.mxu0 0
    %1592 = vmatpush2.bf16.msra.mxu0 0
    %1593 = vmatprep.subr.bf16.mxu0 0
    %1594 = vmatpush2.bf16.msra.mxu0 0
    %1595 = vmatprep.subr.bf16.mxu0 0
    %1596 = vmatpush2.bf16.msra.mxu0 0
    %1597 = vmatprep.subr.bf16.mxu0 0
    %1598 = vmatpush2.bf16.msra.mxu0 0
    %1599 = vmatprep.subr.bf16.mxu0 0
    %1600 = vmatpush2.bf16.msra.mxu0 0
    %1601 = vmatprep.subr.bf16.mxu0 0
    %1602 = vmatpush2.bf16.msra.mxu0 0
    %1603 = vmatprep.mubr.bf16.mxu0 0
    %1604 = vmatmul.mubr.bf16.gmra.mxu0 %v1528
    %v1605 = vpop.f32.mrf.mxu0
    %v1606 = vadd.f32 %v150, %v1605
    %v1607 = vpop.f32.mrf.mxu0
    %v1608 = vpop.f32.mrf.mxu0
    %v1609 = vpop.f32.mrf.mxu0
    %1610 = vdwg.mxu0
    %1611 = vmatprep.subr.bf16.mxu0 %v467
    %1612 = vmatpush1.bf16.msra.mxu0 %v466
    %1613 = vmatprep.subr.bf16.mxu0 %v464
    %1614 = vmatpush1.bf16.msra.mxu0 %v463
    %1615 = vmatprep.subr.bf16.mxu0 %v461
    %1616 = vmatpush1.bf16.msra.mxu0 %v460
    %1617 = vmatprep.subr.bf16.mxu0 %v458
    %1618 = vmatpush1.bf16.msra.mxu0 %v457
    %1619 = vmatprep.subr.bf16.mxu0 %v455
    %1620 = vmatpush1.bf16.msra.mxu0 %v454
    %1621 = vmatprep.subr.bf16.mxu0 %v452
    %1622 = vmatpush1.bf16.msra.mxu0 %v451
    %1623 = vmatprep.subr.bf16.mxu0 %v449
    %1624 = vmatpush1.bf16.msra.mxu0 %v448
    %1625 = vmatprep.subr.bf16.mxu0 %v446
    %1626 = vmatpush1.bf16.msra.mxu0 %v445
    %1627 = vmatprep.subr.bf16.mxu0 0
    %1628 = vmatpush2.bf16.msra.mxu0 0
    %1629 = vmatprep.subr.bf16.mxu0 0
    %1630 = vmatpush2.bf16.msra.mxu0 0
    %1631 = vmatprep.subr.bf16.mxu0 0
    %1632 = vmatpush2.bf16.msra.mxu0 0
    %1633 = vmatprep.subr.bf16.mxu0 0
    %1634 = vmatpush2.bf16.msra.mxu0 0
    %1635 = vmatprep.subr.bf16.mxu0 0
    %1636 = vmatpush2.bf16.msra.mxu0 0
    %1637 = vmatprep.subr.bf16.mxu0 0
    %1638 = vmatpush2.bf16.msra.mxu0 0
    %1639 = vmatprep.subr.bf16.mxu0 0
    %1640 = vmatpush2.bf16.msra.mxu0 0
    %1641 = vmatprep.subr.bf16.mxu0 0
    %1642 = vmatpush2.bf16.msra.mxu0 0
    %1643 = vmatprep.mubr.bf16.mxu0 0
    %1644 = vmatmul.mubr.bf16.gmra.mxu0 %v1528
    %v1645 = vpop.f32.mrf.mxu0
    %v1646 = vadd.f32 %v497, %v1645
    %v1647 = vpop.f32.mrf.mxu0
    %v1648 = vadd.f32 %v501, %v1647
    %v1649 = vpop.f32.mrf.mxu0
    %v1650 = vpop.f32.mrf.mxu0
    %1651 = vdwg.mxu0
    %1652 = vmatprep.subr.bf16.mxu0 0
    %1653 = vmatpush1.bf16.msra.mxu0 %v468
    %1654 = vmatprep.subr.bf16.mxu0 0
    %1655 = vmatpush1.bf16.msra.mxu0 %v465
    %1656 = vmatprep.subr.bf16.mxu0 0
    %1657 = vmatpush1.bf16.msra.mxu0 %v462
    %1658 = vmatprep.subr.bf16.mxu0 0
    %1659 = vmatpush1.bf16.msra.mxu0 %v459
    %1660 = vmatprep.subr.bf16.mxu0 0
    %1661 = vmatpush1.bf16.msra.mxu0 %v456
    %1662 = vmatprep.subr.bf16.mxu0 0
    %1663 = vmatpush1.bf16.msra.mxu0 %v453
    %1664 = vmatprep.subr.bf16.mxu0 0
    %1665 = vmatpush1.bf16.msra.mxu0 %v450
    %1666 = vmatprep.subr.bf16.mxu0 0
    %1667 = vmatpush1.bf16.msra.mxu0 %v447
    %1668 = vmatprep.subr.bf16.mxu0 0
    %1669 = vmatpush2.bf16.msra.mxu0 0
    %1670 = vmatprep.subr.bf16.mxu0 0
    %1671 = vmatpush2.bf16.msra.mxu0 0
    %1672 = vmatprep.subr.bf16.mxu0 0
    %1673 = vmatpush2.bf16.msra.mxu0 0
    %1674 = vmatprep.subr.bf16.mxu0 0
    %1675 = vmatpush2.bf16.msra.mxu0 0
    %1676 = vmatprep.subr.bf16.mxu0 0
    %1677 = vmatpush2.bf16.msra.mxu0 0
    %1678 = vmatprep.subr.bf16.mxu0 0
    %1679 = vmatpush2.bf16.msra.mxu0 0
    %1680 = vmatprep.subr.bf16.mxu0 0
    %1681 = vmatpush2.bf16.msra.mxu0 0
    %1682 = vmatprep.subr.bf16.mxu0 0
    %1683 = vmatpush2.bf16.msra.mxu0 0
    %1684 = vmatprep.mubr.bf16.mxu0 0
    %1685 = vmatmul.mubr.bf16.gmra.mxu0 %v1528
    %v1686 = vpop.f32.mrf.mxu0
    %v1687 = vadd.f32 %v505, %v1686
    %v1688 = vpop.f32.mrf.mxu0
    %v1689 = vpop.f32.mrf.mxu0
    %v1690 = vpop.f32.mrf.mxu0
    %1691 = vdwg.mxu0
    %v1692 = vadd.f32 %v1565, %v1646
    %v1693 = vxor.u32 %v1692, 2147483648
    %v1694 = vmul.f32 %v1693, 1.442695
    %v1695 = vpow.pop %v1694
    %v1696 = vadd.f32 %v1695, 1.0
    %v1697 = vrcp.pop %v1696
    %v1698 = vmul.f32 1.0, %v1697
    %v1699 = vadd.f32 %v1567, %v1648
    %v1700 = vxor.u32 %v1699, 2147483648
    %v1701 = vmul.f32 %v1700, 1.442695
    %v1702 = vpow.pop %v1701
    %v1703 = vadd.f32 %v1702, 1.0
    %v1704 = vrcp.pop %v1703
    %v1705 = vmul.f32 1.0, %v1704
    %v1706 = vmul.f32 %v1698, %v1687
    %v1707 = vadd.f32 %v1606, %v1706
    %v1708 = vtanh.pop %v1707
    %v1709 = vsub.f32 1.0, %v1705
    %v1710 = vmul.f32 %v1709, %v1708
    %v1712 = vrot.slane %v1523, 3
    %v1714 = vmul.f32 %v1705, %v1712
    %v1715 = vadd.f32 %v1710, %v1714
    %1716 = vst [vmem:[#allocation9 + $0x3] sm:$0x1] %v1715
    %v1717 = vpack.c.bf16 %v1715, %v1715
    %1718 = vmatprep.subr.bf16.mxu0 %v467
    %1719 = vmatpush1.bf16.msra.mxu0 %v466
    %1720 = vmatprep.subr.bf16.mxu0 %v464
    %1721 = vmatpush1.bf16.msra.mxu0 %v463
    %1722 = vmatprep.subr.bf16.mxu0 %v461
    %1723 = vmatpush1.bf16.msra.mxu0 %v460
    %1724 = vmatprep.subr.bf16.mxu0 %v458
    %1725 = vmatpush1.bf16.msra.mxu0 %v457
    %1726 = vmatprep.subr.bf16.mxu0 %v455
    %1727 = vmatpush1.bf16.msra.mxu0 %v454
    %1728 = vmatprep.subr.bf16.mxu0 %v452
    %1729 = vmatpush1.bf16.msra.mxu0 %v451
    %1730 = vmatprep.subr.bf16.mxu0 %v449
    %1731 = vmatpush1.bf16.msra.mxu0 %v448
    %1732 = vmatprep.subr.bf16.mxu0 %v446
    %1733 = vmatpush1.bf16.msra.mxu0 %v445
    %1734 = vmatprep.subr.bf16.mxu0 0
    %1735 = vmatpush2.bf16.msra.mxu0 0
    %1736 = vmatprep.subr.bf16.mxu0 0
    %1737 = vmatpush2.bf16.msra.mxu0 0
    %1738 = vmatprep.subr.bf16.mxu0 0
    %1739 = vmatpush2.bf16.msra.mxu0 0
    %1740 = vmatprep.subr.bf16.mxu0 0
    %1741 = vmatpush2.bf16.msra.mxu0 0
    %1742 = vmatprep.subr.bf16.mxu0 0
    %1743 = vmatpush2.bf16.msra.mxu0 0
    %1744 = vmatprep.subr.bf16.mxu0 0
    %1745 = vmatpush2.bf16.msra.mxu0 0
    %1746 = vmatprep.subr.bf16.mxu0 0
    %1747 = vmatpush2.bf16.msra.mxu0 0
    %1748 = vmatprep.subr.bf16.mxu0 0
    %1749 = vmatpush2.bf16.msra.mxu0 0
    %1750 = vmatprep.mubr.bf16.mxu0 0
    %1751 = vmatmul.mubr.bf16.gmra.mxu0 %v1717
    %v1752 = vpop.f32.mrf.mxu0
    %v1753 = vadd.f32 %v497, %v1752
    %v1754 = vpop.f32.mrf.mxu0
    %v1755 = vadd.f32 %v501, %v1754
    %v1756 = vpop.f32.mrf.mxu0
    %v1757 = vpop.f32.mrf.mxu0
    %1758 = vdwg.mxu0
    %1759 = vmatprep.subr.bf16.mxu0 0
    %1760 = vmatpush1.bf16.msra.mxu0 %v468
    %1761 = vmatprep.subr.bf16.mxu0 0
    %1762 = vmatpush1.bf16.msra.mxu0 %v465
    %1763 = vmatprep.subr.bf16.mxu0 0
    %1764 = vmatpush1.bf16.msra.mxu0 %v462
    %1765 = vmatprep.subr.bf16.mxu0 0
    %1766 = vmatpush1.bf16.msra.mxu0 %v459
    %1767 = vmatprep.subr.bf16.mxu0 0
    %1768 = vmatpush1.bf16.msra.mxu0 %v456
    %1769 = vmatprep.subr.bf16.mxu0 0
    %1770 = vmatpush1.bf16.msra.mxu0 %v453
    %1771 = vmatprep.subr.bf16.mxu0 0
    %1772 = vmatpush1.bf16.msra.mxu0 %v450
    %1773 = vmatprep.subr.bf16.mxu0 0
    %1774 = vmatpush1.bf16.msra.mxu0 %v447
    %1775 = vmatprep.subr.bf16.mxu0 0
    %1776 = vmatpush2.bf16.msra.mxu0 0
    %1777 = vmatprep.subr.bf16.mxu0 0
    %1778 = vmatpush2.bf16.msra.mxu0 0
    %1779 = vmatprep.subr.bf16.mxu0 0
    %1780 = vmatpush2.bf16.msra.mxu0 0
    %1781 = vmatprep.subr.bf16.mxu0 0
    %1782 = vmatpush2.bf16.msra.mxu0 0
    %1783 = vmatprep.subr.bf16.mxu0 0
    %1784 = vmatpush2.bf16.msra.mxu0 0
    %1785 = vmatprep.subr.bf16.mxu0 0
    %1786 = vmatpush2.bf16.msra.mxu0 0
    %1787 = vmatprep.subr.bf16.mxu0 0
    %1788 = vmatpush2.bf16.msra.mxu0 0
    %1789 = vmatprep.subr.bf16.mxu0 0
    %1790 = vmatpush2.bf16.msra.mxu0 0
    %1791 = vmatprep.mubr.bf16.mxu0 0
    %1792 = vmatmul.mubr.bf16.gmra.mxu0 %v1717
    %v1793 = vpop.f32.mrf.mxu0
    %v1794 = vadd.f32 %v505, %v1793
    %v1795 = vpop.f32.mrf.mxu0
    %v1796 = vpop.f32.mrf.mxu0
    %v1797 = vpop.f32.mrf.mxu0
    %1798 = vdwg.mxu0
    %v1800 = vrot.slane %v1753, 4
    %v1802 = vadd.f32 %v317, %v1800
    %v1803 = vxor.u32 %v1802, 2147483648
    %v1804 = vmul.f32 %v1803, 1.442695
    %v1805 = vpow.pop %v1804
    %v1806 = vadd.f32 %v1805, 1.0
    %v1807 = vrcp.pop %v1806
    %v1808 = vmul.f32 1.0, %v1807
    %v1810 = vrot.slane %v1755, 4
    %v1812 = vadd.f32 %v319, %v1810
    %v1813 = vxor.u32 %v1812, 2147483648
    %v1814 = vmul.f32 %v1813, 1.442695
    %v1815 = vpow.pop %v1814
    %v1816 = vadd.f32 %v1815, 1.0
    %v1817 = vrcp.pop %v1816
    %v1818 = vmul.f32 1.0, %v1817
    %v1820 = vrot.slane %v1794, 4
    %v1822 = vmul.f32 %v1808, %v1820
    %v1823 = vadd.f32 %v358, %v1822
    %v1824 = vtanh.pop %v1823
    %v1825 = vsub.f32 1.0, %v1818
    %v1826 = vmul.f32 %v1825, %v1824
    %v1828 = vrot.slane %v1715, 4
    %v1830 = vmul.f32 %v1818, %v1828
    %v1831 = vadd.f32 %v1826, %v1830
    %v1832 = vpack.c.bf16 %v1831, %v1831
    %v1834 = vrot.slane %v1832, 2
    %1836 = vmatprep.subr.bf16.mxu0 %v256
    %1837 = vmatpush1.bf16.msra.mxu0 %v255
    %1838 = vmatprep.subr.bf16.mxu0 %v253
    %1839 = vmatpush1.bf16.msra.mxu0 %v252
    %1840 = vmatprep.subr.bf16.mxu0 %v250
    %1841 = vmatpush1.bf16.msra.mxu0 %v249
    %1842 = vmatprep.subr.bf16.mxu0 %v247
    %1843 = vmatpush1.bf16.msra.mxu0 %v246
    %1844 = vmatprep.subr.bf16.mxu0 %v244
    %1845 = vmatpush1.bf16.msra.mxu0 %v243
    %1846 = vmatprep.subr.bf16.mxu0 %v241
    %1847 = vmatpush1.bf16.msra.mxu0 %v240
    %1848 = vmatprep.subr.bf16.mxu0 %v238
    %1849 = vmatpush1.bf16.msra.mxu0 %v237
    %1850 = vmatprep.subr.bf16.mxu0 %v235
    %1851 = vmatpush1.bf16.msra.mxu0 %v234
    %1852 = vmatprep.subr.bf16.mxu0 0
    %1853 = vmatpush2.bf16.msra.mxu0 0
    %1854 = vmatprep.subr.bf16.mxu0 0
    %1855 = vmatpush2.bf16.msra.mxu0 0
    %1856 = vmatprep.subr.bf16.mxu0 0
    %1857 = vmatpush2.bf16.msra.mxu0 0
    %1858 = vmatprep.subr.bf16.mxu0 0
    %1859 = vmatpush2.bf16.msra.mxu0 0
    %1860 = vmatprep.subr.bf16.mxu0 0
    %1861 = vmatpush2.bf16.msra.mxu0 0
    %1862 = vmatprep.subr.bf16.mxu0 0
    %1863 = vmatpush2.bf16.msra.mxu0 0
    %1864 = vmatprep.subr.bf16.mxu0 0
    %1865 = vmatpush2.bf16.msra.mxu0 0
    %1866 = vmatprep.subr.bf16.mxu0 0
    %1867 = vmatpush2.bf16.msra.mxu0 0
    %1868 = vmatprep.mubr.bf16.mxu0 0
    %1869 = vmatmul.mubr.bf16.gmra.mxu0 %v1834
    %v1870 = vpop.f32.mrf.mxu0
    %v1871 = vadd.f32 %v142, %v1870
    %v1872 = vpop.f32.mrf.mxu0
    %v1873 = vadd.f32 %v146, %v1872
    %v1874 = vpop.f32.mrf.mxu0
    %v1875 = vpop.f32.mrf.mxu0
    %1876 = vdwg.mxu0
    %1877 = vmatprep.subr.bf16.mxu0 0
    %1878 = vmatpush1.bf16.msra.mxu0 %v257
    %1879 = vmatprep.subr.bf16.mxu0 0
    %1880 = vmatpush1.bf16.msra.mxu0 %v254
    %1881 = vmatprep.subr.bf16.mxu0 0
    %1882 = vmatpush1.bf16.msra.mxu0 %v251
    %1883 = vmatprep.subr.bf16.mxu0 0
    %1884 = vmatpush1.bf16.msra.mxu0 %v248
    %1885 = vmatprep.subr.bf16.mxu0 0
    %1886 = vmatpush1.bf16.msra.mxu0 %v245
    %1887 = vmatprep.subr.bf16.mxu0 0
    %1888 = vmatpush1.bf16.msra.mxu0 %v242
    %1889 = vmatprep.subr.bf16.mxu0 0
    %1890 = vmatpush1.bf16.msra.mxu0 %v239
    %1891 = vmatprep.subr.bf16.mxu0 0
    %1892 = vmatpush1.bf16.msra.mxu0 %v236
    %1893 = vmatprep.subr.bf16.mxu0 0
    %1894 = vmatpush2.bf16.msra.mxu0 0
    %1895 = vmatprep.subr.bf16.mxu0 0
    %1896 = vmatpush2.bf16.msra.mxu0 0
    %1897 = vmatprep.subr.bf16.mxu0 0
    %1898 = vmatpush2.bf16.msra.mxu0 0
    %1899 = vmatprep.subr.bf16.mxu0 0
    %1900 = vmatpush2.bf16.msra.mxu0 0
    %1901 = vmatprep.subr.bf16.mxu0 0
    %1902 = vmatpush2.bf16.msra.mxu0 0
    %1903 = vmatprep.subr.bf16.mxu0 0
    %1904 = vmatpush2.bf16.msra.mxu0 0
    %1905 = vmatprep.subr.bf16.mxu0 0
    %1906 = vmatpush2.bf16.msra.mxu0 0
    %1907 = vmatprep.subr.bf16.mxu0 0
    %1908 = vmatpush2.bf16.msra.mxu0 0
    %1909 = vmatprep.mubr.bf16.mxu0 0
    %1910 = vmatmul.mubr.bf16.gmra.mxu0 %v1834
    %v1911 = vpop.f32.mrf.mxu0
    %v1912 = vadd.f32 %v150, %v1911
    %v1913 = vpop.f32.mrf.mxu0
    %v1914 = vpop.f32.mrf.mxu0
    %v1915 = vpop.f32.mrf.mxu0
    %1916 = vdwg.mxu0
    %1917 = vmatprep.subr.bf16.mxu0 %v467
    %1918 = vmatpush1.bf16.msra.mxu0 %v466
    %1919 = vmatprep.subr.bf16.mxu0 %v464
    %1920 = vmatpush1.bf16.msra.mxu0 %v463
    %1921 = vmatprep.subr.bf16.mxu0 %v461
    %1922 = vmatpush1.bf16.msra.mxu0 %v460
    %1923 = vmatprep.subr.bf16.mxu0 %v458
    %1924 = vmatpush1.bf16.msra.mxu0 %v457
    %1925 = vmatprep.subr.bf16.mxu0 %v455
    %1926 = vmatpush1.bf16.msra.mxu0 %v454
    %1927 = vmatprep.subr.bf16.mxu0 %v452
    %1928 = vmatpush1.bf16.msra.mxu0 %v451
    %1929 = vmatprep.subr.bf16.mxu0 %v449
    %1930 = vmatpush1.bf16.msra.mxu0 %v448
    %1931 = vmatprep.subr.bf16.mxu0 %v446
    %1932 = vmatpush1.bf16.msra.mxu0 %v445
    %1933 = vmatprep.subr.bf16.mxu0 0
    %1934 = vmatpush2.bf16.msra.mxu0 0
    %1935 = vmatprep.subr.bf16.mxu0 0
    %1936 = vmatpush2.bf16.msra.mxu0 0
    %1937 = vmatprep.subr.bf16.mxu0 0
    %1938 = vmatpush2.bf16.msra.mxu0 0
    %1939 = vmatprep.subr.bf16.mxu0 0
    %1940 = vmatpush2.bf16.msra.mxu0 0
    %1941 = vmatprep.subr.bf16.mxu0 0
    %1942 = vmatpush2.bf16.msra.mxu0 0
    %1943 = vmatprep.subr.bf16.mxu0 0
    %1944 = vmatpush2.bf16.msra.mxu0 0
    %1945 = vmatprep.subr.bf16.mxu0 0
    %1946 = vmatpush2.bf16.msra.mxu0 0
    %1947 = vmatprep.subr.bf16.mxu0 0
    %1948 = vmatpush2.bf16.msra.mxu0 0
    %1949 = vmatprep.mubr.bf16.mxu0 0
    %1950 = vmatmul.mubr.bf16.gmra.mxu0 %v1834
    %v1951 = vpop.f32.mrf.mxu0
    %v1952 = vadd.f32 %v497, %v1951
    %v1953 = vpop.f32.mrf.mxu0
    %v1954 = vadd.f32 %v501, %v1953
    %v1955 = vpop.f32.mrf.mxu0
    %v1956 = vpop.f32.mrf.mxu0
    %1957 = vdwg.mxu0
    %1958 = vmatprep.subr.bf16.mxu0 0
    %1959 = vmatpush1.bf16.msra.mxu0 %v468
    %1960 = vmatprep.subr.bf16.mxu0 0
    %1961 = vmatpush1.bf16.msra.mxu0 %v465
    %1962 = vmatprep.subr.bf16.mxu0 0
    %1963 = vmatpush1.bf16.msra.mxu0 %v462
    %1964 = vmatprep.subr.bf16.mxu0 0
    %1965 = vmatpush1.bf16.msra.mxu0 %v459
    %1966 = vmatprep.subr.bf16.mxu0 0
    %1967 = vmatpush1.bf16.msra.mxu0 %v456
    %1968 = vmatprep.subr.bf16.mxu0 0
    %1969 = vmatpush1.bf16.msra.mxu0 %v453
    %1970 = vmatprep.subr.bf16.mxu0 0
    %1971 = vmatpush1.bf16.msra.mxu0 %v450
    %1972 = vmatprep.subr.bf16.mxu0 0
    %1973 = vmatpush1.bf16.msra.mxu0 %v447
    %1974 = vmatprep.subr.bf16.mxu0 0
    %1975 = vmatpush2.bf16.msra.mxu0 0
    %1976 = vmatprep.subr.bf16.mxu0 0
    %1977 = vmatpush2.bf16.msra.mxu0 0
    %1978 = vmatprep.subr.bf16.mxu0 0
    %1979 = vmatpush2.bf16.msra.mxu0 0
    %1980 = vmatprep.subr.bf16.mxu0 0
    %1981 = vmatpush2.bf16.msra.mxu0 0
    %1982 = vmatprep.subr.bf16.mxu0 0
    %1983 = vmatpush2.bf16.msra.mxu0 0
    %1984 = vmatprep.subr.bf16.mxu0 0
    %1985 = vmatpush2.bf16.msra.mxu0 0
    %1986 = vmatprep.subr.bf16.mxu0 0
    %1987 = vmatpush2.bf16.msra.mxu0 0
    %1988 = vmatprep.subr.bf16.mxu0 0
    %1989 = vmatpush2.bf16.msra.mxu0 0
    %1990 = vmatprep.mubr.bf16.mxu0 0
    %1991 = vmatmul.mubr.bf16.gmra.mxu0 %v1834
    %v1992 = vpop.f32.mrf.mxu0
    %v1993 = vadd.f32 %v505, %v1992
    %v1994 = vpop.f32.mrf.mxu0
    %v1995 = vpop.f32.mrf.mxu0
    %v1996 = vpop.f32.mrf.mxu0
    %1997 = vdwg.mxu0
    %v1998 = vadd.f32 %v1871, %v1952
    %v1999 = vxor.u32 %v1998, 2147483648
    %v2000 = vmul.f32 %v1999, 1.442695
    %v2001 = vpow.pop %v2000
    %v2002 = vadd.f32 %v2001, 1.0
    %v2003 = vrcp.pop %v2002
    %v2004 = vmul.f32 1.0, %v2003
    %v2005 = vadd.f32 %v1873, %v1954
    %v2006 = vxor.u32 %v2005, 2147483648
    %v2007 = vmul.f32 %v2006, 1.442695
    %v2008 = vpow.pop %v2007
    %v2009 = vadd.f32 %v2008, 1.0
    %v2010 = vrcp.pop %v2009
    %v2011 = vmul.f32 1.0, %v2010
    %v2012 = vmul.f32 %v2004, %v1993
    %v2013 = vadd.f32 %v1912, %v2012
    %v2014 = vtanh.pop %v2013
    %v2015 = vsub.f32 1.0, %v2011
    %v2016 = vmul.f32 %v2015, %v2014
    %v2018 = vrot.slane %v1831, 4
    %v2020 = vmul.f32 %v2011, %v2018
    %v2021 = vadd.f32 %v2016, %v2020
    %2022 = vst [vmem:[#allocation9 + $0x4] sm:$0x1] %v2021
    %v2023 = vpack.c.bf16 %v2021, %v2021
    %2024 = vmatprep.subr.bf16.mxu0 %v467
    %2025 = vmatpush1.bf16.msra.mxu0 %v466
    %2026 = vmatprep.subr.bf16.mxu0 %v464
    %2027 = vmatpush1.bf16.msra.mxu0 %v463
    %2028 = vmatprep.subr.bf16.mxu0 %v461
    %2029 = vmatpush1.bf16.msra.mxu0 %v460
    %2030 = vmatprep.subr.bf16.mxu0 %v458
    %2031 = vmatpush1.bf16.msra.mxu0 %v457
    %2032 = vmatprep.subr.bf16.mxu0 %v455
    %2033 = vmatpush1.bf16.msra.mxu0 %v454
    %2034 = vmatprep.subr.bf16.mxu0 %v452
    %2035 = vmatpush1.bf16.msra.mxu0 %v451
    %2036 = vmatprep.subr.bf16.mxu0 %v449
    %2037 = vmatpush1.bf16.msra.mxu0 %v448
    %2038 = vmatprep.subr.bf16.mxu0 %v446
    %2039 = vmatpush1.bf16.msra.mxu0 %v445
    %2040 = vmatprep.subr.bf16.mxu0 0
    %2041 = vmatpush2.bf16.msra.mxu0 0
    %2042 = vmatprep.subr.bf16.mxu0 0
    %2043 = vmatpush2.bf16.msra.mxu0 0
    %2044 = vmatprep.subr.bf16.mxu0 0
    %2045 = vmatpush2.bf16.msra.mxu0 0
    %2046 = vmatprep.subr.bf16.mxu0 0
    %2047 = vmatpush2.bf16.msra.mxu0 0
    %2048 = vmatprep.subr.bf16.mxu0 0
    %2049 = vmatpush2.bf16.msra.mxu0 0
    %2050 = vmatprep.subr.bf16.mxu0 0
    %2051 = vmatpush2.bf16.msra.mxu0 0
    %2052 = vmatprep.subr.bf16.mxu0 0
    %2053 = vmatpush2.bf16.msra.mxu0 0
    %2054 = vmatprep.subr.bf16.mxu0 0
    %2055 = vmatpush2.bf16.msra.mxu0 0
    %2056 = vmatprep.mubr.bf16.mxu0 0
    %2057 = vmatmul.mubr.bf16.gmra.mxu0 %v2023
    %v2058 = vpop.f32.mrf.mxu0
    %v2059 = vadd.f32 %v497, %v2058
    %v2060 = vpop.f32.mrf.mxu0
    %v2061 = vadd.f32 %v501, %v2060
    %v2062 = vpop.f32.mrf.mxu0
    %v2063 = vpop.f32.mrf.mxu0
    %2064 = vdwg.mxu0
    %2065 = vmatprep.subr.bf16.mxu0 0
    %2066 = vmatpush1.bf16.msra.mxu0 %v468
    %2067 = vmatprep.subr.bf16.mxu0 0
    %2068 = vmatpush1.bf16.msra.mxu0 %v465
    %2069 = vmatprep.subr.bf16.mxu0 0
    %2070 = vmatpush1.bf16.msra.mxu0 %v462
    %2071 = vmatprep.subr.bf16.mxu0 0
    %2072 = vmatpush1.bf16.msra.mxu0 %v459
    %2073 = vmatprep.subr.bf16.mxu0 0
    %2074 = vmatpush1.bf16.msra.mxu0 %v456
    %2075 = vmatprep.subr.bf16.mxu0 0
    %2076 = vmatpush1.bf16.msra.mxu0 %v453
    %2077 = vmatprep.subr.bf16.mxu0 0
    %2078 = vmatpush1.bf16.msra.mxu0 %v450
    %2079 = vmatprep.subr.bf16.mxu0 0
    %2080 = vmatpush1.bf16.msra.mxu0 %v447
    %2081 = vmatprep.subr.bf16.mxu0 0
    %2082 = vmatpush2.bf16.msra.mxu0 0
    %2083 = vmatprep.subr.bf16.mxu0 0
    %2084 = vmatpush2.bf16.msra.mxu0 0
    %2085 = vmatprep.subr.bf16.mxu0 0
    %2086 = vmatpush2.bf16.msra.mxu0 0
    %2087 = vmatprep.subr.bf16.mxu0 0
    %2088 = vmatpush2.bf16.msra.mxu0 0
    %2089 = vmatprep.subr.bf16.mxu0 0
    %2090 = vmatpush2.bf16.msra.mxu0 0
    %2091 = vmatprep.subr.bf16.mxu0 0
    %2092 = vmatpush2.bf16.msra.mxu0 0
    %2093 = vmatprep.subr.bf16.mxu0 0
    %2094 = vmatpush2.bf16.msra.mxu0 0
    %2095 = vmatprep.subr.bf16.mxu0 0
    %2096 = vmatpush2.bf16.msra.mxu0 0
    %2097 = vmatprep.mubr.bf16.mxu0 0
    %2098 = vmatmul.mubr.bf16.gmra.mxu0 %v2023
    %v2099 = vpop.f32.mrf.mxu0
    %v2100 = vadd.f32 %v505, %v2099
    %v2101 = vpop.f32.mrf.mxu0
    %v2102 = vpop.f32.mrf.mxu0
    %v2103 = vpop.f32.mrf.mxu0
    %2104 = vdwg.mxu0
    %v2106 = vrot.slane %v2059, 3
    %v2108 = vadd.f32 %v317, %v2106
    %v2109 = vxor.u32 %v2108, 2147483648
    %v2110 = vmul.f32 %v2109, 1.442695
    %v2111 = vpow.pop %v2110
    %v2112 = vadd.f32 %v2111, 1.0
    %v2113 = vrcp.pop %v2112
    %v2114 = vmul.f32 1.0, %v2113
    %v2116 = vrot.slane %v2061, 3
    %v2118 = vadd.f32 %v319, %v2116
    %v2119 = vxor.u32 %v2118, 2147483648
    %v2120 = vmul.f32 %v2119, 1.442695
    %v2121 = vpow.pop %v2120
    %v2122 = vadd.f32 %v2121, 1.0
    %v2123 = vrcp.pop %v2122
    %v2124 = vmul.f32 1.0, %v2123
    %v2126 = vrot.slane %v2100, 3
    %v2128 = vmul.f32 %v2114, %v2126
    %v2129 = vadd.f32 %v358, %v2128
    %v2130 = vtanh.pop %v2129
    %v2131 = vsub.f32 1.0, %v2124
    %v2132 = vmul.f32 %v2131, %v2130
    %v2134 = vrot.slane %v2021, 3
    %v2136 = vmul.f32 %v2124, %v2134
    %v2137 = vadd.f32 %v2132, %v2136
    %v2138 = vpack.c.bf16 %v2137, %v2137
    %v2140 = vshrl.u32 %v2138, 16
    %v2142 = vrot.slane %v2140, 2
    %2144 = vmatprep.subr.bf16.mxu0 %v256
    %2145 = vmatpush1.bf16.msra.mxu0 %v255
    %2146 = vmatprep.subr.bf16.mxu0 %v253
    %2147 = vmatpush1.bf16.msra.mxu0 %v252
    %2148 = vmatprep.subr.bf16.mxu0 %v250
    %2149 = vmatpush1.bf16.msra.mxu0 %v249
    %2150 = vmatprep.subr.bf16.mxu0 %v247
    %2151 = vmatpush1.bf16.msra.mxu0 %v246
    %2152 = vmatprep.subr.bf16.mxu0 %v244
    %2153 = vmatpush1.bf16.msra.mxu0 %v243
    %2154 = vmatprep.subr.bf16.mxu0 %v241
    %2155 = vmatpush1.bf16.msra.mxu0 %v240
    %2156 = vmatprep.subr.bf16.mxu0 %v238
    %2157 = vmatpush1.bf16.msra.mxu0 %v237
    %2158 = vmatprep.subr.bf16.mxu0 %v235
    %2159 = vmatpush1.bf16.msra.mxu0 %v234
    %2160 = vmatprep.subr.bf16.mxu0 0
    %2161 = vmatpush2.bf16.msra.mxu0 0
    %2162 = vmatprep.subr.bf16.mxu0 0
    %2163 = vmatpush2.bf16.msra.mxu0 0
    %2164 = vmatprep.subr.bf16.mxu0 0
    %2165 = vmatpush2.bf16.msra.mxu0 0
    %2166 = vmatprep.subr.bf16.mxu0 0
    %2167 = vmatpush2.bf16.msra.mxu0 0
    %2168 = vmatprep.subr.bf16.mxu0 0
    %2169 = vmatpush2.bf16.msra.mxu0 0
    %2170 = vmatprep.subr.bf16.mxu0 0
    %2171 = vmatpush2.bf16.msra.mxu0 0
    %2172 = vmatprep.subr.bf16.mxu0 0
    %2173 = vmatpush2.bf16.msra.mxu0 0
    %2174 = vmatprep.subr.bf16.mxu0 0
    %2175 = vmatpush2.bf16.msra.mxu0 0
    %2176 = vmatprep.mubr.bf16.mxu0 0
    %2177 = vmatmul.mubr.bf16.gmra.mxu0 %v2142
    %v2178 = vpop.f32.mrf.mxu0
    %v2179 = vadd.f32 %v142, %v2178
    %v2180 = vpop.f32.mrf.mxu0
    %v2181 = vadd.f32 %v146, %v2180
    %v2182 = vpop.f32.mrf.mxu0
    %v2183 = vpop.f32.mrf.mxu0
    %2184 = vdwg.mxu0
    %2185 = vmatprep.subr.bf16.mxu0 0
    %2186 = vmatpush1.bf16.msra.mxu0 %v257
    %2187 = vmatprep.subr.bf16.mxu0 0
    %2188 = vmatpush1.bf16.msra.mxu0 %v254
    %2189 = vmatprep.subr.bf16.mxu0 0
    %2190 = vmatpush1.bf16.msra.mxu0 %v251
    %2191 = vmatprep.subr.bf16.mxu0 0
    %2192 = vmatpush1.bf16.msra.mxu0 %v248
    %2193 = vmatprep.subr.bf16.mxu0 0
    %2194 = vmatpush1.bf16.msra.mxu0 %v245
    %2195 = vmatprep.subr.bf16.mxu0 0
    %2196 = vmatpush1.bf16.msra.mxu0 %v242
    %2197 = vmatprep.subr.bf16.mxu0 0
    %2198 = vmatpush1.bf16.msra.mxu0 %v239
    %2199 = vmatprep.subr.bf16.mxu0 0
    %2200 = vmatpush1.bf16.msra.mxu0 %v236
    %2201 = vmatprep.subr.bf16.mxu0 0
    %2202 = vmatpush2.bf16.msra.mxu0 0
    %2203 = vmatprep.subr.bf16.mxu0 0
    %2204 = vmatpush2.bf16.msra.mxu0 0
    %2205 = vmatprep.subr.bf16.mxu0 0
    %2206 = vmatpush2.bf16.msra.mxu0 0
    %2207 = vmatprep.subr.bf16.mxu0 0
    %2208 = vmatpush2.bf16.msra.mxu0 0
    %2209 = vmatprep.subr.bf16.mxu0 0
    %2210 = vmatpush2.bf16.msra.mxu0 0
    %2211 = vmatprep.subr.bf16.mxu0 0
    %2212 = vmatpush2.bf16.msra.mxu0 0
    %2213 = vmatprep.subr.bf16.mxu0 0
    %2214 = vmatpush2.bf16.msra.mxu0 0
    %2215 = vmatprep.subr.bf16.mxu0 0
    %2216 = vmatpush2.bf16.msra.mxu0 0
    %2217 = vmatprep.mubr.bf16.mxu0 0
    %2218 = vmatmul.mubr.bf16.gmra.mxu0 %v2142
    %v2219 = vpop.f32.mrf.mxu0
    %v2220 = vadd.f32 %v150, %v2219
    %v2221 = vpop.f32.mrf.mxu0
    %v2222 = vpop.f32.mrf.mxu0
    %v2223 = vpop.f32.mrf.mxu0
    %2224 = vdwg.mxu0
    %2225 = vmatprep.subr.bf16.mxu0 %v467
    %2226 = vmatpush1.bf16.msra.mxu0 %v466
    %2227 = vmatprep.subr.bf16.mxu0 %v464
    %2228 = vmatpush1.bf16.msra.mxu0 %v463
    %2229 = vmatprep.subr.bf16.mxu0 %v461
    %2230 = vmatpush1.bf16.msra.mxu0 %v460
    %2231 = vmatprep.subr.bf16.mxu0 %v458
    %2232 = vmatpush1.bf16.msra.mxu0 %v457
    %2233 = vmatprep.subr.bf16.mxu0 %v455
    %2234 = vmatpush1.bf16.msra.mxu0 %v454
    %2235 = vmatprep.subr.bf16.mxu0 %v452
    %2236 = vmatpush1.bf16.msra.mxu0 %v451
    %2237 = vmatprep.subr.bf16.mxu0 %v449
    %2238 = vmatpush1.bf16.msra.mxu0 %v448
    %2239 = vmatprep.subr.bf16.mxu0 %v446
    %2240 = vmatpush1.bf16.msra.mxu0 %v445
    %2241 = vmatprep.subr.bf16.mxu0 0
    %2242 = vmatpush2.bf16.msra.mxu0 0
    %2243 = vmatprep.subr.bf16.mxu0 0
    %2244 = vmatpush2.bf16.msra.mxu0 0
    %2245 = vmatprep.subr.bf16.mxu0 0
    %2246 = vmatpush2.bf16.msra.mxu0 0
    %2247 = vmatprep.subr.bf16.mxu0 0
    %2248 = vmatpush2.bf16.msra.mxu0 0
    %2249 = vmatprep.subr.bf16.mxu0 0
    %2250 = vmatpush2.bf16.msra.mxu0 0
    %2251 = vmatprep.subr.bf16.mxu0 0
    %2252 = vmatpush2.bf16.msra.mxu0 0
    %2253 = vmatprep.subr.bf16.mxu0 0
    %2254 = vmatpush2.bf16.msra.mxu0 0
    %2255 = vmatprep.subr.bf16.mxu0 0
    %2256 = vmatpush2.bf16.msra.mxu0 0
    %2257 = vmatprep.mubr.bf16.mxu0 0
    %2258 = vmatmul.mubr.bf16.gmra.mxu0 %v2142
    %v2259 = vpop.f32.mrf.mxu0
    %v2260 = vadd.f32 %v497, %v2259
    %v2261 = vpop.f32.mrf.mxu0
    %v2262 = vadd.f32 %v501, %v2261
    %v2263 = vpop.f32.mrf.mxu0
    %v2264 = vpop.f32.mrf.mxu0
    %2265 = vdwg.mxu0
    %2266 = vmatprep.subr.bf16.mxu0 0
    %2267 = vmatpush1.bf16.msra.mxu0 %v468
    %2268 = vmatprep.subr.bf16.mxu0 0
    %2269 = vmatpush1.bf16.msra.mxu0 %v465
    %2270 = vmatprep.subr.bf16.mxu0 0
    %2271 = vmatpush1.bf16.msra.mxu0 %v462
    %2272 = vmatprep.subr.bf16.mxu0 0
    %2273 = vmatpush1.bf16.msra.mxu0 %v459
    %2274 = vmatprep.subr.bf16.mxu0 0
    %2275 = vmatpush1.bf16.msra.mxu0 %v456
    %2276 = vmatprep.subr.bf16.mxu0 0
    %2277 = vmatpush1.bf16.msra.mxu0 %v453
    %2278 = vmatprep.subr.bf16.mxu0 0
    %2279 = vmatpush1.bf16.msra.mxu0 %v450
    %2280 = vmatprep.subr.bf16.mxu0 0
    %2281 = vmatpush1.bf16.msra.mxu0 %v447
    %2282 = vmatprep.subr.bf16.mxu0 0
    %2283 = vmatpush2.bf16.msra.mxu0 0
    %2284 = vmatprep.subr.bf16.mxu0 0
    %2285 = vmatpush2.bf16.msra.mxu0 0
    %2286 = vmatprep.subr.bf16.mxu0 0
    %2287 = vmatpush2.bf16.msra.mxu0 0
    %2288 = vmatprep.subr.bf16.mxu0 0
    %2289 = vmatpush2.bf16.msra.mxu0 0
    %2290 = vmatprep.subr.bf16.mxu0 0
    %2291 = vmatpush2.bf16.msra.mxu0 0
    %2292 = vmatprep.subr.bf16.mxu0 0
    %2293 = vmatpush2.bf16.msra.mxu0 0
    %2294 = vmatprep.subr.bf16.mxu0 0
    %2295 = vmatpush2.bf16.msra.mxu0 0
    %2296 = vmatprep.subr.bf16.mxu0 0
    %2297 = vmatpush2.bf16.msra.mxu0 0
    %2298 = vmatprep.mubr.bf16.mxu0 0
    %2299 = vmatmul.mubr.bf16.gmra.mxu0 %v2142
    %v2300 = vpop.f32.mrf.mxu0
    %v2301 = vadd.f32 %v505, %v2300
    %v2302 = vpop.f32.mrf.mxu0
    %v2303 = vpop.f32.mrf.mxu0
    %v2304 = vpop.f32.mrf.mxu0
    %2305 = vdwg.mxu0
    %v2306 = vadd.f32 %v2179, %v2260
    %v2307 = vxor.u32 %v2306, 2147483648
    %v2308 = vmul.f32 %v2307, 1.442695
    %v2309 = vpow.pop %v2308
    %v2310 = vadd.f32 %v2309, 1.0
    %v2311 = vrcp.pop %v2310
    %v2312 = vmul.f32 1.0, %v2311
    %v2313 = vadd.f32 %v2181, %v2262
    %v2314 = vxor.u32 %v2313, 2147483648
    %v2315 = vmul.f32 %v2314, 1.442695
    %v2316 = vpow.pop %v2315
    %v2317 = vadd.f32 %v2316, 1.0
    %v2318 = vrcp.pop %v2317
    %v2319 = vmul.f32 1.0, %v2318
    %v2320 = vmul.f32 %v2312, %v2301
    %v2321 = vadd.f32 %v2220, %v2320
    %v2322 = vtanh.pop %v2321
    %v2323 = vsub.f32 1.0, %v2319
    %v2324 = vmul.f32 %v2323, %v2322
    %v2326 = vrot.slane %v2137, 5
    %v2328 = vmul.f32 %v2319, %v2326
    %v2329 = vadd.f32 %v2324, %v2328
    %2330 = vst [vmem:[#allocation9 + $0x5] sm:$0x1] %v2329
    %v2331 = vpack.c.bf16 %v2329, %v2329
    %2332 = vmatprep.subr.bf16.mxu0 %v467
    %2333 = vmatpush1.bf16.msra.mxu0 %v466
    %2334 = vmatprep.subr.bf16.mxu0 %v464
    %2335 = vmatpush1.bf16.msra.mxu0 %v463
    %2336 = vmatprep.subr.bf16.mxu0 %v461
    %2337 = vmatpush1.bf16.msra.mxu0 %v460
    %2338 = vmatprep.subr.bf16.mxu0 %v458
    %2339 = vmatpush1.bf16.msra.mxu0 %v457
    %2340 = vmatprep.subr.bf16.mxu0 %v455
    %2341 = vmatpush1.bf16.msra.mxu0 %v454
    %2342 = vmatprep.subr.bf16.mxu0 %v452
    %2343 = vmatpush1.bf16.msra.mxu0 %v451
    %2344 = vmatprep.subr.bf16.mxu0 %v449
    %2345 = vmatpush1.bf16.msra.mxu0 %v448
    %2346 = vmatprep.subr.bf16.mxu0 %v446
    %2347 = vmatpush1.bf16.msra.mxu0 %v445
    %2348 = vmatprep.subr.bf16.mxu0 0
    %2349 = vmatpush2.bf16.msra.mxu0 0
    %2350 = vmatprep.subr.bf16.mxu0 0
    %2351 = vmatpush2.bf16.msra.mxu0 0
    %2352 = vmatprep.subr.bf16.mxu0 0
    %2353 = vmatpush2.bf16.msra.mxu0 0
    %2354 = vmatprep.subr.bf16.mxu0 0
    %2355 = vmatpush2.bf16.msra.mxu0 0
    %2356 = vmatprep.subr.bf16.mxu0 0
    %2357 = vmatpush2.bf16.msra.mxu0 0
    %2358 = vmatprep.subr.bf16.mxu0 0
    %2359 = vmatpush2.bf16.msra.mxu0 0
    %2360 = vmatprep.subr.bf16.mxu0 0
    %2361 = vmatpush2.bf16.msra.mxu0 0
    %2362 = vmatprep.subr.bf16.mxu0 0
    %2363 = vmatpush2.bf16.msra.mxu0 0
    %2364 = vmatprep.mubr.bf16.mxu0 0
    %2365 = vmatmul.mubr.bf16.gmra.mxu0 %v2331
    %v2366 = vpop.f32.mrf.mxu0
    %v2367 = vadd.f32 %v497, %v2366
    %v2368 = vpop.f32.mrf.mxu0
    %v2369 = vadd.f32 %v501, %v2368
    %v2370 = vpop.f32.mrf.mxu0
    %v2371 = vpop.f32.mrf.mxu0
    %2372 = vdwg.mxu0
    %2373 = vmatprep.subr.bf16.mxu0 0
    %2374 = vmatpush1.bf16.msra.mxu0 %v468
    %2375 = vmatprep.subr.bf16.mxu0 0
    %2376 = vmatpush1.bf16.msra.mxu0 %v465
    %2377 = vmatprep.subr.bf16.mxu0 0
    %2378 = vmatpush1.bf16.msra.mxu0 %v462
    %2379 = vmatprep.subr.bf16.mxu0 0
    %2380 = vmatpush1.bf16.msra.mxu0 %v459
    %2381 = vmatprep.subr.bf16.mxu0 0
    %2382 = vmatpush1.bf16.msra.mxu0 %v456
    %2383 = vmatprep.subr.bf16.mxu0 0
    %2384 = vmatpush1.bf16.msra.mxu0 %v453
    %2385 = vmatprep.subr.bf16.mxu0 0
    %2386 = vmatpush1.bf16.msra.mxu0 %v450
    %2387 = vmatprep.subr.bf16.mxu0 0
    %2388 = vmatpush1.bf16.msra.mxu0 %v447
    %2389 = vmatprep.subr.bf16.mxu0 0
    %2390 = vmatpush2.bf16.msra.mxu0 0
    %2391 = vmatprep.subr.bf16.mxu0 0
    %2392 = vmatpush2.bf16.msra.mxu0 0
    %2393 = vmatprep.subr.bf16.mxu0 0
    %2394 = vmatpush2.bf16.msra.mxu0 0
    %2395 = vmatprep.subr.bf16.mxu0 0
    %2396 = vmatpush2.bf16.msra.mxu0 0
    %2397 = vmatprep.subr.bf16.mxu0 0
    %2398 = vmatpush2.bf16.msra.mxu0 0
    %2399 = vmatprep.subr.bf16.mxu0 0
    %2400 = vmatpush2.bf16.msra.mxu0 0
    %2401 = vmatprep.subr.bf16.mxu0 0
    %2402 = vmatpush2.bf16.msra.mxu0 0
    %2403 = vmatprep.subr.bf16.mxu0 0
    %2404 = vmatpush2.bf16.msra.mxu0 0
    %2405 = vmatprep.mubr.bf16.mxu0 0
    %2406 = vmatmul.mubr.bf16.gmra.mxu0 %v2331
    %v2407 = vpop.f32.mrf.mxu0
    %v2408 = vadd.f32 %v505, %v2407
    %v2409 = vpop.f32.mrf.mxu0
    %v2410 = vpop.f32.mrf.mxu0
    %v2411 = vpop.f32.mrf.mxu0
    %2412 = vdwg.mxu0
    %v2414 = vrot.slane %v2367, 2
    %v2416 = vadd.f32 %v317, %v2414
    %v2417 = vxor.u32 %v2416, 2147483648
    %v2418 = vmul.f32 %v2417, 1.442695
    %v2419 = vpow.pop %v2418
    %v2420 = vadd.f32 %v2419, 1.0
    %v2421 = vrcp.pop %v2420
    %v2422 = vmul.f32 1.0, %v2421
    %v2424 = vrot.slane %v2369, 2
    %v2426 = vadd.f32 %v319, %v2424
    %v2427 = vxor.u32 %v2426, 2147483648
    %v2428 = vmul.f32 %v2427, 1.442695
    %v2429 = vpow.pop %v2428
    %v2430 = vadd.f32 %v2429, 1.0
    %v2431 = vrcp.pop %v2430
    %v2432 = vmul.f32 1.0, %v2431
    %v2434 = vrot.slane %v2408, 2
    %v2436 = vmul.f32 %v2422, %v2434
    %v2437 = vadd.f32 %v358, %v2436
    %v2438 = vtanh.pop %v2437
    %v2439 = vsub.f32 1.0, %v2432
    %v2440 = vmul.f32 %v2439, %v2438
    %v2442 = vrot.slane %v2329, 2
    %v2444 = vmul.f32 %v2432, %v2442
    %v2445 = vadd.f32 %v2440, %v2444
    %v2446 = vpack.c.bf16 %v2445, %v2445
    %v2448 = vrot.slane %v2446, 3
    %2450 = vmatprep.subr.bf16.mxu0 %v256
    %2451 = vmatpush1.bf16.msra.mxu0 %v255
    %2452 = vmatprep.subr.bf16.mxu0 %v253
    %2453 = vmatpush1.bf16.msra.mxu0 %v252
    %2454 = vmatprep.subr.bf16.mxu0 %v250
    %2455 = vmatpush1.bf16.msra.mxu0 %v249
    %2456 = vmatprep.subr.bf16.mxu0 %v247
    %2457 = vmatpush1.bf16.msra.mxu0 %v246
    %2458 = vmatprep.subr.bf16.mxu0 %v244
    %2459 = vmatpush1.bf16.msra.mxu0 %v243
    %2460 = vmatprep.subr.bf16.mxu0 %v241
    %2461 = vmatpush1.bf16.msra.mxu0 %v240
    %2462 = vmatprep.subr.bf16.mxu0 %v238
    %2463 = vmatpush1.bf16.msra.mxu0 %v237
    %2464 = vmatprep.subr.bf16.mxu0 %v235
    %2465 = vmatpush1.bf16.msra.mxu0 %v234
    %2466 = vmatprep.subr.bf16.mxu0 0
    %2467 = vmatpush2.bf16.msra.mxu0 0
    %2468 = vmatprep.subr.bf16.mxu0 0
    %2469 = vmatpush2.bf16.msra.mxu0 0
    %2470 = vmatprep.subr.bf16.mxu0 0
    %2471 = vmatpush2.bf16.msra.mxu0 0
    %2472 = vmatprep.subr.bf16.mxu0 0
    %2473 = vmatpush2.bf16.msra.mxu0 0
    %2474 = vmatprep.subr.bf16.mxu0 0
    %2475 = vmatpush2.bf16.msra.mxu0 0
    %2476 = vmatprep.subr.bf16.mxu0 0
    %2477 = vmatpush2.bf16.msra.mxu0 0
    %2478 = vmatprep.subr.bf16.mxu0 0
    %2479 = vmatpush2.bf16.msra.mxu0 0
    %2480 = vmatprep.subr.bf16.mxu0 0
    %2481 = vmatpush2.bf16.msra.mxu0 0
    %2482 = vmatprep.mubr.bf16.mxu0 0
    %2483 = vmatmul.mubr.bf16.gmra.mxu0 %v2448
    %v2484 = vpop.f32.mrf.mxu0
    %v2485 = vadd.f32 %v142, %v2484
    %v2486 = vpop.f32.mrf.mxu0
    %v2487 = vadd.f32 %v146, %v2486
    %v2488 = vpop.f32.mrf.mxu0
    %v2489 = vpop.f32.mrf.mxu0
    %2490 = vdwg.mxu0
    %2491 = vmatprep.subr.bf16.mxu0 0
    %2492 = vmatpush1.bf16.msra.mxu0 %v257
    %2493 = vmatprep.subr.bf16.mxu0 0
    %2494 = vmatpush1.bf16.msra.mxu0 %v254
    %2495 = vmatprep.subr.bf16.mxu0 0
    %2496 = vmatpush1.bf16.msra.mxu0 %v251
    %2497 = vmatprep.subr.bf16.mxu0 0
    %2498 = vmatpush1.bf16.msra.mxu0 %v248
    %2499 = vmatprep.subr.bf16.mxu0 0
    %2500 = vmatpush1.bf16.msra.mxu0 %v245
    %2501 = vmatprep.subr.bf16.mxu0 0
    %2502 = vmatpush1.bf16.msra.mxu0 %v242
    %2503 = vmatprep.subr.bf16.mxu0 0
    %2504 = vmatpush1.bf16.msra.mxu0 %v239
    %2505 = vmatprep.subr.bf16.mxu0 0
    %2506 = vmatpush1.bf16.msra.mxu0 %v236
    %2507 = vmatprep.subr.bf16.mxu0 0
    %2508 = vmatpush2.bf16.msra.mxu0 0
    %2509 = vmatprep.subr.bf16.mxu0 0
    %2510 = vmatpush2.bf16.msra.mxu0 0
    %2511 = vmatprep.subr.bf16.mxu0 0
    %2512 = vmatpush2.bf16.msra.mxu0 0
    %2513 = vmatprep.subr.bf16.mxu0 0
    %2514 = vmatpush2.bf16.msra.mxu0 0
    %2515 = vmatprep.subr.bf16.mxu0 0
    %2516 = vmatpush2.bf16.msra.mxu0 0
    %2517 = vmatprep.subr.bf16.mxu0 0
    %2518 = vmatpush2.bf16.msra.mxu0 0
    %2519 = vmatprep.subr.bf16.mxu0 0
    %2520 = vmatpush2.bf16.msra.mxu0 0
    %2521 = vmatprep.subr.bf16.mxu0 0
    %2522 = vmatpush2.bf16.msra.mxu0 0
    %2523 = vmatprep.mubr.bf16.mxu0 0
    %2524 = vmatmul.mubr.bf16.gmra.mxu0 %v2448
    %v2525 = vpop.f32.mrf.mxu0
    %v2526 = vadd.f32 %v150, %v2525
    %v2527 = vpop.f32.mrf.mxu0
    %v2528 = vpop.f32.mrf.mxu0
    %v2529 = vpop.f32.mrf.mxu0
    %2530 = vdwg.mxu0
    %2531 = vmatprep.subr.bf16.mxu0 %v467
    %2532 = vmatpush1.bf16.msra.mxu0 %v466
    %2533 = vmatprep.subr.bf16.mxu0 %v464
    %2534 = vmatpush1.bf16.msra.mxu0 %v463
    %2535 = vmatprep.subr.bf16.mxu0 %v461
    %2536 = vmatpush1.bf16.msra.mxu0 %v460
    %2537 = vmatprep.subr.bf16.mxu0 %v458
    %2538 = vmatpush1.bf16.msra.mxu0 %v457
    %2539 = vmatprep.subr.bf16.mxu0 %v455
    %2540 = vmatpush1.bf16.msra.mxu0 %v454
    %2541 = vmatprep.subr.bf16.mxu0 %v452
    %2542 = vmatpush1.bf16.msra.mxu0 %v451
    %2543 = vmatprep.subr.bf16.mxu0 %v449
    %2544 = vmatpush1.bf16.msra.mxu0 %v448
    %2545 = vmatprep.subr.bf16.mxu0 %v446
    %2546 = vmatpush1.bf16.msra.mxu0 %v445
    %2547 = vmatprep.subr.bf16.mxu0 0
    %2548 = vmatpush2.bf16.msra.mxu0 0
    %2549 = vmatprep.subr.bf16.mxu0 0
    %2550 = vmatpush2.bf16.msra.mxu0 0
    %2551 = vmatprep.subr.bf16.mxu0 0
    %2552 = vmatpush2.bf16.msra.mxu0 0
    %2553 = vmatprep.subr.bf16.mxu0 0
    %2554 = vmatpush2.bf16.msra.mxu0 0
    %2555 = vmatprep.subr.bf16.mxu0 0
    %2556 = vmatpush2.bf16.msra.mxu0 0
    %2557 = vmatprep.subr.bf16.mxu0 0
    %2558 = vmatpush2.bf16.msra.mxu0 0
    %2559 = vmatprep.subr.bf16.mxu0 0
    %2560 = vmatpush2.bf16.msra.mxu0 0
    %2561 = vmatprep.subr.bf16.mxu0 0
    %2562 = vmatpush2.bf16.msra.mxu0 0
    %2563 = vmatprep.mubr.bf16.mxu0 0
    %2564 = vmatmul.mubr.bf16.gmra.mxu0 %v2448
    %v2565 = vpop.f32.mrf.mxu0
    %v2566 = vadd.f32 %v497, %v2565
    %v2567 = vpop.f32.mrf.mxu0
    %v2568 = vadd.f32 %v501, %v2567
    %v2569 = vpop.f32.mrf.mxu0
    %v2570 = vpop.f32.mrf.mxu0
    %2571 = vdwg.mxu0
    %2572 = vmatprep.subr.bf16.mxu0 0
    %2573 = vmatpush1.bf16.msra.mxu0 %v468
    %2574 = vmatprep.subr.bf16.mxu0 0
    %2575 = vmatpush1.bf16.msra.mxu0 %v465
    %2576 = vmatprep.subr.bf16.mxu0 0
    %2577 = vmatpush1.bf16.msra.mxu0 %v462
    %2578 = vmatprep.subr.bf16.mxu0 0
    %2579 = vmatpush1.bf16.msra.mxu0 %v459
    %2580 = vmatprep.subr.bf16.mxu0 0
    %2581 = vmatpush1.bf16.msra.mxu0 %v456
    %2582 = vmatprep.subr.bf16.mxu0 0
    %2583 = vmatpush1.bf16.msra.mxu0 %v453
    %2584 = vmatprep.subr.bf16.mxu0 0
    %2585 = vmatpush1.bf16.msra.mxu0 %v450
    %2586 = vmatprep.subr.bf16.mxu0 0
    %2587 = vmatpush1.bf16.msra.mxu0 %v447
    %2588 = vmatprep.subr.bf16.mxu0 0
    %2589 = vmatpush2.bf16.msra.mxu0 0
    %2590 = vmatprep.subr.bf16.mxu0 0
    %2591 = vmatpush2.bf16.msra.mxu0 0
    %2592 = vmatprep.subr.bf16.mxu0 0
    %2593 = vmatpush2.bf16.msra.mxu0 0
    %2594 = vmatprep.subr.bf16.mxu0 0
    %2595 = vmatpush2.bf16.msra.mxu0 0
    %2596 = vmatprep.subr.bf16.mxu0 0
    %2597 = vmatpush2.bf16.msra.mxu0 0
    %2598 = vmatprep.subr.bf16.mxu0 0
    %2599 = vmatpush2.bf16.msra.mxu0 0
    %2600 = vmatprep.subr.bf16.mxu0 0
    %2601 = vmatpush2.bf16.msra.mxu0 0
    %2602 = vmatprep.subr.bf16.mxu0 0
    %2603 = vmatpush2.bf16.msra.mxu0 0
    %2604 = vmatprep.mubr.bf16.mxu0 0
    %2605 = vmatmul.mubr.bf16.gmra.mxu0 %v2448
    %v2606 = vpop.f32.mrf.mxu0
    %v2607 = vadd.f32 %v505, %v2606
    %v2608 = vpop.f32.mrf.mxu0
    %v2609 = vpop.f32.mrf.mxu0
    %v2610 = vpop.f32.mrf.mxu0
    %2611 = vdwg.mxu0
    %v2612 = vadd.f32 %v2485, %v2566
    %v2613 = vxor.u32 %v2612, 2147483648
    %v2614 = vmul.f32 %v2613, 1.442695
    %v2615 = vpow.pop %v2614
    %v2616 = vadd.f32 %v2615, 1.0
    %v2617 = vrcp.pop %v2616
    %v2618 = vmul.f32 1.0, %v2617
    %v2619 = vadd.f32 %v2487, %v2568
    %v2620 = vxor.u32 %v2619, 2147483648
    %v2621 = vmul.f32 %v2620, 1.442695
    %v2622 = vpow.pop %v2621
    %v2623 = vadd.f32 %v2622, 1.0
    %v2624 = vrcp.pop %v2623
    %v2625 = vmul.f32 1.0, %v2624
    %v2626 = vmul.f32 %v2618, %v2607
    %v2627 = vadd.f32 %v2526, %v2626
    %v2628 = vtanh.pop %v2627
    %v2629 = vsub.f32 1.0, %v2625
    %v2630 = vmul.f32 %v2629, %v2628
    %v2632 = vrot.slane %v2445, 6
    %v2634 = vmul.f32 %v2625, %v2632
    %v2635 = vadd.f32 %v2630, %v2634
    %2636 = vst [vmem:[#allocation9 + $0x6] sm:$0x1] %v2635
    %v2637 = vpack.c.bf16 %v2635, %v2635
    %2638 = vmatprep.subr.bf16.mxu0 %v467
    %2639 = vmatpush1.bf16.msra.mxu0 %v466
    %2640 = vmatprep.subr.bf16.mxu0 %v464
    %2641 = vmatpush1.bf16.msra.mxu0 %v463
    %2642 = vmatprep.subr.bf16.mxu0 %v461
    %2643 = vmatpush1.bf16.msra.mxu0 %v460
    %2644 = vmatprep.subr.bf16.mxu0 %v458
    %2645 = vmatpush1.bf16.msra.mxu0 %v457
    %2646 = vmatprep.subr.bf16.mxu0 %v455
    %2647 = vmatpush1.bf16.msra.mxu0 %v454
    %2648 = vmatprep.subr.bf16.mxu0 %v452
    %2649 = vmatpush1.bf16.msra.mxu0 %v451
    %2650 = vmatprep.subr.bf16.mxu0 %v449
    %2651 = vmatpush1.bf16.msra.mxu0 %v448
    %2652 = vmatprep.subr.bf16.mxu0 %v446
    %2653 = vmatpush1.bf16.msra.mxu0 %v445
    %2654 = vmatprep.subr.bf16.mxu0 0
    %2655 = vmatpush2.bf16.msra.mxu0 0
    %2656 = vmatprep.subr.bf16.mxu0 0
    %2657 = vmatpush2.bf16.msra.mxu0 0
    %2658 = vmatprep.subr.bf16.mxu0 0
    %2659 = vmatpush2.bf16.msra.mxu0 0
    %2660 = vmatprep.subr.bf16.mxu0 0
    %2661 = vmatpush2.bf16.msra.mxu0 0
    %2662 = vmatprep.subr.bf16.mxu0 0
    %2663 = vmatpush2.bf16.msra.mxu0 0
    %2664 = vmatprep.subr.bf16.mxu0 0
    %2665 = vmatpush2.bf16.msra.mxu0 0
    %2666 = vmatprep.subr.bf16.mxu0 0
    %2667 = vmatpush2.bf16.msra.mxu0 0
    %2668 = vmatprep.subr.bf16.mxu0 0
    %2669 = vmatpush2.bf16.msra.mxu0 0
    %2670 = vmatprep.mubr.bf16.mxu0 0
    %2671 = vmatmul.mubr.bf16.gmra.mxu0 %v2637
    %v2672 = vpop.f32.mrf.mxu0
    %v2673 = vadd.f32 %v497, %v2672
    %v2674 = vpop.f32.mrf.mxu0
    %v2675 = vadd.f32 %v501, %v2674
    %v2676 = vpop.f32.mrf.mxu0
    %v2677 = vpop.f32.mrf.mxu0
    %2678 = vdwg.mxu0
    %2679 = vmatprep.subr.bf16.mxu0 0
    %2680 = vmatpush1.bf16.msra.mxu0 %v468
    %2681 = vmatprep.subr.bf16.mxu0 0
    %2682 = vmatpush1.bf16.msra.mxu0 %v465
    %2683 = vmatprep.subr.bf16.mxu0 0
    %2684 = vmatpush1.bf16.msra.mxu0 %v462
    %2685 = vmatprep.subr.bf16.mxu0 0
    %2686 = vmatpush1.bf16.msra.mxu0 %v459
    %2687 = vmatprep.subr.bf16.mxu0 0
    %2688 = vmatpush1.bf16.msra.mxu0 %v456
    %2689 = vmatprep.subr.bf16.mxu0 0
    %2690 = vmatpush1.bf16.msra.mxu0 %v453
    %2691 = vmatprep.subr.bf16.mxu0 0
    %2692 = vmatpush1.bf16.msra.mxu0 %v450
    %2693 = vmatprep.subr.bf16.mxu0 0
    %2694 = vmatpush1.bf16.msra.mxu0 %v447
    %2695 = vmatprep.subr.bf16.mxu0 0
    %2696 = vmatpush2.bf16.msra.mxu0 0
    %2697 = vmatprep.subr.bf16.mxu0 0
    %2698 = vmatpush2.bf16.msra.mxu0 0
    %2699 = vmatprep.subr.bf16.mxu0 0
    %2700 = vmatpush2.bf16.msra.mxu0 0
    %2701 = vmatprep.subr.bf16.mxu0 0
    %2702 = vmatpush2.bf16.msra.mxu0 0
    %2703 = vmatprep.subr.bf16.mxu0 0
    %2704 = vmatpush2.bf16.msra.mxu0 0
    %2705 = vmatprep.subr.bf16.mxu0 0
    %2706 = vmatpush2.bf16.msra.mxu0 0
    %2707 = vmatprep.subr.bf16.mxu0 0
    %2708 = vmatpush2.bf16.msra.mxu0 0
    %2709 = vmatprep.subr.bf16.mxu0 0
    %2710 = vmatpush2.bf16.msra.mxu0 0
    %2711 = vmatprep.mubr.bf16.mxu0 0
    %2712 = vmatmul.mubr.bf16.gmra.mxu0 %v2637
    %v2713 = vpop.f32.mrf.mxu0
    %v2714 = vadd.f32 %v505, %v2713
    %v2715 = vpop.f32.mrf.mxu0
    %v2716 = vpop.f32.mrf.mxu0
    %v2717 = vpop.f32.mrf.mxu0
    %2718 = vdwg.mxu0
    %v2720 = vrot.slane %v2673, 1
    %v2722 = vadd.f32 %v317, %v2720
    %v2723 = vxor.u32 %v2722, 2147483648
    %v2724 = vmul.f32 %v2723, 1.442695
    %v2725 = vpow.pop %v2724
    %v2726 = vadd.f32 %v2725, 1.0
    %v2727 = vrcp.pop %v2726
    %v2728 = vmul.f32 1.0, %v2727
    %v2730 = vrot.slane %v2675, 1
    %v2732 = vadd.f32 %v319, %v2730
    %v2733 = vxor.u32 %v2732, 2147483648
    %v2734 = vmul.f32 %v2733, 1.442695
    %v2735 = vpow.pop %v2734
    %v2736 = vadd.f32 %v2735, 1.0
    %v2737 = vrcp.pop %v2736
    %v2738 = vmul.f32 1.0, %v2737
    %v2740 = vrot.slane %v2714, 1
    %v2742 = vmul.f32 %v2728, %v2740
    %v2743 = vadd.f32 %v358, %v2742
    %v2744 = vtanh.pop %v2743
    %v2745 = vsub.f32 1.0, %v2738
    %v2746 = vmul.f32 %v2745, %v2744
    %v2748 = vrot.slane %v2635, 1
    %v2750 = vmul.f32 %v2738, %v2748
    %v2751 = vadd.f32 %v2746, %v2750
    %v2752 = vpack.c.bf16 %v2751, %v2751
    %v2754 = vshrl.u32 %v2752, 16
    %v2756 = vrot.slane %v2754, 3
    %2758 = vmatprep.subr.bf16.mxu0 %v256
    %2759 = vmatpush1.bf16.msra.mxu0 %v255
    %2760 = vmatprep.subr.bf16.mxu0 %v253
    %2761 = vmatpush1.bf16.msra.mxu0 %v252
    %2762 = vmatprep.subr.bf16.mxu0 %v250
    %2763 = vmatpush1.bf16.msra.mxu0 %v249
    %2764 = vmatprep.subr.bf16.mxu0 %v247
    %2765 = vmatpush1.bf16.msra.mxu0 %v246
    %2766 = vmatprep.subr.bf16.mxu0 %v244
    %2767 = vmatpush1.bf16.msra.mxu0 %v243
    %2768 = vmatprep.subr.bf16.mxu0 %v241
    %2769 = vmatpush1.bf16.msra.mxu0 %v240
    %2770 = vmatprep.subr.bf16.mxu0 %v238
    %2771 = vmatpush1.bf16.msra.mxu0 %v237
    %2772 = vmatprep.subr.bf16.mxu0 %v235
    %2773 = vmatpush1.bf16.msra.mxu0 %v234
    %2774 = vmatprep.subr.bf16.mxu0 0
    %2775 = vmatpush2.bf16.msra.mxu0 0
    %2776 = vmatprep.subr.bf16.mxu0 0
    %2777 = vmatpush2.bf16.msra.mxu0 0
    %2778 = vmatprep.subr.bf16.mxu0 0
    %2779 = vmatpush2.bf16.msra.mxu0 0
    %2780 = vmatprep.subr.bf16.mxu0 0
    %2781 = vmatpush2.bf16.msra.mxu0 0
    %2782 = vmatprep.subr.bf16.mxu0 0
    %2783 = vmatpush2.bf16.msra.mxu0 0
    %2784 = vmatprep.subr.bf16.mxu0 0
    %2785 = vmatpush2.bf16.msra.mxu0 0
    %2786 = vmatprep.subr.bf16.mxu0 0
    %2787 = vmatpush2.bf16.msra.mxu0 0
    %2788 = vmatprep.subr.bf16.mxu0 0
    %2789 = vmatpush2.bf16.msra.mxu0 0
    %2790 = vmatprep.mubr.bf16.mxu0 0
    %2791 = vmatmul.mubr.bf16.gmra.mxu0 %v2756
    %v2792 = vpop.f32.mrf.mxu0
    %v2793 = vadd.f32 %v142, %v2792
    %v2794 = vpop.f32.mrf.mxu0
    %v2795 = vadd.f32 %v146, %v2794
    %v2796 = vpop.f32.mrf.mxu0
    %v2797 = vpop.f32.mrf.mxu0
    %2798 = vdwg.mxu0
    %2799 = vmatprep.subr.bf16.mxu0 0
    %2800 = vmatpush1.bf16.msra.mxu0 %v257
    %2801 = vmatprep.subr.bf16.mxu0 0
    %2802 = vmatpush1.bf16.msra.mxu0 %v254
    %2803 = vmatprep.subr.bf16.mxu0 0
    %2804 = vmatpush1.bf16.msra.mxu0 %v251
    %2805 = vmatprep.subr.bf16.mxu0 0
    %2806 = vmatpush1.bf16.msra.mxu0 %v248
    %2807 = vmatprep.subr.bf16.mxu0 0
    %2808 = vmatpush1.bf16.msra.mxu0 %v245
    %2809 = vmatprep.subr.bf16.mxu0 0
    %2810 = vmatpush1.bf16.msra.mxu0 %v242
    %2811 = vmatprep.subr.bf16.mxu0 0
    %2812 = vmatpush1.bf16.msra.mxu0 %v239
    %2813 = vmatprep.subr.bf16.mxu0 0
    %2814 = vmatpush1.bf16.msra.mxu0 %v236
    %2815 = vmatprep.subr.bf16.mxu0 0
    %2816 = vmatpush2.bf16.msra.mxu0 0
    %2817 = vmatprep.subr.bf16.mxu0 0
    %2818 = vmatpush2.bf16.msra.mxu0 0
    %2819 = vmatprep.subr.bf16.mxu0 0
    %2820 = vmatpush2.bf16.msra.mxu0 0
    %2821 = vmatprep.subr.bf16.mxu0 0
    %2822 = vmatpush2.bf16.msra.mxu0 0
    %2823 = vmatprep.subr.bf16.mxu0 0
    %2824 = vmatpush2.bf16.msra.mxu0 0
    %2825 = vmatprep.subr.bf16.mxu0 0
    %2826 = vmatpush2.bf16.msra.mxu0 0
    %2827 = vmatprep.subr.bf16.mxu0 0
    %2828 = vmatpush2.bf16.msra.mxu0 0
    %2829 = vmatprep.subr.bf16.mxu0 0
    %2830 = vmatpush2.bf16.msra.mxu0 0
    %2831 = vmatprep.mubr.bf16.mxu0 0
    %2832 = vmatmul.mubr.bf16.gmra.mxu0 %v2756
    %v2833 = vpop.f32.mrf.mxu0
    %v2834 = vadd.f32 %v150, %v2833
    %v2835 = vpop.f32.mrf.mxu0
    %v2836 = vpop.f32.mrf.mxu0
    %v2837 = vpop.f32.mrf.mxu0
    %2838 = vdwg.mxu0
    %2839 = vmatprep.subr.bf16.mxu0 %v467
    %2840 = vmatpush1.bf16.msra.mxu0 %v466
    %2841 = vmatprep.subr.bf16.mxu0 %v464
    %2842 = vmatpush1.bf16.msra.mxu0 %v463
    %2843 = vmatprep.subr.bf16.mxu0 %v461
    %2844 = vmatpush1.bf16.msra.mxu0 %v460
    %2845 = vmatprep.subr.bf16.mxu0 %v458
    %2846 = vmatpush1.bf16.msra.mxu0 %v457
    %2847 = vmatprep.subr.bf16.mxu0 %v455
    %2848 = vmatpush1.bf16.msra.mxu0 %v454
    %2849 = vmatprep.subr.bf16.mxu0 %v452
    %2850 = vmatpush1.bf16.msra.mxu0 %v451
    %2851 = vmatprep.subr.bf16.mxu0 %v449
    %2852 = vmatpush1.bf16.msra.mxu0 %v448
    %2853 = vmatprep.subr.bf16.mxu0 %v446
    %2854 = vmatpush1.bf16.msra.mxu0 %v445
    %2855 = vmatprep.subr.bf16.mxu0 0
    %2856 = vmatpush2.bf16.msra.mxu0 0
    %2857 = vmatprep.subr.bf16.mxu0 0
    %2858 = vmatpush2.bf16.msra.mxu0 0
    %2859 = vmatprep.subr.bf16.mxu0 0
    %2860 = vmatpush2.bf16.msra.mxu0 0
    %2861 = vmatprep.subr.bf16.mxu0 0
    %2862 = vmatpush2.bf16.msra.mxu0 0
    %2863 = vmatprep.subr.bf16.mxu0 0
    %2864 = vmatpush2.bf16.msra.mxu0 0
    %2865 = vmatprep.subr.bf16.mxu0 0
    %2866 = vmatpush2.bf16.msra.mxu0 0
    %2867 = vmatprep.subr.bf16.mxu0 0
    %2868 = vmatpush2.bf16.msra.mxu0 0
    %2869 = vmatprep.subr.bf16.mxu0 0
    %2870 = vmatpush2.bf16.msra.mxu0 0
    %2871 = vmatprep.mubr.bf16.mxu0 0
    %2872 = vmatmul.mubr.bf16.gmra.mxu0 %v2756
    %v2873 = vpop.f32.mrf.mxu0
    %v2874 = vadd.f32 %v497, %v2873
    %v2875 = vpop.f32.mrf.mxu0
    %v2876 = vadd.f32 %v501, %v2875
    %v2877 = vpop.f32.mrf.mxu0
    %v2878 = vpop.f32.mrf.mxu0
    %2879 = vdwg.mxu0
    %2880 = vmatprep.subr.bf16.mxu0 0
    %2881 = vmatpush1.bf16.msra.mxu0 %v468
    %2882 = vmatprep.subr.bf16.mxu0 0
    %2883 = vmatpush1.bf16.msra.mxu0 %v465
    %2884 = vmatprep.subr.bf16.mxu0 0
    %2885 = vmatpush1.bf16.msra.mxu0 %v462
    %2886 = vmatprep.subr.bf16.mxu0 0
    %2887 = vmatpush1.bf16.msra.mxu0 %v459
    %2888 = vmatprep.subr.bf16.mxu0 0
    %2889 = vmatpush1.bf16.msra.mxu0 %v456
    %2890 = vmatprep.subr.bf16.mxu0 0
    %2891 = vmatpush1.bf16.msra.mxu0 %v453
    %2892 = vmatprep.subr.bf16.mxu0 0
    %2893 = vmatpush1.bf16.msra.mxu0 %v450
    %2894 = vmatprep.subr.bf16.mxu0 0
    %2895 = vmatpush1.bf16.msra.mxu0 %v447
    %2896 = vmatprep.subr.bf16.mxu0 0
    %2897 = vmatpush2.bf16.msra.mxu0 0
    %2898 = vmatprep.subr.bf16.mxu0 0
    %2899 = vmatpush2.bf16.msra.mxu0 0
    %2900 = vmatprep.subr.bf16.mxu0 0
    %2901 = vmatpush2.bf16.msra.mxu0 0
    %2902 = vmatprep.subr.bf16.mxu0 0
    %2903 = vmatpush2.bf16.msra.mxu0 0
    %2904 = vmatprep.subr.bf16.mxu0 0
    %2905 = vmatpush2.bf16.msra.mxu0 0
    %2906 = vmatprep.subr.bf16.mxu0 0
    %2907 = vmatpush2.bf16.msra.mxu0 0
    %2908 = vmatprep.subr.bf16.mxu0 0
    %2909 = vmatpush2.bf16.msra.mxu0 0
    %2910 = vmatprep.subr.bf16.mxu0 0
    %2911 = vmatpush2.bf16.msra.mxu0 0
    %2912 = vmatprep.mubr.bf16.mxu0 0
    %2913 = vmatmul.mubr.bf16.gmra.mxu0 %v2756
    %v2914 = vpop.f32.mrf.mxu0
    %v2915 = vadd.f32 %v505, %v2914
    %v2916 = vpop.f32.mrf.mxu0
    %v2917 = vpop.f32.mrf.mxu0
    %v2918 = vpop.f32.mrf.mxu0
    %2919 = vdwg.mxu0
    %v2920 = vadd.f32 %v2793, %v2874
    %v2921 = vxor.u32 %v2920, 2147483648
    %v2922 = vmul.f32 %v2921, 1.442695
    %v2923 = vpow.pop %v2922
    %v2924 = vadd.f32 %v2923, 1.0
    %v2925 = vrcp.pop %v2924
    %v2926 = vmul.f32 1.0, %v2925
    %v2927 = vadd.f32 %v2795, %v2876
    %v2928 = vxor.u32 %v2927, 2147483648
    %v2929 = vmul.f32 %v2928, 1.442695
    %v2930 = vpow.pop %v2929
    %v2931 = vadd.f32 %v2930, 1.0
    %v2932 = vrcp.pop %v2931
    %v2933 = vmul.f32 1.0, %v2932
    %v2934 = vmul.f32 %v2926, %v2915
    %v2935 = vadd.f32 %v2834, %v2934
    %v2936 = vtanh.pop %v2935
    %v2937 = vsub.f32 1.0, %v2933
    %v2938 = vmul.f32 %v2937, %v2936
    %v2940 = vrot.slane %v2751, 7
    %v2942 = vmul.f32 %v2933, %v2940
    %v2943 = vadd.f32 %v2938, %v2942
    %2944 = vst [vmem:[#allocation9 + $0x7] sm:$0x1] %v2943
    %2945 = vst [vmem:[#allocation2] sm:$0x1] %v2943
    // Predicated region
    $region42: #{tpu_custom_call.1} parent=1 // pred_check
      _
    $region43: #{tpu_custom_call.1} parent=1 // pred_check_branch
      %2947 = sbr.rel (0) target = $region45
    $region44: #{tpu_custom_call.1} parent=1 // pred_region
      %s2949 = ssub.s32 128, 128
      %2950 = vsyncadd [#allocation5], %s2949
      %s2952 = sshll.u32 [#allocation9], 4
      %s2953 = int_to_ptr.vmem [resolvable:$true] %s2952
      %2955 = dma.vmem_to_hbm [thread:$0]  %s2953, 128, %s6, [#allocation5]
    $region45: #{tpu_custom_call.1} parent=1 // pred_fallthru
      _
    // Predicated region
    $region46: #{tpu_custom_call.1} parent=1 // pred_check
      _
    $region47: #{tpu_custom_call.1} parent=1 // pred_check_branch
      %2957 = sbr.rel (0) target = $region49
    $region48: #{tpu_custom_call.1} parent=1 // pred_region
      %2958 = dma.done [#allocation5], 128
    $region49: #{tpu_custom_call.1} parent=1 // pred_fallthru
      _
    %2959 = vsyncpa [#allocation4], 1
    %2960 = vsyncpa [#allocation7], 1
    %2961 = vsyncpa [#allocation5], 1

</llo_original>
